<compile_context>
chip_gen: v6e
topology: v6e:2x2x1
jax: 0.10.0
libtpu: 0.0.40
codegen_flags: <defaults>
</compile_context>

<pallas_src>
import jax
import jax.numpy as jnp
from jax import lax
from jax.experimental import pallas as pl
from jax.experimental.pallas import tpu as pltpu

NUM_EMBD = 192
NUM_HEADS = 6
HEAD_SIZE = NUM_EMBD // NUM_HEADS   # 32
BLOCK_SIZE = 128                    # causal mask buffer size in the PyTorch module


# --------------------------- fused MHA kernel --------------------------------
def _mha_fused_kernel(x_ref, wqkv_ref, wproj_ref, bproj_ref, o_ref):
    # x_ref:     (1, T, C)        current batch element
    # wqkv_ref:  (C, 3*H*hs)      packed [Q heads | K heads | V heads] weights
    # wproj_ref: (D, D)           output projection weight (in, out layout)
    # bproj_ref: (1, D)           output projection bias (f32)
    # o_ref:     (1, T, D)        lane-dense output block
    x = x_ref[0]                         # (T, C)
    mx_dtype = x.dtype                   # matmul-operand dtype (f32 or bf16)

    # Fused QKV projection: one (T,C)@(C,576) MXU matmul, f32 accumulation.
    qkv = jnp.dot(x, wqkv_ref[...], preferred_element_type=jnp.float32)

    T = x.shape[0]
    scale = float(HEAD_SIZE) ** -0.5

    # Causal mask built once, reused by every head.
    row = lax.broadcasted_iota(jnp.int32, (T, T), 0)
    col = lax.broadcasted_iota(jnp.int32, (T, T), 1)
    causal = col <= row

    contract_last = (((1,), (1,)), ((), ()))   # q @ k^T without explicit k.T

    head_outs = []
    for h in range(NUM_HEADS):                 # static, unrolled (6 heads)
        q = qkv[:, h * HEAD_SIZE:(h + 1) * HEAD_SIZE].astype(mx_dtype)
        k = qkv[:, (NUM_HEADS + h) * HEAD_SIZE:
                   (NUM_HEADS + h + 1) * HEAD_SIZE].astype(mx_dtype)
        v = qkv[:, (2 * NUM_HEADS + h) * HEAD_SIZE:
                   (2 * NUM_HEADS + h + 1) * HEAD_SIZE].astype(mx_dtype)

        s = lax.dot_general(q, k, contract_last,
                            preferred_element_type=jnp.float32) * scale
        s = jnp.where(causal, s, -jnp.inf)
        # numerically stable softmax, f32 throughout
        s = s - jnp.max(s, axis=-1, keepdims=True)
        p = jnp.exp(s)
        p = p * pl.reciprocal(jnp.sum(p, axis=-1, keepdims=True), approx=True)

        head_outs.append(
            jnp.dot(p.astype(mx_dtype), v, preferred_element_type=jnp.float32))

    # torch.cat([head(x) for head in heads], dim=-1)  -> lane-dense (T, D)
    out_sa = jnp.concatenate(head_outs, axis=-1)

    # output projection + bias, fused in the same kernel body
    out = jnp.dot(out_sa.astype(wproj_ref.dtype), wproj_ref[...],
                  preferred_element_type=jnp.float32) + bproj_ref[...]
    o_ref[0] = out.astype(o_ref.dtype)


# ------------------------------- wrapper --------------------------------------
def multi_head_attention(x, wq, wk, wv, w_proj, b_proj, *, compute_dtype=None):
    """
    x:        (B, T, C)
    wq/wk/wv: (H, C, hs)   per-head projection weights (already transposed,
                            i.e. x @ w == PyTorch x @ weight.T)
    w_proj:   (D, D)       projection weight, stored as (in, out) => x @ w_proj
    b_proj:   (D,)         projection bias
    compute_dtype: optional dtype (e.g. jnp.bfloat16) for the MXU operands on
                   v6e/v7x; softmax and accumulation always stay in f32.
    returns   (B, T, D)
    """
    B, T, C = x.shape
    H, _, hs = wq.shape
    D = H * hs
    out_dtype = x.dtype

    if compute_dtype is not None:
        x = x.astype(compute_dtype)
        wq = wq.astype(compute_dtype)
        wk = wk.astype(compute_dtype)
        wv = wv.astype(compute_dtype)
        w_proj = w_proj.astype(compute_dtype)

    # Pack per-head weights: (H, C, hs) -> (C, H*hs); concat [Q | K | V].
    def _pack(w):
        return jnp.transpose(w, (1, 0, 2)).reshape(C, H * hs)

    w_qkv = jnp.concatenate([_pack(wq), _pack(wk), _pack(wv)], axis=-1)  # (C, 3D)
    b_proj2d = b_proj.astype(jnp.float32).reshape(1, D)

    out = pl.pallas_call(
        _mha_fused_kernel,
        out_shape=jax.ShapeDtypeStruct((B, T, D), out_dtype),
        grid=(B,),
        in_specs=[
            pl.BlockSpec((1, T, C), lambda b: (b, 0, 0)),
            pl.BlockSpec((C, 3 * D), lambda b: (0, 0)),
            pl.BlockSpec((D, D), lambda b: (0, 0)),
            pl.BlockSpec((1, D), lambda b: (0, 0)),
        ],
        out_specs=pl.BlockSpec((1, T, D), lambda b: (b, 0, 0)),
        compiler_params=pltpu.CompilerParams(
            dimension_semantics=("parallel",)),   # B>=2 -> both v7x cores busy
    )(x, w_qkv, w_proj, b_proj2d)

    # dropout on attention weights / output is identity in eval mode
    return out


# ------------------------------ reference --------------------------------------
def reference(x, wq, wk, wv, w_proj, b_proj):
    """Pure-JAX reference mirroring the PyTorch forward (eval mode)."""
    B, T, C = x.shape
    H, _, hs = wq.shape
    outs = []
    for h in range(H):
        q = x @ wq[h]
        k = x @ wk[h]
        v = x @ wv[h]
        s = (q @ jnp.swapaxes(k, 1, 2)) * (hs ** -0.5)
        mask = jnp.tril(jnp.ones((T, T), bool))
        s = jnp.where(mask, s, -jnp.inf)
        p = jax.nn.softmax(s, axis=-1)
        outs.append(p @ v)
    out_sa = jnp.concatenate(outs, axis=-1)
    return out_sa @ w_proj + b_proj


if __name__ == "__main__":
    B, T = 2, 128   # T <= block_size (128), matches module's mask buffer
    C = NUM_EMBD

    key = jax.random.PRNGKey(0)
    k_x, k_q, k_k, k_v, k_p, k_b = jax.random.split(key, 6)

    x = jax.random.normal(k_x, (B, T, C), dtype=jnp.float32)

    # deterministic parameter init (synthetic; not loaded from a checkpoint)
    scale_in = 1.0 / (C ** 0.5)
    wq = jax.random.normal(k_q, (NUM_HEADS, C, HEAD_SIZE), jnp.float32) * scale_in
    wk = jax.random.normal(k_k, (NUM_HEADS, C, HEAD_SIZE), jnp.float32) * scale_in
    wv = jax.random.normal(k_v, (NUM_HEADS, C, HEAD_SIZE), jnp.float32) * scale_in
    w_proj = jax.random.normal(k_p, (C, C), jnp.float32) * scale_in
    b_proj = jax.random.normal(k_b, (C,), jnp.float32) * 0.01

    out = multi_head_attention(x, wq, wk, wv, w_proj, b_proj)
    out = jax.block_until_ready(out)

    ref = reference(x, wq, wk, wv, w_proj, b_proj)
    assert out.shape == (B, T, C), out.shape
    # tolerance covers the approximate (EUP) reciprocal in the softmax denom
    assert jnp.allclose(out, ref, atol=1e-2, rtol=1e-2), float(
        jnp.max(jnp.abs(out - ref)))

    print("KERNEL_OK")
</pallas_src>

<mosaic_0001>
module attributes {stable_mosaic.version = 11 : i64} {
  func.func @_mha_fused_kernel(%arg0: i32, %arg1: memref<1x128x192xf32, #tpu.memory_space<vmem>>, %arg2: memref<192x576xf32, #tpu.memory_space<vmem>>, %arg3: memref<192x192xf32, #tpu.memory_space<vmem>>, %arg4: memref<1x192xf32, #tpu.memory_space<vmem>>, %arg5: memref<1x128x192xf32, #tpu.memory_space<vmem>>) attributes {dimension_semantics = [#tpu.dimension_semantics<parallel>], iteration_bounds = array<i64: 2>, scalar_prefetch = 0 : i64, scratch_operands = 0 : i64, tpu.core_type = #tpu.core_type<tc>, window_params = [{transform_indices = @transform_0, window_bounds = array<i64: 1, 128, 192>}, {pipeline_mode = #tpu.pipeline_mode<synchronous>, transform_indices = @transform_1, window_bounds = array<i64: 192, 576>}, {pipeline_mode = #tpu.pipeline_mode<synchronous>, transform_indices = @transform_2, window_bounds = array<i64: 192, 192>}, {pipeline_mode = #tpu.pipeline_mode<synchronous>, transform_indices = @transform_3, window_bounds = array<i64: 1, 192>}, {transform_indices = @transform_4, window_bounds = array<i64: 1, 128, 192>}]} {
    %c0 = arith.constant 0 : index
    %c0_0 = arith.constant 0 : index
    %c0_1 = arith.constant 0 : index
    %0 = vector.load %arg1[%c0, %c0_0, %c0_1] : memref<1x128x192xf32, #tpu.memory_space<vmem>>, vector<1x128x192xf32>
    %1 = vector.shape_cast %0 : vector<1x128x192xf32> to vector<128x192xf32>
    %c0_2 = arith.constant 0 : index
    %c0_3 = arith.constant 0 : index
    %2 = vector.load %arg2[%c0_2, %c0_3] : memref<192x576xf32, #tpu.memory_space<vmem>>, vector<192x576xf32>
    %cst = arith.constant dense<0.000000e+00> : vector<128x576xf32>
    %3 = tpu.matmul %1, %2, %cst {dimension_numbers = #tpu.dot_dimension_numbers<[1], [0], [0], [1], [0, 0, 1, 1], [], []>} : vector<128x192xf32>, vector<192x576xf32>, vector<128x576xf32> -> vector<128x576xf32>
    %4 = tpu.iota {dimensions = array<i32: 0>} : vector<128x128xi32>
    %5 = tpu.iota {dimensions = array<i32: 1>} : vector<128x128xi32>
    %6 = arith.cmpi sle, %5, %4 : vector<128x128xi32>
    %7 = vector.extract_strided_slice %3 {offsets = [0, 0], sizes = [128, 32], strides = [1, 1]} : vector<128x576xf32> to vector<128x32xf32>
    %8 = vector.extract_strided_slice %3 {offsets = [0, 192], sizes = [128, 32], strides = [1, 1]} : vector<128x576xf32> to vector<128x32xf32>
    %9 = vector.extract_strided_slice %3 {offsets = [0, 384], sizes = [128, 32], strides = [1, 1]} : vector<128x576xf32> to vector<128x32xf32>
    %cst_4 = arith.constant dense<0.000000e+00> : vector<128x128xf32>
    %10 = tpu.matmul %7, %8, %cst_4 {dimension_numbers = #tpu.dot_dimension_numbers<[1], [1], [0], [0], [0, 0, 1, 0], [], []>} : vector<128x32xf32>, vector<128x32xf32>, vector<128x128xf32> -> vector<128x128xf32>
    %cst_5 = arith.constant 0.176776692 : f32
    %11 = vector.broadcast %cst_5 : f32 to vector<128x128xf32>
    %12 = arith.mulf %10, %11 : vector<128x128xf32>
    %cst_6 = arith.constant 0xFF800000 : f32
    %13 = vector.broadcast %cst_6 : f32 to vector<128x128xf32>
    %14 = arith.select %6, %12, %13 : vector<128x128xi1>, vector<128x128xf32>
    %cst_7 = arith.constant dense<0xFF800000> : vector<128xf32>
    %15 = vector.multi_reduction <maximumf>, %14, %cst_7 [1] : vector<128x128xf32> to vector<128xf32>
    %16 = vector.shape_cast %15 : vector<128xf32> to vector<128x1xf32>
    %17 = vector.broadcast %16 : vector<128x1xf32> to vector<128x128xf32>
    %18 = arith.subf %14, %17 : vector<128x128xf32>
    %19 = math.exp %18 : vector<128x128xf32>
    %cst_8 = arith.constant dense<0.000000e+00> : vector<128xf32>
    %20 = vector.multi_reduction <add>, %19, %cst_8 [1] : vector<128x128xf32> to vector<128xf32>
    %21 = vector.shape_cast %20 : vector<128xf32> to vector<128x1xf32>
    %22 = tpu.reciprocal %21 {approx = true} : vector<128x1xf32> -> vector<128x1xf32>
    %23 = vector.broadcast %22 : vector<128x1xf32> to vector<128x128xf32>
    %24 = arith.mulf %19, %23 : vector<128x128xf32>
    %cst_9 = arith.constant dense<0.000000e+00> : vector<128x32xf32>
    %25 = tpu.matmul %24, %9, %cst_9 {dimension_numbers = #tpu.dot_dimension_numbers<[1], [0], [0], [1], [0, 0, 1, 1], [], []>} : vector<128x128xf32>, vector<128x32xf32>, vector<128x32xf32> -> vector<128x32xf32>
    %26 = vector.extract_strided_slice %3 {offsets = [0, 32], sizes = [128, 32], strides = [1, 1]} : vector<128x576xf32> to vector<128x32xf32>
    %27 = vector.extract_strided_slice %3 {offsets = [0, 224], sizes = [128, 32], strides = [1, 1]} : vector<128x576xf32> to vector<128x32xf32>
    %28 = vector.extract_strided_slice %3 {offsets = [0, 416], sizes = [128, 32], strides = [1, 1]} : vector<128x576xf32> to vector<128x32xf32>
    %cst_10 = arith.constant dense<0.000000e+00> : vector<128x128xf32>
    %29 = tpu.matmul %26, %27, %cst_10 {dimension_numbers = #tpu.dot_dimension_numbers<[1], [1], [0], [0], [0, 0, 1, 0], [], []>} : vector<128x32xf32>, vector<128x32xf32>, vector<128x128xf32> -> vector<128x128xf32>
    %cst_11 = arith.constant 0.176776692 : f32
    %30 = vector.broadcast %cst_11 : f32 to vector<128x128xf32>
    %31 = arith.mulf %29, %30 : vector<128x128xf32>
    %cst_12 = arith.constant 0xFF800000 : f32
    %32 = vector.broadcast %cst_12 : f32 to vector<128x128xf32>
    %33 = arith.select %6, %31, %32 : vector<128x128xi1>, vector<128x128xf32>
    %cst_13 = arith.constant dense<0xFF800000> : vector<128xf32>
    %34 = vector.multi_reduction <maximumf>, %33, %cst_13 [1] : vector<128x128xf32> to vector<128xf32>
    %35 = vector.shape_cast %34 : vector<128xf32> to vector<128x1xf32>
    %36 = vector.broadcast %35 : vector<128x1xf32> to vector<128x128xf32>
    %37 = arith.subf %33, %36 : vector<128x128xf32>
    %38 = math.exp %37 : vector<128x128xf32>
    %cst_14 = arith.constant dense<0.000000e+00> : vector<128xf32>
    %39 = vector.multi_reduction <add>, %38, %cst_14 [1] : vector<128x128xf32> to vector<128xf32>
    %40 = vector.shape_cast %39 : vector<128xf32> to vector<128x1xf32>
    %41 = tpu.reciprocal %40 {approx = true} : vector<128x1xf32> -> vector<128x1xf32>
    %42 = vector.broadcast %41 : vector<128x1xf32> to vector<128x128xf32>
    %43 = arith.mulf %38, %42 : vector<128x128xf32>
    %cst_15 = arith.constant dense<0.000000e+00> : vector<128x32xf32>
    %44 = tpu.matmul %43, %28, %cst_15 {dimension_numbers = #tpu.dot_dimension_numbers<[1], [0], [0], [1], [0, 0, 1, 1], [], []>} : vector<128x128xf32>, vector<128x32xf32>, vector<128x32xf32> -> vector<128x32xf32>
    %45 = vector.extract_strided_slice %3 {offsets = [0, 64], sizes = [128, 32], strides = [1, 1]} : vector<128x576xf32> to vector<128x32xf32>
    %46 = vector.extract_strided_slice %3 {offsets = [0, 256], sizes = [128, 32], strides = [1, 1]} : vector<128x576xf32> to vector<128x32xf32>
    %47 = vector.extract_strided_slice %3 {offsets = [0, 448], sizes = [128, 32], strides = [1, 1]} : vector<128x576xf32> to vector<128x32xf32>
    %cst_16 = arith.constant dense<0.000000e+00> : vector<128x128xf32>
    %48 = tpu.matmul %45, %46, %cst_16 {dimension_numbers = #tpu.dot_dimension_numbers<[1], [1], [0], [0], [0, 0, 1, 0], [], []>} : vector<128x32xf32>, vector<128x32xf32>, vector<128x128xf32> -> vector<128x128xf32>
    %cst_17 = arith.constant 0.176776692 : f32
    %49 = vector.broadcast %cst_17 : f32 to vector<128x128xf32>
    %50 = arith.mulf %48, %49 : vector<128x128xf32>
    %cst_18 = arith.constant 0xFF800000 : f32
    %51 = vector.broadcast %cst_18 : f32 to vector<128x128xf32>
    %52 = arith.select %6, %50, %51 : vector<128x128xi1>, vector<128x128xf32>
    %cst_19 = arith.constant dense<0xFF800000> : vector<128xf32>
    %53 = vector.multi_reduction <maximumf>, %52, %cst_19 [1] : vector<128x128xf32> to vector<128xf32>
    %54 = vector.shape_cast %53 : vector<128xf32> to vector<128x1xf32>
    %55 = vector.broadcast %54 : vector<128x1xf32> to vector<128x128xf32>
    %56 = arith.subf %52, %55 : vector<128x128xf32>
    %57 = math.exp %56 : vector<128x128xf32>
    %cst_20 = arith.constant dense<0.000000e+00> : vector<128xf32>
    %58 = vector.multi_reduction <add>, %57, %cst_20 [1] : vector<128x128xf32> to vector<128xf32>
    %59 = vector.shape_cast %58 : vector<128xf32> to vector<128x1xf32>
    %60 = tpu.reciprocal %59 {approx = true} : vector<128x1xf32> -> vector<128x1xf32>
    %61 = vector.broadcast %60 : vector<128x1xf32> to vector<128x128xf32>
    %62 = arith.mulf %57, %61 : vector<128x128xf32>
    %cst_21 = arith.constant dense<0.000000e+00> : vector<128x32xf32>
    %63 = tpu.matmul %62, %47, %cst_21 {dimension_numbers = #tpu.dot_dimension_numbers<[1], [0], [0], [1], [0, 0, 1, 1], [], []>} : vector<128x128xf32>, vector<128x32xf32>, vector<128x32xf32> -> vector<128x32xf32>
    %64 = vector.extract_strided_slice %3 {offsets = [0, 96], sizes = [128, 32], strides = [1, 1]} : vector<128x576xf32> to vector<128x32xf32>
    %65 = vector.extract_strided_slice %3 {offsets = [0, 288], sizes = [128, 32], strides = [1, 1]} : vector<128x576xf32> to vector<128x32xf32>
    %66 = vector.extract_strided_slice %3 {offsets = [0, 480], sizes = [128, 32], strides = [1, 1]} : vector<128x576xf32> to vector<128x32xf32>
    %cst_22 = arith.constant dense<0.000000e+00> : vector<128x128xf32>
    %67 = tpu.matmul %64, %65, %cst_22 {dimension_numbers = #tpu.dot_dimension_numbers<[1], [1], [0], [0], [0, 0, 1, 0], [], []>} : vector<128x32xf32>, vector<128x32xf32>, vector<128x128xf32> -> vector<128x128xf32>
    %cst_23 = arith.constant 0.176776692 : f32
    %68 = vector.broadcast %cst_23 : f32 to vector<128x128xf32>
    %69 = arith.mulf %67, %68 : vector<128x128xf32>
    %cst_24 = arith.constant 0xFF800000 : f32
    %70 = vector.broadcast %cst_24 : f32 to vector<128x128xf32>
    %71 = arith.select %6, %69, %70 : vector<128x128xi1>, vector<128x128xf32>
    %cst_25 = arith.constant dense<0xFF800000> : vector<128xf32>
    %72 = vector.multi_reduction <maximumf>, %71, %cst_25 [1] : vector<128x128xf32> to vector<128xf32>
    %73 = vector.shape_cast %72 : vector<128xf32> to vector<128x1xf32>
    %74 = vector.broadcast %73 : vector<128x1xf32> to vector<128x128xf32>
    %75 = arith.subf %71, %74 : vector<128x128xf32>
    %76 = math.exp %75 : vector<128x128xf32>
    %cst_26 = arith.constant dense<0.000000e+00> : vector<128xf32>
    %77 = vector.multi_reduction <add>, %76, %cst_26 [1] : vector<128x128xf32> to vector<128xf32>
    %78 = vector.shape_cast %77 : vector<128xf32> to vector<128x1xf32>
    %79 = tpu.reciprocal %78 {approx = true} : vector<128x1xf32> -> vector<128x1xf32>
    %80 = vector.broadcast %79 : vector<128x1xf32> to vector<128x128xf32>
    %81 = arith.mulf %76, %80 : vector<128x128xf32>
    %cst_27 = arith.constant dense<0.000000e+00> : vector<128x32xf32>
    %82 = tpu.matmul %81, %66, %cst_27 {dimension_numbers = #tpu.dot_dimension_numbers<[1], [0], [0], [1], [0, 0, 1, 1], [], []>} : vector<128x128xf32>, vector<128x32xf32>, vector<128x32xf32> -> vector<128x32xf32>
    %83 = vector.extract_strided_slice %3 {offsets = [0, 128], sizes = [128, 32], strides = [1, 1]} : vector<128x576xf32> to vector<128x32xf32>
    %84 = vector.extract_strided_slice %3 {offsets = [0, 320], sizes = [128, 32], strides = [1, 1]} : vector<128x576xf32> to vector<128x32xf32>
    %85 = vector.extract_strided_slice %3 {offsets = [0, 512], sizes = [128, 32], strides = [1, 1]} : vector<128x576xf32> to vector<128x32xf32>
    %cst_28 = arith.constant dense<0.000000e+00> : vector<128x128xf32>
    %86 = tpu.matmul %83, %84, %cst_28 {dimension_numbers = #tpu.dot_dimension_numbers<[1], [1], [0], [0], [0, 0, 1, 0], [], []>} : vector<128x32xf32>, vector<128x32xf32>, vector<128x128xf32> -> vector<128x128xf32>
    %cst_29 = arith.constant 0.176776692 : f32
    %87 = vector.broadcast %cst_29 : f32 to vector<128x128xf32>
    %88 = arith.mulf %86, %87 : vector<128x128xf32>
    %cst_30 = arith.constant 0xFF800000 : f32
    %89 = vector.broadcast %cst_30 : f32 to vector<128x128xf32>
    %90 = arith.select %6, %88, %89 : vector<128x128xi1>, vector<128x128xf32>
    %cst_31 = arith.constant dense<0xFF800000> : vector<128xf32>
    %91 = vector.multi_reduction <maximumf>, %90, %cst_31 [1] : vector<128x128xf32> to vector<128xf32>
    %92 = vector.shape_cast %91 : vector<128xf32> to vector<128x1xf32>
    %93 = vector.broadcast %92 : vector<128x1xf32> to vector<128x128xf32>
    %94 = arith.subf %90, %93 : vector<128x128xf32>
    %95 = math.exp %94 : vector<128x128xf32>
    %cst_32 = arith.constant dense<0.000000e+00> : vector<128xf32>
    %96 = vector.multi_reduction <add>, %95, %cst_32 [1] : vector<128x128xf32> to vector<128xf32>
    %97 = vector.shape_cast %96 : vector<128xf32> to vector<128x1xf32>
    %98 = tpu.reciprocal %97 {approx = true} : vector<128x1xf32> -> vector<128x1xf32>
    %99 = vector.broadcast %98 : vector<128x1xf32> to vector<128x128xf32>
    %100 = arith.mulf %95, %99 : vector<128x128xf32>
    %cst_33 = arith.constant dense<0.000000e+00> : vector<128x32xf32>
    %101 = tpu.matmul %100, %85, %cst_33 {dimension_numbers = #tpu.dot_dimension_numbers<[1], [0], [0], [1], [0, 0, 1, 1], [], []>} : vector<128x128xf32>, vector<128x32xf32>, vector<128x32xf32> -> vector<128x32xf32>
    %102 = vector.extract_strided_slice %3 {offsets = [0, 160], sizes = [128, 32], strides = [1, 1]} : vector<128x576xf32> to vector<128x32xf32>
    %103 = vector.extract_strided_slice %3 {offsets = [0, 352], sizes = [128, 32], strides = [1, 1]} : vector<128x576xf32> to vector<128x32xf32>
    %104 = vector.extract_strided_slice %3 {offsets = [0, 544], sizes = [128, 32], strides = [1, 1]} : vector<128x576xf32> to vector<128x32xf32>
    %cst_34 = arith.constant dense<0.000000e+00> : vector<128x128xf32>
    %105 = tpu.matmul %102, %103, %cst_34 {dimension_numbers = #tpu.dot_dimension_numbers<[1], [1], [0], [0], [0, 0, 1, 0], [], []>} : vector<128x32xf32>, vector<128x32xf32>, vector<128x128xf32> -> vector<128x128xf32>
    %cst_35 = arith.constant 0.176776692 : f32
    %106 = vector.broadcast %cst_35 : f32 to vector<128x128xf32>
    %107 = arith.mulf %105, %106 : vector<128x128xf32>
    %cst_36 = arith.constant 0xFF800000 : f32
    %108 = vector.broadcast %cst_36 : f32 to vector<128x128xf32>
    %109 = arith.select %6, %107, %108 : vector<128x128xi1>, vector<128x128xf32>
    %cst_37 = arith.constant dense<0xFF800000> : vector<128xf32>
    %110 = vector.multi_reduction <maximumf>, %109, %cst_37 [1] : vector<128x128xf32> to vector<128xf32>
    %111 = vector.shape_cast %110 : vector<128xf32> to vector<128x1xf32>
    %112 = vector.broadcast %111 : vector<128x1xf32> to vector<128x128xf32>
    %113 = arith.subf %109, %112 : vector<128x128xf32>
    %114 = math.exp %113 : vector<128x128xf32>
    %cst_38 = arith.constant dense<0.000000e+00> : vector<128xf32>
    %115 = vector.multi_reduction <add>, %114, %cst_38 [1] : vector<128x128xf32> to vector<128xf32>
    %116 = vector.shape_cast %115 : vector<128xf32> to vector<128x1xf32>
    %117 = tpu.reciprocal %116 {approx = true} : vector<128x1xf32> -> vector<128x1xf32>
    %118 = vector.broadcast %117 : vector<128x1xf32> to vector<128x128xf32>
    %119 = arith.mulf %114, %118 : vector<128x128xf32>
    %cst_39 = arith.constant dense<0.000000e+00> : vector<128x32xf32>
    %120 = tpu.matmul %119, %104, %cst_39 {dimension_numbers = #tpu.dot_dimension_numbers<[1], [0], [0], [1], [0, 0, 1, 1], [], []>} : vector<128x128xf32>, vector<128x32xf32>, vector<128x32xf32> -> vector<128x32xf32>
    %121 = tpu.concatenate %25, %44, %63, %82, %101, %120 in 1 : vector<128x32xf32>, vector<128x32xf32>, vector<128x32xf32>, vector<128x32xf32>, vector<128x32xf32>, vector<128x32xf32> -> vector<128x192xf32>
    %c0_40 = arith.constant 0 : index
    %c0_41 = arith.constant 0 : index
    %122 = vector.load %arg3[%c0_40, %c0_41] : memref<192x192xf32, #tpu.memory_space<vmem>>, vector<192x192xf32>
    %cst_42 = arith.constant dense<0.000000e+00> : vector<128x192xf32>
    %123 = tpu.matmul %121, %122, %cst_42 {dimension_numbers = #tpu.dot_dimension_numbers<[1], [0], [0], [1], [0, 0, 1, 1], [], []>} : vector<128x192xf32>, vector<192x192xf32>, vector<128x192xf32> -> vector<128x192xf32>
    %c0_43 = arith.constant 0 : index
    %c0_44 = arith.constant 0 : index
    %124 = vector.load %arg4[%c0_43, %c0_44] : memref<1x192xf32, #tpu.memory_space<vmem>>, vector<1x192xf32>
    %125 = vector.broadcast %124 : vector<1x192xf32> to vector<128x192xf32>
    %126 = arith.addf %123, %125 : vector<128x192xf32>
    %c0_45 = arith.constant 0 : index
    %c0_46 = arith.constant 0 : index
    %c0_47 = arith.constant 0 : index
    %127 = vector.load %arg5[%c0_45, %c0_46, %c0_47] : memref<1x128x192xf32, #tpu.memory_space<vmem>>, vector<1x128x192xf32>
    %128 = vector.shape_cast %127 : vector<1x128x192xf32> to vector<128x192xf32>
    %129 = vector.shape_cast %126 : vector<128x192xf32> to vector<1x128x192xf32>
    tpu.vector_store %arg5[%c0_45, %c0_46, %c0_47], %129 {strides = array<i32>} : memref<1x128x192xf32, #tpu.memory_space<vmem>>, vector<1x128x192xf32>,
    return
  }
  func.func @transform_0(%arg0: i32) -> (i32, i32, i32) {
    %c0_i32 = arith.constant 0 : i32
    %c0_i32_0 = arith.constant 0 : i32
    %c0_i32_1 = arith.constant 0 : i32
    return %arg0, %c0_i32, %c0_i32_0 : i32, i32, i32
  }
  func.func @transform_1(%arg0: i32) -> (i32, i32) {
    %c0_i32 = arith.constant 0 : i32
    %c0_i32_0 = arith.constant 0 : i32
    %c0_i32_1 = arith.constant 0 : i32
    return %c0_i32, %c0_i32_0 : i32, i32
  }
  func.func @transform_2(%arg0: i32) -> (i32, i32) {
    %c0_i32 = arith.constant 0 : i32
    %c0_i32_0 = arith.constant 0 : i32
    %c0_i32_1 = arith.constant 0 : i32
    return %c0_i32, %c0_i32_0 : i32, i32
  }
  func.func @transform_3(%arg0: i32) -> (i32, i32) {
    %c0_i32 = arith.constant 0 : i32
    %c0_i32_0 = arith.constant 0 : i32
    %c0_i32_1 = arith.constant 0 : i32
    return %c0_i32, %c0_i32_0 : i32, i32
  }
  func.func @transform_4(%arg0: i32) -> (i32, i32, i32) {
    %c0_i32 = arith.constant 0 : i32
    %c0_i32_0 = arith.constant 0 : i32
    %c0_i32_1 = arith.constant 0 : i32
    return %arg0, %c0_i32, %c0_i32_0 : i32, i32, i32
  }
}

</mosaic_0001>

<llo_original>
// kernel: tpu_custom_call.1
$region0: #{tpu_custom_call.1}
  #allocation0 [shape = 'u32[]', space=smem, size = 0x4, offset = 0x4, fixed_abs, tag = 'smem constant byte address 0x4 - core index']
  #allocation1 [shape = 'u32[144,128]{1,0:T(1,128)}', space=vmem, size = 0x12000, scoped, tag = 'internal scratch']
  %s0 = inlined_call_operand.vmem [shape: f32[2,128,192], index: 0, kind: input, shape index: {}]
  %s1 = inlined_call_operand.hbm [shape: f32[192,576], index: 1, kind: input, shape index: {}]
  %s2 = inlined_call_operand.vmem [shape: f32[192,192], index: 2, kind: input, shape index: {}]
  %s3 = inlined_call_operand.vmem [shape: f32[1,192], index: 3, kind: input, shape index: {}]
  %s4 = inlined_call_operand.vmem [shape: f32[2,128,192], index: 4, kind: output, shape index: {}]
  %s5 = sld [smem:[#allocation0]]
  $region53: #{tpu_custom_call.1} parent=0
    _
  %s7 = ssub.s32 1, %s5
  %s8 = scalar_select 0, %s7, %s5
  $region1: #{tpu_custom_call.1} parent=0
    #allocation2 [shape = 'u8[491520]{0}', space=vmem, size = 0x78000, scoped, tag = 'input window, operand 1, single buffered']
    #allocation3 [shape = 's32[2]{0}', space=sflag, size = 0x8, scoped, tag = 'scoped memory for tpu_custom_call.1']
    %9 = vsyncpa [#allocation3], 0
    loop: start=0, step=1, limit=4
    $region2: #{tpu_custom_call.1} parent=1 // loop_pre_header
      _
    $region3: #{tpu_custom_call.1} parent=1 // loop_header
      %s11 = sphi 0, %s15
      %p12 = scmp.ge.s32.totalorder %s11, 4
      %s21 = sphi 0, %s23
      %s24 = sphi 0, %s21
      %s25 = sphi 0, %s24
      %s41 = sphi 0, %s25
      %s45 = sphi 0, %s45
      %s47 = sphi 0, %s45
      %s48 = sphi 0, %s47
      %s62 = sphi 0, %s48
      %s66 = sphi 0, %s66
      %s68 = sphi 0, %s66
      %s69 = sphi 0, %s68
      %s83 = sphi 0, %s69
      %s87 = sphi 0, %s87
      %s89 = sphi 0, %s87
      %s90 = sphi 0, %s89
      %s104 = sphi 0, %s90
      %s110 = sphi 0, %s112
      %s113 = sphi 0, %s110
      %s114 = sphi 0, %s113
      %s130 = sphi 0, %s114
    $region4: #{tpu_custom_call.1} parent=1 // loop_header_branch
      %14 = sbr.rel (%p12) target = $region8
    $region5: #{tpu_custom_call.1} parent=1 // loop_body
      %s16 = ssub.s32 %s11, 1
      %s17 = ssub.s32 %s11, 2
      %s18 = sadd.s32 %s11, 1
      %s19 = ssub.s32 %s11, %s18
      %p20 = scmp.eq.s32.totalorder %s19, 0
      %s22 = sadd.s32 %s21, 1
      %s23 = scalar_select %p20, %s21, %s22
      %p26 = pneg %p20
      %p27 = scmp.eq.s32.totalorder %s11, 1
      %p28 = por %p26, %p27
      %p29 = scmp.ne.s32.totalorder %s21, %s24
      %p30 = scmp.eq.s32.totalorder %s11, 0
      %p31 = por %p29, %p30
      %p32 = scmp.ne.s32.totalorder %s21, %s24
      %p33 = scmp.eq.s32.totalorder %s16, 1
      %p34 = por %p32, %p33
      %p35 = scmp.ne.s32.totalorder %s24, %s25
      %p36 = scmp.eq.s32.totalorder %s16, 0
      %p37 = por %p35, %p36
      %p38 = scmp.ne.s32.totalorder %s24, %s25
      %p39 = scmp.eq.s32.totalorder %s17, 1
      %p40 = por %p38, %p39
      %p42 = scmp.ne.s32.totalorder %s25, %s41
      %p43 = scmp.eq.s32.totalorder %s17, 0
      %p44 = por %p42, %p43
      %s46 = sadd.s32 %s45, 1
      %p49 = scmp.eq.s32.totalorder %s11, 1
      %p50 = scmp.ne.s32.totalorder %s45, %s47
      %p51 = scmp.eq.s32.totalorder %s11, 0
      %p52 = por %p50, %p51
      %p53 = scmp.ne.s32.totalorder %s45, %s47
      %p54 = scmp.eq.s32.totalorder %s16, 1
      %p55 = por %p53, %p54
      %p56 = scmp.ne.s32.totalorder %s47, %s48
      %p57 = scmp.eq.s32.totalorder %s16, 0
      %p58 = por %p56, %p57
      %p59 = scmp.ne.s32.totalorder %s47, %s48
      %p60 = scmp.eq.s32.totalorder %s17, 1
      %p61 = por %p59, %p60
      %p63 = scmp.ne.s32.totalorder %s48, %s62
      %p64 = scmp.eq.s32.totalorder %s17, 0
      %p65 = por %p63, %p64
      %s67 = sadd.s32 %s66, 1
      %p70 = scmp.eq.s32.totalorder %s11, 1
      %p71 = scmp.ne.s32.totalorder %s66, %s68
      %p72 = scmp.eq.s32.totalorder %s11, 0
      %p73 = por %p71, %p72
      %p74 = scmp.ne.s32.totalorder %s66, %s68
      %p75 = scmp.eq.s32.totalorder %s16, 1
      %p76 = por %p74, %p75
      %p77 = scmp.ne.s32.totalorder %s68, %s69
      %p78 = scmp.eq.s32.totalorder %s16, 0
      %p79 = por %p77, %p78
      %p80 = scmp.ne.s32.totalorder %s68, %s69
      %p81 = scmp.eq.s32.totalorder %s17, 1
      %p82 = por %p80, %p81
      %p84 = scmp.ne.s32.totalorder %s69, %s83
      %p85 = scmp.eq.s32.totalorder %s17, 0
      %p86 = por %p84, %p85
      %s88 = sadd.s32 %s87, 1
      %p91 = scmp.eq.s32.totalorder %s11, 1
      %p92 = scmp.ne.s32.totalorder %s87, %s89
      %p93 = scmp.eq.s32.totalorder %s11, 0
      %p94 = por %p92, %p93
      %p95 = scmp.ne.s32.totalorder %s87, %s89
      %p96 = scmp.eq.s32.totalorder %s16, 1
      %p97 = por %p95, %p96
      %p98 = scmp.ne.s32.totalorder %s89, %s90
      %p99 = scmp.eq.s32.totalorder %s16, 0
      %p100 = por %p98, %p99
      %p101 = scmp.ne.s32.totalorder %s89, %s90
      %p102 = scmp.eq.s32.totalorder %s17, 1
      %p103 = por %p101, %p102
      %p105 = scmp.ne.s32.totalorder %s90, %s104
      %p106 = scmp.eq.s32.totalorder %s17, 0
      %p107 = por %p105, %p106
      %s108 = ssub.s32 %s11, %s18
      %p109 = scmp.eq.s32.totalorder %s108, 0
      %s111 = sadd.s32 %s110, 1
      %s112 = scalar_select %p109, %s110, %s111
      %p115 = pneg %p109
      %p116 = scmp.eq.s32.totalorder %s11, 1
      %p117 = por %p115, %p116
      %p118 = scmp.ne.s32.totalorder %s110, %s113
      %p119 = scmp.eq.s32.totalorder %s11, 0
      %p120 = por %p118, %p119
      %p121 = scmp.ne.s32.totalorder %s110, %s113
      %p122 = scmp.eq.s32.totalorder %s16, 1
      %p123 = por %p121, %p122
      %p124 = scmp.ne.s32.totalorder %s113, %s114
      %p125 = scmp.eq.s32.totalorder %s16, 0
      %p126 = por %p124, %p125
      %p127 = scmp.ne.s32.totalorder %s113, %s114
      %p128 = scmp.eq.s32.totalorder %s17, 1
      %p129 = por %p127, %p128
      %p131 = scmp.ne.s32.totalorder %s114, %s130
      %p132 = scmp.eq.s32.totalorder %s17, 0
      %p133 = por %p131, %p132
      %p134 = scmp.le.s32.totalorder 1, %s11
      %p135 = scmp.lt.s32.totalorder %s11, 3
      %p136 = pnand %p134, %p135
      %p137 = pneg %p136
      // Predicated region
      $region9: #{tpu_custom_call.1} parent=5 // pred_check
        _
      $region10: #{tpu_custom_call.1} parent=5 // pred_check_branch
        %139 = sbr.rel (%p136) target = $region12
      $region11: #{tpu_custom_call.1} parent=5 // pred_region
        %s140 = ssub.s32 %s11, 1
        // Predicated region
        $region13: #{tpu_custom_call.1} parent=11 // pred_check
          %p141 = pneg %p58
        $region14: #{tpu_custom_call.1} parent=11 // pred_check_branch
          %143 = sbr.rel (%p141) target = $region16
        $region15: #{tpu_custom_call.1} parent=11 // pred_region
          %s145 = ssub.s32 15360, 15360
          %146 = vsyncadd [#allocation3], %s145
          %s147 = sshll.u32 [#allocation2], 4
          %s148 = int_to_ptr.vmem [resolvable:$true] %s147
          %153 = dma.hbm_to_vmem [thread:$0]  %s1, 15360, %s148, [#allocation3], 640, 640, 40
        $region16: #{tpu_custom_call.1} parent=11 // pred_fallthru
          _
        // Predicated region
        $region17: #{tpu_custom_call.1} parent=11 // pred_check
          %p154 = pneg %p79
        $region18: #{tpu_custom_call.1} parent=11 // pred_check_branch
          %156 = sbr.rel (%p154) target = $region20
        $region19: #{tpu_custom_call.1} parent=11 // pred_region
          _
        $region20: #{tpu_custom_call.1} parent=11 // pred_fallthru
          _
        // Predicated region
        $region21: #{tpu_custom_call.1} parent=11 // pred_check
          %p157 = pneg %p100
        $region22: #{tpu_custom_call.1} parent=11 // pred_check_branch
          %159 = sbr.rel (%p157) target = $region24
        $region23: #{tpu_custom_call.1} parent=11 // pred_region
          _
        $region24: #{tpu_custom_call.1} parent=11 // pred_fallthru
          _
      $region12: #{tpu_custom_call.1} parent=5 // pred_fallthru
        _
      %p160 = scmp.lt.s32.totalorder %s11, 2
      // Predicated region
      $region25: #{tpu_custom_call.1} parent=5 // pred_check
        %p161 = pneg %p160
      $region26: #{tpu_custom_call.1} parent=5 // pred_check_branch
        %163 = sbr.rel (%p161) target = $region28
      $region27: #{tpu_custom_call.1} parent=5 // pred_region
        // Predicated region
        $region29: #{tpu_custom_call.1} parent=27 // pred_check
          %p164 = pneg %p31
        $region30: #{tpu_custom_call.1} parent=27 // pred_check_branch
          %166 = sbr.rel (%p164) target = $region32
        $region31: #{tpu_custom_call.1} parent=27 // pred_region
          %p167 = scmp.lt.s32.totalorder %s11, 1
          %s168 = scalar_select %p167, %s11, 1
          %s169 = smul.addr %s168, 32
          %s170 = smul.addr %s169, 8
          %s171 = scalar_lea.vmem %s0, %s170
        $region32: #{tpu_custom_call.1} parent=27 // pred_fallthru
          _
      $region28: #{tpu_custom_call.1} parent=5 // pred_fallthru
        _
      %p172 = scmp.le.s32.totalorder 1, %s11
      %p173 = scmp.lt.s32.totalorder %s11, 3
      %p174 = pnand %p172, %p173
      %p175 = pneg %p174
      // Predicated region
      $region33: #{tpu_custom_call.1} parent=5 // pred_check
        _
      $region34: #{tpu_custom_call.1} parent=5 // pred_check_branch
        %177 = sbr.rel (%p174) target = $region36
      $region35: #{tpu_custom_call.1} parent=5 // pred_region
        %s178 = ssub.s32 %s11, 1
        // Predicated region
        $region37: #{tpu_custom_call.1} parent=35 // pred_check
          %p179 = pneg %p58
        $region38: #{tpu_custom_call.1} parent=35 // pred_check_branch
          %181 = sbr.rel (%p179) target = $region40
        $region39: #{tpu_custom_call.1} parent=35 // pred_region
          %182 = dma.done [#allocation3], 15360
        $region40: #{tpu_custom_call.1} parent=35 // pred_fallthru
          _
        %p183 = scmp.lt.s32.totalorder %s16, 1
        %s184 = scalar_select %p183, %s16, 1
        %s185 = smul.addr %s184, 32
        %s186 = smul.addr %s185, 8
        %s187 = scalar_lea.vmem %s0, %s186
        %p188 = pneg %p37
        %p189 = pneg %p34
        %p190 = pneg %p58
        %p191 = pneg %p55
        %p192 = pneg %p79
        %p193 = pneg %p76
        %p194 = pneg %p100
        %p195 = pneg %p97
        %p196 = pneg %p126
        %p197 = pneg %p123
        %p198 = scmp.lt.s32.totalorder %s16, 1
        %s199 = scalar_select %p198, %s16, 1
        %s200 = smul.addr %s199, 32
        %s201 = smul.addr %s200, 8
        %s202 = scalar_lea.vmem %s4, %s201
        %p203 = scmp.lt.s32.totalorder %s16, 1
        %s204 = scalar_select %p203, %s16, 1
        %s205 = smul.addr %s204, 32
        %s206 = smul.addr %s205, 8
        %s207 = scalar_lea.vmem %s0, %s206
        %p208 = scmp.lt.s32.totalorder %s16, 1
        %s209 = scalar_select %p208, %s16, 1
        %s210 = smul.addr %s209, 32
        %s211 = smul.addr %s210, 8
        %s212 = scalar_lea.vmem %s4, %s211
        %v213 = vld [vmem:[%s207] sm:$0xff]
        %v214 = vld [vmem:[%s207 + $0x8] sm:$0xff]
        %v215 = vld [vmem:[%s207 + $0x10] sm:$0xff]
        %v216 = vld [vmem:[%s207 + $0x18] sm:$0xff]
        %v217 = vld [vmem:[%s207 + $0x20] sm:$0xff]
        %v218 = vld [vmem:[%s207 + $0x28] sm:$0xff]
        %v219 = vld [vmem:[%s207 + $0x30] sm:$0xff]
        %v220 = vld [vmem:[%s207 + $0x38] sm:$0xff]
        %v221 = vld [vmem:[%s207 + $0x40] sm:$0xff]
        %v222 = vld [vmem:[%s207 + $0x48] sm:$0xff]
        %v223 = vld [vmem:[%s207 + $0x50] sm:$0xff]
        %v224 = vld [vmem:[%s207 + $0x58] sm:$0xff]
        %v225 = vld [vmem:[%s207 + $0x60] sm:$0xff]
        %v226 = vld [vmem:[%s207 + $0x68] sm:$0xff]
        %v227 = vld [vmem:[%s207 + $0x70] sm:$0xff]
        %v228 = vld [vmem:[%s207 + $0x78] sm:$0xff]
        %v229 = vld [vmem:[%s207 + $0x80] sm:$0xff]
        %v230 = vld [vmem:[%s207 + $0x88] sm:$0xff]
        %v231 = vld [vmem:[%s207 + $0x90] sm:$0xff]
        %v232 = vld [vmem:[%s207 + $0x98] sm:$0xff]
        %v233 = vld [vmem:[%s207 + $0xa0] sm:$0xff]
        %v234 = vld [vmem:[%s207 + $0xa8] sm:$0xff]
        %v235 = vld [vmem:[%s207 + $0xb0] sm:$0xff]
        %v236 = vld [vmem:[%s207 + $0xb8] sm:$0xff]
        %v237 = vld [vmem:[%s207 + $0xc0] sm:$0xff]
        %v238 = vld [vmem:[%s207 + $0xc8] sm:$0xff]
        %v239 = vld [vmem:[%s207 + $0xd0] sm:$0xff]
        %v240 = vld [vmem:[%s207 + $0xd8] sm:$0xff]
        %v241 = vld [vmem:[%s207 + $0xe0] sm:$0xff]
        %v242 = vld [vmem:[%s207 + $0xe8] sm:$0xff]
        %v243 = vld [vmem:[%s207 + $0xf0] sm:$0xff]
        %v244 = vld [vmem:[%s207 + $0xf8] sm:$0xff]
        %v245 = vld [vmem:[#allocation2] sm:$0xff]
        %v246 = vld [vmem:[#allocation2 + $0x8] sm:$0xff]
        %v247 = vld [vmem:[#allocation2 + $0x10] sm:$0xff]
        %v248 = vld [vmem:[#allocation2 + $0x18] sm:$0xff]
        %v249 = vld [vmem:[#allocation2 + $0x20] sm:$0xff]
        %v250 = vld [vmem:[#allocation2 + $0x28] sm:$0xff]
        %v251 = vld [vmem:[#allocation2 + $0x30] sm:$0xff]
        %v252 = vld [vmem:[#allocation2 + $0x38] sm:$0xff]
        %v253 = vld [vmem:[#allocation2 + $0x40] sm:$0xff]
        %v254 = vld [vmem:[#allocation2 + $0x48] sm:$0xff]
        %v255 = vld [vmem:[#allocation2 + $0x50] sm:$0xff]
        %v256 = vld [vmem:[#allocation2 + $0x58] sm:$0xff]
        %v257 = vld [vmem:[#allocation2 + $0x60] sm:$0xff]
        %v258 = vld [vmem:[#allocation2 + $0x68] sm:$0xff]
        %v259 = vld [vmem:[#allocation2 + $0x70] sm:$0xff]
        %v260 = vld [vmem:[#allocation2 + $0x78] sm:$0xff]
        %v261 = vld [vmem:[#allocation2 + $0x80] sm:$0xff]
        %v262 = vld [vmem:[#allocation2 + $0x88] sm:$0xff]
        %v263 = vld [vmem:[#allocation2 + $0x90] sm:$0xff]
        %v264 = vld [vmem:[#allocation2 + $0x98] sm:$0xff]
        %v265 = vld [vmem:[#allocation2 + $0xa0] sm:$0xff]
        %v266 = vld [vmem:[#allocation2 + $0xa8] sm:$0xff]
        %v267 = vld [vmem:[#allocation2 + $0xb0] sm:$0xff]
        %v268 = vld [vmem:[#allocation2 + $0xb8] sm:$0xff]
        %v269 = vld [vmem:[#allocation2 + $0xc0] sm:$0xff]
        %v270 = vld [vmem:[#allocation2 + $0xc8] sm:$0xff]
        %v271 = vld [vmem:[#allocation2 + $0xd0] sm:$0xff]
        %v272 = vld [vmem:[#allocation2 + $0xd8] sm:$0xff]
        %v273 = vld [vmem:[#allocation2 + $0xe0] sm:$0xff]
        %v274 = vld [vmem:[#allocation2 + $0xe8] sm:$0xff]
        %v275 = vld [vmem:[#allocation2 + $0xf0] sm:$0xff]
        %v276 = vld [vmem:[#allocation2 + $0xf8] sm:$0xff]
        %v277 = vld [vmem:[#allocation2 + $0x100] sm:$0xff]
        %v278 = vld [vmem:[#allocation2 + $0x108] sm:$0xff]
        %v279 = vld [vmem:[#allocation2 + $0x110] sm:$0xff]
        %v280 = vld [vmem:[#allocation2 + $0x118] sm:$0xff]
        %v281 = vld [vmem:[#allocation2 + $0x120] sm:$0xff]
        %v282 = vld [vmem:[#allocation2 + $0x128] sm:$0xff]
        %v283 = vld [vmem:[#allocation2 + $0x130] sm:$0xff]
        %v284 = vld [vmem:[#allocation2 + $0x138] sm:$0xff]
        %v285 = vld [vmem:[#allocation2 + $0x140] sm:$0xff]
        %v286 = vld [vmem:[#allocation2 + $0x148] sm:$0xff]
        %v287 = vld [vmem:[#allocation2 + $0x150] sm:$0xff]
        %v288 = vld [vmem:[#allocation2 + $0x158] sm:$0xff]
        %v289 = vld [vmem:[#allocation2 + $0x160] sm:$0xff]
        %v290 = vld [vmem:[#allocation2 + $0x168] sm:$0xff]
        %v291 = vld [vmem:[#allocation2 + $0x170] sm:$0xff]
        %v292 = vld [vmem:[#allocation2 + $0x178] sm:$0xff]
        %v293 = vld [vmem:[#allocation2 + $0x180] sm:$0xff]
        %v294 = vld [vmem:[#allocation2 + $0x188] sm:$0xff]
        %v295 = vld [vmem:[#allocation2 + $0x190] sm:$0xff]
        %v296 = vld [vmem:[#allocation2 + $0x198] sm:$0xff]
        %v297 = vld [vmem:[#allocation2 + $0x1a0] sm:$0xff]
        %v298 = vld [vmem:[#allocation2 + $0x1a8] sm:$0xff]
        %v299 = vld [vmem:[#allocation2 + $0x1b0] sm:$0xff]
        %v300 = vld [vmem:[#allocation2 + $0x1b8] sm:$0xff]
        %v301 = vld [vmem:[#allocation2 + $0x1c0] sm:$0xff]
        %v302 = vld [vmem:[#allocation2 + $0x1c8] sm:$0xff]
        %v303 = vld [vmem:[#allocation2 + $0x1d0] sm:$0xff]
        %v304 = vld [vmem:[#allocation2 + $0x1d8] sm:$0xff]
        %v305 = vld [vmem:[#allocation2 + $0x1e0] sm:$0xff]
        %v306 = vld [vmem:[#allocation2 + $0x1e8] sm:$0xff]
        %v307 = vld [vmem:[#allocation2 + $0x1f0] sm:$0xff]
        %v308 = vld [vmem:[#allocation2 + $0x1f8] sm:$0xff]
        %v309 = vld [vmem:[#allocation2 + $0x200] sm:$0xff]
        %v310 = vld [vmem:[#allocation2 + $0x208] sm:$0xff]
        %v311 = vld [vmem:[#allocation2 + $0x210] sm:$0xff]
        %v312 = vld [vmem:[#allocation2 + $0x218] sm:$0xff]
        %v313 = vld [vmem:[#allocation2 + $0x220] sm:$0xff]
        %v314 = vld [vmem:[#allocation2 + $0x228] sm:$0xff]
        %v315 = vld [vmem:[#allocation2 + $0x230] sm:$0xff]
        %v316 = vld [vmem:[#allocation2 + $0x238] sm:$0xff]
        %v317 = vld [vmem:[#allocation2 + $0x240] sm:$0xff]
        %v318 = vld [vmem:[#allocation2 + $0x248] sm:$0xff]
        %v319 = vld [vmem:[#allocation2 + $0x250] sm:$0xff]
        %v320 = vld [vmem:[#allocation2 + $0x258] sm:$0xff]
        %v321 = vld [vmem:[#allocation2 + $0x260] sm:$0xff]
        %v322 = vld [vmem:[#allocation2 + $0x268] sm:$0xff]
        %v323 = vld [vmem:[#allocation2 + $0x270] sm:$0xff]
        %v324 = vld [vmem:[#allocation2 + $0x278] sm:$0xff]
        %v325 = vld [vmem:[#allocation2 + $0x280] sm:$0xff]
        %v326 = vld [vmem:[#allocation2 + $0x288] sm:$0xff]
        %v327 = vld [vmem:[#allocation2 + $0x290] sm:$0xff]
        %v328 = vld [vmem:[#allocation2 + $0x298] sm:$0xff]
        %v329 = vld [vmem:[#allocation2 + $0x2a0] sm:$0xff]
        %v330 = vld [vmem:[#allocation2 + $0x2a8] sm:$0xff]
        %v331 = vld [vmem:[#allocation2 + $0x2b0] sm:$0xff]
        %v332 = vld [vmem:[#allocation2 + $0x2b8] sm:$0xff]
        %v333 = vld [vmem:[#allocation2 + $0x2c0] sm:$0xff]
        %v334 = vld [vmem:[#allocation2 + $0x2c8] sm:$0xff]
        %v335 = vld [vmem:[#allocation2 + $0x2d0] sm:$0xff]
        %v336 = vld [vmem:[#allocation2 + $0x2d8] sm:$0xff]
        %v337 = vld [vmem:[#allocation2 + $0x2e0] sm:$0xff]
        %v338 = vld [vmem:[#allocation2 + $0x2e8] sm:$0xff]
        %v339 = vld [vmem:[#allocation2 + $0x2f0] sm:$0xff]
        %v340 = vld [vmem:[#allocation2 + $0x2f8] sm:$0xff]
        %v341 = vld [vmem:[#allocation2 + $0x300] sm:$0xff]
        %v342 = vld [vmem:[#allocation2 + $0x308] sm:$0xff]
        %v343 = vld [vmem:[#allocation2 + $0x310] sm:$0xff]
        %v344 = vld [vmem:[#allocation2 + $0x318] sm:$0xff]
        %v345 = vld [vmem:[#allocation2 + $0x320] sm:$0xff]
        %v346 = vld [vmem:[#allocation2 + $0x328] sm:$0xff]
        %v347 = vld [vmem:[#allocation2 + $0x330] sm:$0xff]
        %v348 = vld [vmem:[#allocation2 + $0x338] sm:$0xff]
        %v349 = vld [vmem:[#allocation2 + $0x340] sm:$0xff]
        %v350 = vld [vmem:[#allocation2 + $0x348] sm:$0xff]
        %v351 = vld [vmem:[#allocation2 + $0x350] sm:$0xff]
        %v352 = vld [vmem:[#allocation2 + $0x358] sm:$0xff]
        %v353 = vld [vmem:[#allocation2 + $0x360] sm:$0xff]
        %v354 = vld [vmem:[#allocation2 + $0x368] sm:$0xff]
        %v355 = vld [vmem:[#allocation2 + $0x370] sm:$0xff]
        %v356 = vld [vmem:[#allocation2 + $0x378] sm:$0xff]
        %v357 = vld [vmem:[#allocation2 + $0x380] sm:$0xff]
        %v358 = vld [vmem:[#allocation2 + $0x388] sm:$0xff]
        %v359 = vld [vmem:[#allocation2 + $0x390] sm:$0xff]
        %v360 = vld [vmem:[#allocation2 + $0x398] sm:$0xff]
        %v361 = vld [vmem:[#allocation2 + $0x3a0] sm:$0xff]
        %v362 = vld [vmem:[#allocation2 + $0x3a8] sm:$0xff]
        %v363 = vld [vmem:[#allocation2 + $0x3b0] sm:$0xff]
        %v364 = vld [vmem:[#allocation2 + $0x3b8] sm:$0xff]
        %vm365 = vcmask 523264
        %v367 = vsel %vm365, %v214, 0
        %v370 = vsel %vm365, %v216, 0
        %v373 = vsel %vm365, %v218, 0
        %v376 = vsel %vm365, %v220, 0
        %v379 = vsel %vm365, %v222, 0
        %v382 = vsel %vm365, %v224, 0
        %v385 = vsel %vm365, %v226, 0
        %v388 = vsel %vm365, %v228, 0
        %v391 = vsel %vm365, %v230, 0
        %v394 = vsel %vm365, %v232, 0
        %v397 = vsel %vm365, %v234, 0
        %v400 = vsel %vm365, %v236, 0
        %v403 = vsel %vm365, %v238, 0
        %v406 = vsel %vm365, %v240, 0
        %v409 = vsel %vm365, %v242, 0
        %v412 = vsel %vm365, %v244, 0
        %414 = vmatprep.subr.mxu0 %v321
        %415 = vmatpush1.msra.mxu0 %v320
        %416 = vmatprep.subr.mxu0 %v316
        %417 = vmatpush1.msra.mxu0 %v315
        %418 = vmatprep.subr.mxu0 %v311
        %419 = vmatpush1.msra.mxu0 %v310
        %420 = vmatprep.subr.mxu0 %v306
        %421 = vmatpush1.msra.mxu0 %v305
        %422 = vmatprep.subr.mxu0 %v301
        %423 = vmatpush1.msra.mxu0 %v300
        %424 = vmatprep.subr.mxu0 %v296
        %425 = vmatpush1.msra.mxu0 %v295
        %426 = vmatprep.subr.mxu0 %v291
        %427 = vmatpush1.msra.mxu0 %v290
        %428 = vmatprep.subr.mxu0 %v286
        %429 = vmatpush1.msra.mxu0 %v285
        %430 = vmatprep.subr.mxu0 %v281
        %431 = vmatpush1.msra.mxu0 %v280
        %432 = vmatprep.subr.mxu0 %v276
        %433 = vmatpush1.msra.mxu0 %v275
        %434 = vmatprep.subr.mxu0 %v271
        %435 = vmatpush1.msra.mxu0 %v270
        %436 = vmatprep.subr.mxu0 %v266
        %437 = vmatpush1.msra.mxu0 %v265
        %438 = vmatprep.subr.mxu0 %v261
        %439 = vmatpush1.msra.mxu0 %v260
        %440 = vmatprep.subr.mxu0 %v256
        %441 = vmatpush1.msra.mxu0 %v255
        %442 = vmatprep.subr.mxu0 %v251
        %443 = vmatpush1.msra.mxu0 %v250
        %444 = vmatprep.subr.mxu0 %v246
        %445 = vmatpush1.msra.mxu0 %v245
        %446 = vmatprep.subr.mxu0 0.0
        %447 = vmatpush2.msra.mxu0 0.0
        %448 = vmatprep.subr.mxu0 0.0
        %449 = vmatpush2.msra.mxu0 0.0
        %450 = vmatprep.subr.mxu0 0.0
        %451 = vmatpush2.msra.mxu0 0.0
        %452 = vmatprep.subr.mxu0 0.0
        %453 = vmatpush2.msra.mxu0 0.0
        %454 = vmatprep.subr.mxu0 0.0
        %455 = vmatpush2.msra.mxu0 0.0
        %456 = vmatprep.subr.mxu0 0.0
        %457 = vmatpush2.msra.mxu0 0.0
        %458 = vmatprep.subr.mxu0 0.0
        %459 = vmatpush2.msra.mxu0 0.0
        %460 = vmatprep.subr.mxu0 0.0
        %461 = vmatpush2.msra.mxu0 0.0
        %462 = vmatprep.subr.mxu0 %v361
        %463 = vmatpush2.msra.mxu0 %v360
        %464 = vmatprep.subr.mxu0 %v356
        %465 = vmatpush2.msra.mxu0 %v355
        %466 = vmatprep.subr.mxu0 %v351
        %467 = vmatpush2.msra.mxu0 %v350
        %468 = vmatprep.subr.mxu0 %v346
        %469 = vmatpush2.msra.mxu0 %v345
        %470 = vmatprep.subr.mxu0 %v341
        %471 = vmatpush2.msra.mxu0 %v340
        %472 = vmatprep.subr.mxu0 %v336
        %473 = vmatpush2.msra.mxu0 %v335
        %474 = vmatprep.subr.mxu0 %v331
        %475 = vmatpush2.msra.mxu0 %v330
        %476 = vmatprep.subr.mxu0 %v326
        %477 = vmatpush2.msra.mxu0 %v325
        %478 = vmatprep.mubr.f32.mxu0 %v367
        %479 = vmatmul.mubr.f32.gmra.mxu0 %v213
        %v480 = vpop.f32.mrf.mxu0
        %v481 = vadd.f32 0.0, %v480
        %v482 = vpop.f32.mrf.mxu0
        %v483 = vadd.f32 0.0, %v482
        %484 = vmatprep.mubr.f32.mxu0 %v370
        %485 = vmatmul.mubr.f32.gmra.mxu0 %v215
        %v486 = vpop.f32.mrf.mxu0
        %v487 = vadd.f32 0.0, %v486
        %v488 = vpop.f32.mrf.mxu0
        %v489 = vadd.f32 0.0, %v488
        %490 = vmatprep.mubr.f32.mxu0 %v373
        %491 = vmatmul.mubr.f32.gmra.mxu0 %v217
        %v492 = vpop.f32.mrf.mxu0
        %v493 = vadd.f32 0.0, %v492
        %v494 = vpop.f32.mrf.mxu0
        %v495 = vadd.f32 0.0, %v494
        %496 = vmatprep.mubr.f32.mxu0 %v376
        %497 = vmatmul.mubr.f32.gmra.mxu0 %v219
        %v498 = vpop.f32.mrf.mxu0
        %v499 = vadd.f32 0.0, %v498
        %v500 = vpop.f32.mrf.mxu0
        %v501 = vadd.f32 0.0, %v500
        %502 = vmatprep.mubr.f32.mxu0 %v379
        %503 = vmatmul.mubr.f32.gmra.mxu0 %v221
        %v504 = vpop.f32.mrf.mxu0
        %v505 = vadd.f32 0.0, %v504
        %v506 = vpop.f32.mrf.mxu0
        %v507 = vadd.f32 0.0, %v506
        %508 = vmatprep.mubr.f32.mxu0 %v382
        %509 = vmatmul.mubr.f32.gmra.mxu0 %v223
        %v510 = vpop.f32.mrf.mxu0
        %v511 = vadd.f32 0.0, %v510
        %v512 = vpop.f32.mrf.mxu0
        %v513 = vadd.f32 0.0, %v512
        %514 = vmatprep.mubr.f32.mxu0 %v385
        %515 = vmatmul.mubr.f32.gmra.mxu0 %v225
        %v516 = vpop.f32.mrf.mxu0
        %v517 = vadd.f32 0.0, %v516
        %v518 = vpop.f32.mrf.mxu0
        %v519 = vadd.f32 0.0, %v518
        %520 = vmatprep.mubr.f32.mxu0 %v388
        %521 = vmatmul.mubr.f32.gmra.mxu0 %v227
        %v522 = vpop.f32.mrf.mxu0
        %v523 = vadd.f32 0.0, %v522
        %v524 = vpop.f32.mrf.mxu0
        %v525 = vadd.f32 0.0, %v524
        %526 = vmatprep.mubr.f32.mxu0 %v391
        %527 = vmatmul.mubr.f32.gmra.mxu0 %v229
        %v528 = vpop.f32.mrf.mxu0
        %v529 = vadd.f32 0.0, %v528
        %v530 = vpop.f32.mrf.mxu0
        %v531 = vadd.f32 0.0, %v530
        %532 = vmatprep.mubr.f32.mxu0 %v394
        %533 = vmatmul.mubr.f32.gmra.mxu0 %v231
        %v534 = vpop.f32.mrf.mxu0
        %v535 = vadd.f32 0.0, %v534
        %v536 = vpop.f32.mrf.mxu0
        %v537 = vadd.f32 0.0, %v536
        %538 = vmatprep.mubr.f32.mxu0 %v397
        %539 = vmatmul.mubr.f32.gmra.mxu0 %v233
        %v540 = vpop.f32.mrf.mxu0
        %v541 = vadd.f32 0.0, %v540
        %v542 = vpop.f32.mrf.mxu0
        %v543 = vadd.f32 0.0, %v542
        %544 = vmatprep.mubr.f32.mxu0 %v400
        %545 = vmatmul.mubr.f32.gmra.mxu0 %v235
        %v546 = vpop.f32.mrf.mxu0
        %v547 = vadd.f32 0.0, %v546
        %v548 = vpop.f32.mrf.mxu0
        %v549 = vadd.f32 0.0, %v548
        %550 = vmatprep.mubr.f32.mxu0 %v403
        %551 = vmatmul.mubr.f32.gmra.mxu0 %v237
        %v552 = vpop.f32.mrf.mxu0
        %v553 = vadd.f32 0.0, %v552
        %v554 = vpop.f32.mrf.mxu0
        %v555 = vadd.f32 0.0, %v554
        %556 = vmatprep.mubr.f32.mxu0 %v406
        %557 = vmatmul.mubr.f32.gmra.mxu0 %v239
        %v558 = vpop.f32.mrf.mxu0
        %v559 = vadd.f32 0.0, %v558
        %v560 = vpop.f32.mrf.mxu0
        %v561 = vadd.f32 0.0, %v560
        %562 = vmatprep.mubr.f32.mxu0 %v409
        %563 = vmatmul.mubr.f32.gmra.mxu0 %v241
        %v564 = vpop.f32.mrf.mxu0
        %v565 = vadd.f32 0.0, %v564
        %v566 = vpop.f32.mrf.mxu0
        %v567 = vadd.f32 0.0, %v566
        %568 = vmatprep.mubr.f32.mxu0 %v412
        %569 = vmatmul.mubr.f32.gmra.mxu0 %v243
        %v570 = vpop.f32.mrf.mxu0
        %v571 = vadd.f32 0.0, %v570
        %v572 = vpop.f32.mrf.mxu0
        %v573 = vadd.f32 0.0, %v572
        %574 = vdwg.mxu0
        %575 = vmatprep.subr.mxu0 %v323
        %576 = vmatpush1.msra.mxu0 %v322
        %577 = vmatprep.subr.mxu0 %v318
        %578 = vmatpush1.msra.mxu0 %v317
        %579 = vmatprep.subr.mxu0 %v313
        %580 = vmatpush1.msra.mxu0 %v312
        %581 = vmatprep.subr.mxu0 %v308
        %582 = vmatpush1.msra.mxu0 %v307
        %583 = vmatprep.subr.mxu0 %v303
        %584 = vmatpush1.msra.mxu0 %v302
        %585 = vmatprep.subr.mxu0 %v298
        %586 = vmatpush1.msra.mxu0 %v297
        %587 = vmatprep.subr.mxu0 %v293
        %588 = vmatpush1.msra.mxu0 %v292
        %589 = vmatprep.subr.mxu0 %v288
        %590 = vmatpush1.msra.mxu0 %v287
        %591 = vmatprep.subr.mxu0 %v283
        %592 = vmatpush1.msra.mxu0 %v282
        %593 = vmatprep.subr.mxu0 %v278
        %594 = vmatpush1.msra.mxu0 %v277
        %595 = vmatprep.subr.mxu0 %v273
        %596 = vmatpush1.msra.mxu0 %v272
        %597 = vmatprep.subr.mxu0 %v268
        %598 = vmatpush1.msra.mxu0 %v267
        %599 = vmatprep.subr.mxu0 %v263
        %600 = vmatpush1.msra.mxu0 %v262
        %601 = vmatprep.subr.mxu0 %v258
        %602 = vmatpush1.msra.mxu0 %v257
        %603 = vmatprep.subr.mxu0 %v253
        %604 = vmatpush1.msra.mxu0 %v252
        %605 = vmatprep.subr.mxu0 %v248
        %606 = vmatpush1.msra.mxu0 %v247
        %607 = vmatprep.subr.mxu0 0.0
        %608 = vmatpush2.msra.mxu0 0.0
        %609 = vmatprep.subr.mxu0 0.0
        %610 = vmatpush2.msra.mxu0 0.0
        %611 = vmatprep.subr.mxu0 0.0
        %612 = vmatpush2.msra.mxu0 0.0
        %613 = vmatprep.subr.mxu0 0.0
        %614 = vmatpush2.msra.mxu0 0.0
        %615 = vmatprep.subr.mxu0 0.0
        %616 = vmatpush2.msra.mxu0 0.0
        %617 = vmatprep.subr.mxu0 0.0
        %618 = vmatpush2.msra.mxu0 0.0
        %619 = vmatprep.subr.mxu0 0.0
        %620 = vmatpush2.msra.mxu0 0.0
        %621 = vmatprep.subr.mxu0 0.0
        %622 = vmatpush2.msra.mxu0 0.0
        %623 = vmatprep.subr.mxu0 %v363
        %624 = vmatpush2.msra.mxu0 %v362
        %625 = vmatprep.subr.mxu0 %v358
        %626 = vmatpush2.msra.mxu0 %v357
        %627 = vmatprep.subr.mxu0 %v353
        %628 = vmatpush2.msra.mxu0 %v352
        %629 = vmatprep.subr.mxu0 %v348
        %630 = vmatpush2.msra.mxu0 %v347
        %631 = vmatprep.subr.mxu0 %v343
        %632 = vmatpush2.msra.mxu0 %v342
        %633 = vmatprep.subr.mxu0 %v338
        %634 = vmatpush2.msra.mxu0 %v337
        %635 = vmatprep.subr.mxu0 %v333
        %636 = vmatpush2.msra.mxu0 %v332
        %637 = vmatprep.subr.mxu0 %v328
        %638 = vmatpush2.msra.mxu0 %v327
        %639 = vmatprep.mubr.f32.mxu0 %v367
        %640 = vmatmul.mubr.f32.gmra.mxu0 %v213
        %v641 = vpop.f32.mrf.mxu0
        %v642 = vadd.f32 0.0, %v641
        %v643 = vpop.f32.mrf.mxu0
        %v644 = vadd.f32 0.0, %v643
        %645 = vmatprep.mubr.f32.mxu0 %v370
        %646 = vmatmul.mubr.f32.gmra.mxu0 %v215
        %v647 = vpop.f32.mrf.mxu0
        %v648 = vadd.f32 0.0, %v647
        %v649 = vpop.f32.mrf.mxu0
        %v650 = vadd.f32 0.0, %v649
        %651 = vmatprep.mubr.f32.mxu0 %v373
        %652 = vmatmul.mubr.f32.gmra.mxu0 %v217
        %v653 = vpop.f32.mrf.mxu0
        %v654 = vadd.f32 0.0, %v653
        %v655 = vpop.f32.mrf.mxu0
        %v656 = vadd.f32 0.0, %v655
        %657 = vmatprep.mubr.f32.mxu0 %v376
        %658 = vmatmul.mubr.f32.gmra.mxu0 %v219
        %v659 = vpop.f32.mrf.mxu0
        %v660 = vadd.f32 0.0, %v659
        %v661 = vpop.f32.mrf.mxu0
        %v662 = vadd.f32 0.0, %v661
        %663 = vmatprep.mubr.f32.mxu0 %v379
        %664 = vmatmul.mubr.f32.gmra.mxu0 %v221
        %v665 = vpop.f32.mrf.mxu0
        %v666 = vadd.f32 0.0, %v665
        %v667 = vpop.f32.mrf.mxu0
        %v668 = vadd.f32 0.0, %v667
        %669 = vmatprep.mubr.f32.mxu0 %v382
        %670 = vmatmul.mubr.f32.gmra.mxu0 %v223
        %v671 = vpop.f32.mrf.mxu0
        %v672 = vadd.f32 0.0, %v671
        %v673 = vpop.f32.mrf.mxu0
        %v674 = vadd.f32 0.0, %v673
        %675 = vmatprep.mubr.f32.mxu0 %v385
        %676 = vmatmul.mubr.f32.gmra.mxu0 %v225
        %v677 = vpop.f32.mrf.mxu0
        %v678 = vadd.f32 0.0, %v677
        %v679 = vpop.f32.mrf.mxu0
        %v680 = vadd.f32 0.0, %v679
        %681 = vmatprep.mubr.f32.mxu0 %v388
        %682 = vmatmul.mubr.f32.gmra.mxu0 %v227
        %v683 = vpop.f32.mrf.mxu0
        %v684 = vadd.f32 0.0, %v683
        %v685 = vpop.f32.mrf.mxu0
        %v686 = vadd.f32 0.0, %v685
        %687 = vmatprep.mubr.f32.mxu0 %v391
        %688 = vmatmul.mubr.f32.gmra.mxu0 %v229
        %v689 = vpop.f32.mrf.mxu0
        %v690 = vadd.f32 0.0, %v689
        %v691 = vpop.f32.mrf.mxu0
        %v692 = vadd.f32 0.0, %v691
        %693 = vmatprep.mubr.f32.mxu0 %v394
        %694 = vmatmul.mubr.f32.gmra.mxu0 %v231
        %v695 = vpop.f32.mrf.mxu0
        %v696 = vadd.f32 0.0, %v695
        %v697 = vpop.f32.mrf.mxu0
        %v698 = vadd.f32 0.0, %v697
        %699 = vmatprep.mubr.f32.mxu0 %v397
        %700 = vmatmul.mubr.f32.gmra.mxu0 %v233
        %v701 = vpop.f32.mrf.mxu0
        %v702 = vadd.f32 0.0, %v701
        %v703 = vpop.f32.mrf.mxu0
        %v704 = vadd.f32 0.0, %v703
        %705 = vmatprep.mubr.f32.mxu0 %v400
        %706 = vmatmul.mubr.f32.gmra.mxu0 %v235
        %v707 = vpop.f32.mrf.mxu0
        %v708 = vadd.f32 0.0, %v707
        %v709 = vpop.f32.mrf.mxu0
        %v710 = vadd.f32 0.0, %v709
        %711 = vmatprep.mubr.f32.mxu0 %v403
        %712 = vmatmul.mubr.f32.gmra.mxu0 %v237
        %v713 = vpop.f32.mrf.mxu0
        %v714 = vadd.f32 0.0, %v713
        %v715 = vpop.f32.mrf.mxu0
        %v716 = vadd.f32 0.0, %v715
        %717 = vmatprep.mubr.f32.mxu0 %v406
        %718 = vmatmul.mubr.f32.gmra.mxu0 %v239
        %v719 = vpop.f32.mrf.mxu0
        %v720 = vadd.f32 0.0, %v719
        %v721 = vpop.f32.mrf.mxu0
        %v722 = vadd.f32 0.0, %v721
        %723 = vmatprep.mubr.f32.mxu0 %v409
        %724 = vmatmul.mubr.f32.gmra.mxu0 %v241
        %v725 = vpop.f32.mrf.mxu0
        %v726 = vadd.f32 0.0, %v725
        %v727 = vpop.f32.mrf.mxu0
        %v728 = vadd.f32 0.0, %v727
        %729 = vmatprep.mubr.f32.mxu0 %v412
        %730 = vmatmul.mubr.f32.gmra.mxu0 %v243
        %v731 = vpop.f32.mrf.mxu0
        %v732 = vadd.f32 0.0, %v731
        %v733 = vpop.f32.mrf.mxu0
        %v734 = vadd.f32 0.0, %v733
        %735 = vdwg.mxu0
        %736 = vmatprep.subr.mxu0 0.0
        %737 = vmatpush1.msra.mxu0 %v324
        %738 = vmatprep.subr.mxu0 0.0
        %739 = vmatpush1.msra.mxu0 %v319
        %740 = vmatprep.subr.mxu0 0.0
        %741 = vmatpush1.msra.mxu0 %v314
        %742 = vmatprep.subr.mxu0 0.0
        %743 = vmatpush1.msra.mxu0 %v309
        %744 = vmatprep.subr.mxu0 0.0
        %745 = vmatpush1.msra.mxu0 %v304
        %746 = vmatprep.subr.mxu0 0.0
        %747 = vmatpush1.msra.mxu0 %v299
        %748 = vmatprep.subr.mxu0 0.0
        %749 = vmatpush1.msra.mxu0 %v294
        %750 = vmatprep.subr.mxu0 0.0
        %751 = vmatpush1.msra.mxu0 %v289
        %752 = vmatprep.subr.mxu0 0.0
        %753 = vmatpush1.msra.mxu0 %v284
        %754 = vmatprep.subr.mxu0 0.0
        %755 = vmatpush1.msra.mxu0 %v279
        %756 = vmatprep.subr.mxu0 0.0
        %757 = vmatpush1.msra.mxu0 %v274
        %758 = vmatprep.subr.mxu0 0.0
        %759 = vmatpush1.msra.mxu0 %v269
        %760 = vmatprep.subr.mxu0 0.0
        %761 = vmatpush1.msra.mxu0 %v264
        %762 = vmatprep.subr.mxu0 0.0
        %763 = vmatpush1.msra.mxu0 %v259
        %764 = vmatprep.subr.mxu0 0.0
        %765 = vmatpush1.msra.mxu0 %v254
        %766 = vmatprep.subr.mxu0 0.0
        %767 = vmatpush1.msra.mxu0 %v249
        %768 = vmatprep.subr.mxu0 0.0
        %769 = vmatpush2.msra.mxu0 0.0
        %770 = vmatprep.subr.mxu0 0.0
        %771 = vmatpush2.msra.mxu0 0.0
        %772 = vmatprep.subr.mxu0 0.0
        %773 = vmatpush2.msra.mxu0 0.0
        %774 = vmatprep.subr.mxu0 0.0
        %775 = vmatpush2.msra.mxu0 0.0
        %776 = vmatprep.subr.mxu0 0.0
        %777 = vmatpush2.msra.mxu0 0.0
        %778 = vmatprep.subr.mxu0 0.0
        %779 = vmatpush2.msra.mxu0 0.0
        %780 = vmatprep.subr.mxu0 0.0
        %781 = vmatpush2.msra.mxu0 0.0
        %782 = vmatprep.subr.mxu0 0.0
        %783 = vmatpush2.msra.mxu0 0.0
        %784 = vmatprep.subr.mxu0 0.0
        %785 = vmatpush2.msra.mxu0 %v364
        %786 = vmatprep.subr.mxu0 0.0
        %787 = vmatpush2.msra.mxu0 %v359
        %788 = vmatprep.subr.mxu0 0.0
        %789 = vmatpush2.msra.mxu0 %v354
        %790 = vmatprep.subr.mxu0 0.0
        %791 = vmatpush2.msra.mxu0 %v349
        %792 = vmatprep.subr.mxu0 0.0
        %793 = vmatpush2.msra.mxu0 %v344
        %794 = vmatprep.subr.mxu0 0.0
        %795 = vmatpush2.msra.mxu0 %v339
        %796 = vmatprep.subr.mxu0 0.0
        %797 = vmatpush2.msra.mxu0 %v334
        %798 = vmatprep.subr.mxu0 0.0
        %799 = vmatpush2.msra.mxu0 %v329
        %800 = vmatprep.mubr.f32.mxu0 %v367
        %801 = vmatmul.mubr.f32.gmra.mxu0 %v213
        %v802 = vpop.f32.mrf.mxu0
        %v803 = vadd.f32 0.0, %v802
        %v804 = vpop.f32.mrf.mxu0
        %805 = vmatprep.mubr.f32.mxu0 %v370
        %806 = vmatmul.mubr.f32.gmra.mxu0 %v215
        %v807 = vpop.f32.mrf.mxu0
        %v808 = vadd.f32 0.0, %v807
        %v809 = vpop.f32.mrf.mxu0
        %810 = vmatprep.mubr.f32.mxu0 %v373
        %811 = vmatmul.mubr.f32.gmra.mxu0 %v217
        %v812 = vpop.f32.mrf.mxu0
        %v813 = vadd.f32 0.0, %v812
        %v814 = vpop.f32.mrf.mxu0
        %815 = vmatprep.mubr.f32.mxu0 %v376
        %816 = vmatmul.mubr.f32.gmra.mxu0 %v219
        %v817 = vpop.f32.mrf.mxu0
        %v818 = vadd.f32 0.0, %v817
        %v819 = vpop.f32.mrf.mxu0
        %820 = vmatprep.mubr.f32.mxu0 %v379
        %821 = vmatmul.mubr.f32.gmra.mxu0 %v221
        %v822 = vpop.f32.mrf.mxu0
        %v823 = vadd.f32 0.0, %v822
        %v824 = vpop.f32.mrf.mxu0
        %825 = vmatprep.mubr.f32.mxu0 %v382
        %826 = vmatmul.mubr.f32.gmra.mxu0 %v223
        %v827 = vpop.f32.mrf.mxu0
        %v828 = vadd.f32 0.0, %v827
        %v829 = vpop.f32.mrf.mxu0
        %830 = vmatprep.mubr.f32.mxu0 %v385
        %831 = vmatmul.mubr.f32.gmra.mxu0 %v225
        %v832 = vpop.f32.mrf.mxu0
        %v833 = vadd.f32 0.0, %v832
        %v834 = vpop.f32.mrf.mxu0
        %835 = vmatprep.mubr.f32.mxu0 %v388
        %836 = vmatmul.mubr.f32.gmra.mxu0 %v227
        %v837 = vpop.f32.mrf.mxu0
        %v838 = vadd.f32 0.0, %v837
        %v839 = vpop.f32.mrf.mxu0
        %840 = vmatprep.mubr.f32.mxu0 %v391
        %841 = vmatmul.mubr.f32.gmra.mxu0 %v229
        %v842 = vpop.f32.mrf.mxu0
        %v843 = vadd.f32 0.0, %v842
        %v844 = vpop.f32.mrf.mxu0
        %845 = vmatprep.mubr.f32.mxu0 %v394
        %846 = vmatmul.mubr.f32.gmra.mxu0 %v231
        %v847 = vpop.f32.mrf.mxu0
        %v848 = vadd.f32 0.0, %v847
        %v849 = vpop.f32.mrf.mxu0
        %850 = vmatprep.mubr.f32.mxu0 %v397
        %851 = vmatmul.mubr.f32.gmra.mxu0 %v233
        %v852 = vpop.f32.mrf.mxu0
        %v853 = vadd.f32 0.0, %v852
        %v854 = vpop.f32.mrf.mxu0
        %855 = vmatprep.mubr.f32.mxu0 %v400
        %856 = vmatmul.mubr.f32.gmra.mxu0 %v235
        %v857 = vpop.f32.mrf.mxu0
        %v858 = vadd.f32 0.0, %v857
        %v859 = vpop.f32.mrf.mxu0
        %860 = vmatprep.mubr.f32.mxu0 %v403
        %861 = vmatmul.mubr.f32.gmra.mxu0 %v237
        %v862 = vpop.f32.mrf.mxu0
        %v863 = vadd.f32 0.0, %v862
        %v864 = vpop.f32.mrf.mxu0
        %865 = vmatprep.mubr.f32.mxu0 %v406
        %866 = vmatmul.mubr.f32.gmra.mxu0 %v239
        %v867 = vpop.f32.mrf.mxu0
        %v868 = vadd.f32 0.0, %v867
        %v869 = vpop.f32.mrf.mxu0
        %870 = vmatprep.mubr.f32.mxu0 %v409
        %871 = vmatmul.mubr.f32.gmra.mxu0 %v241
        %v872 = vpop.f32.mrf.mxu0
        %v873 = vadd.f32 0.0, %v872
        %v874 = vpop.f32.mrf.mxu0
        %875 = vmatprep.mubr.f32.mxu0 %v412
        %876 = vmatmul.mubr.f32.gmra.mxu0 %v243
        %v877 = vpop.f32.mrf.mxu0
        %v878 = vadd.f32 0.0, %v877
        %v879 = vpop.f32.mrf.mxu0
        %880 = vdwg.mxu0
        %v881 = vlaneseq
        %v882 = vshrl.u32 %v881, 7
        %v883 = vadd.s32 %v882, 8
        %v884 = vadd.s32 %v882, 16
        %v885 = vadd.s32 %v882, 24
        %v886 = vadd.s32 %v882, 32
        %v887 = vadd.s32 %v882, 40
        %v888 = vadd.s32 %v882, 48
        %v889 = vadd.s32 %v882, 56
        %v890 = vadd.s32 %v882, 64
        %v891 = vadd.s32 %v882, 72
        %v892 = vadd.s32 %v882, 80
        %v893 = vadd.s32 %v882, 88
        %v894 = vadd.s32 %v882, 96
        %v895 = vadd.s32 %v882, 104
        %v896 = vadd.s32 %v882, 112
        %v897 = vadd.s32 %v882, 120
        %v898 = vlaneseq
        %v899 = vand.u32 %v898, 127
        %vm900 = vcmp.le.s32.totalorder %v899, %v882
        %vm901 = vcmp.le.s32.totalorder %v899, %v883
        %vm902 = vcmp.le.s32.totalorder %v899, %v884
        %vm903 = vcmp.le.s32.totalorder %v899, %v885
        %vm904 = vcmp.le.s32.totalorder %v899, %v886
        %vm905 = vcmp.le.s32.totalorder %v899, %v887
        %vm906 = vcmp.le.s32.totalorder %v899, %v888
        %vm907 = vcmp.le.s32.totalorder %v899, %v889
        %vm908 = vcmp.le.s32.totalorder %v899, %v890
        %vm909 = vcmp.le.s32.totalorder %v899, %v891
        %vm910 = vcmp.le.s32.totalorder %v899, %v892
        %vm911 = vcmp.le.s32.totalorder %v899, %v893
        %vm912 = vcmp.le.s32.totalorder %v899, %v894
        %vm913 = vcmp.le.s32.totalorder %v899, %v895
        %vm914 = vcmp.le.s32.totalorder %v899, %v896
        %vm915 = vcmp.le.s32.totalorder %v899, %v897
        %932 = vrot.lane.b32.xlu0 %v483, 64
        %v933 = vpop.permute.xlu0 %932
        %934 = vrot.lane.b32.xlu0 %v489, 64
        %v935 = vpop.permute.xlu0 %934
        %936 = vrot.lane.b32.xlu0 %v495, 64
        %v937 = vpop.permute.xlu0 %936
        %938 = vrot.lane.b32.xlu0 %v501, 64
        %v939 = vpop.permute.xlu0 %938
        %940 = vrot.lane.b32.xlu0 %v507, 64
        %v941 = vpop.permute.xlu0 %940
        %942 = vrot.lane.b32.xlu0 %v513, 64
        %v943 = vpop.permute.xlu0 %942
        %944 = vrot.lane.b32.xlu0 %v519, 64
        %v945 = vpop.permute.xlu0 %944
        %946 = vrot.lane.b32.xlu0 %v525, 64
        %v947 = vpop.permute.xlu0 %946
        %948 = vrot.lane.b32.xlu0 %v531, 64
        %v949 = vpop.permute.xlu0 %948
        %950 = vrot.lane.b32.xlu0 %v537, 64
        %v951 = vpop.permute.xlu0 %950
        %952 = vrot.lane.b32.xlu0 %v543, 64
        %v953 = vpop.permute.xlu0 %952
        %954 = vrot.lane.b32.xlu0 %v549, 64
        %v955 = vpop.permute.xlu0 %954
        %956 = vrot.lane.b32.xlu0 %v555, 64
        %v957 = vpop.permute.xlu0 %956
        %958 = vrot.lane.b32.xlu0 %v561, 64
        %v959 = vpop.permute.xlu0 %958
        %960 = vrot.lane.b32.xlu0 %v567, 64
        %v961 = vpop.permute.xlu0 %960
        %962 = vrot.lane.b32.xlu0 %v573, 64
        %v963 = vpop.permute.xlu0 %962
        %vm964 = vcmask 261120
        %v966 = vsel %vm964, %v481, 0
        %v969 = vsel %vm964, %v487, 0
        %v972 = vsel %vm964, %v493, 0
        %v975 = vsel %vm964, %v499, 0
        %v978 = vsel %vm964, %v505, 0
        %v981 = vsel %vm964, %v511, 0
        %v984 = vsel %vm964, %v517, 0
        %v987 = vsel %vm964, %v523, 0
        %v990 = vsel %vm964, %v529, 0
        %v993 = vsel %vm964, %v535, 0
        %v996 = vsel %vm964, %v541, 0
        %v999 = vsel %vm964, %v547, 0
        %v1002 = vsel %vm964, %v553, 0
        %v1005 = vsel %vm964, %v559, 0
        %v1008 = vsel %vm964, %v565, 0
        %v1011 = vsel %vm964, %v571, 0
        %v1013 = vsel %vm964, %v933, 0
        %v1015 = vsel %vm964, %v935, 0
        %v1017 = vsel %vm964, %v937, 0
        %v1019 = vsel %vm964, %v939, 0
        %v1021 = vsel %vm964, %v941, 0
        %v1023 = vsel %vm964, %v943, 0
        %v1025 = vsel %vm964, %v945, 0
        %v1027 = vsel %vm964, %v947, 0
        %v1029 = vsel %vm964, %v949, 0
        %v1031 = vsel %vm964, %v951, 0
        %v1033 = vsel %vm964, %v953, 0
        %v1035 = vsel %vm964, %v955, 0
        %v1037 = vsel %vm964, %v957, 0
        %v1039 = vsel %vm964, %v959, 0
        %v1041 = vsel %vm964, %v961, 0
        %v1043 = vsel %vm964, %v963, 0
        %1045 = vmatprep.subr.mxu0 0.0
        %1046 = vmatpush1.xpose.msra.mxu0 %v1043
        %1047 = vmatprep.subr.mxu0 0.0
        %1048 = vmatpush1.xpose.msra.mxu0 %v1041
        %1049 = vmatprep.subr.mxu0 0.0
        %1050 = vmatpush1.xpose.msra.mxu0 %v1039
        %1051 = vmatprep.subr.mxu0 0.0
        %1052 = vmatpush1.xpose.msra.mxu0 %v1037
        %1053 = vmatprep.subr.mxu0 0.0
        %1054 = vmatpush1.xpose.msra.mxu0 %v1035
        %1055 = vmatprep.subr.mxu0 0.0
        %1056 = vmatpush1.xpose.msra.mxu0 %v1033
        %1057 = vmatprep.subr.mxu0 0.0
        %1058 = vmatpush1.xpose.msra.mxu0 %v1031
        %1059 = vmatprep.subr.mxu0 0.0
        %1060 = vmatpush1.xpose.msra.mxu0 %v1029
        %1061 = vmatprep.subr.mxu0 0.0
        %1062 = vmatpush1.xpose.msra.mxu0 %v1027
        %1063 = vmatprep.subr.mxu0 0.0
        %1064 = vmatpush1.xpose.msra.mxu0 %v1025
        %1065 = vmatprep.subr.mxu0 0.0
        %1066 = vmatpush1.xpose.msra.mxu0 %v1023
        %1067 = vmatprep.subr.mxu0 0.0
        %1068 = vmatpush1.xpose.msra.mxu0 %v1021
        %1069 = vmatprep.subr.mxu0 0.0
        %1070 = vmatpush1.xpose.msra.mxu0 %v1019
        %1071 = vmatprep.subr.mxu0 0.0
        %1072 = vmatpush1.xpose.msra.mxu0 %v1017
        %1073 = vmatprep.subr.mxu0 0.0
        %1074 = vmatpush1.xpose.msra.mxu0 %v1015
        %1075 = vmatprep.subr.mxu0 0.0
        %1076 = vmatpush1.xpose.msra.mxu0 %v1013
        %1077 = vmatprep.subr.mxu0 0.0
        %1078 = vmatpush2.xpose.msra.mxu0 0.0
        %1079 = vmatprep.subr.mxu0 0.0
        %1080 = vmatpush2.xpose.msra.mxu0 0.0
        %1081 = vmatprep.subr.mxu0 0.0
        %1082 = vmatpush2.xpose.msra.mxu0 0.0
        %1083 = vmatprep.subr.mxu0 0.0
        %1084 = vmatpush2.xpose.msra.mxu0 0.0
        %1085 = vmatprep.subr.mxu0 0.0
        %1086 = vmatpush2.xpose.msra.mxu0 0.0
        %1087 = vmatprep.subr.mxu0 0.0
        %1088 = vmatpush2.xpose.msra.mxu0 0.0
        %1089 = vmatprep.subr.mxu0 0.0
        %1090 = vmatpush2.xpose.msra.mxu0 0.0
        %1091 = vmatprep.subr.mxu0 0.0
        %1092 = vmatpush2.xpose.msra.mxu0 0.0
        %1093 = vmatprep.subr.mxu0 0.0
        %1094 = vmatpush2.xpose.msra.mxu0 0.0
        %1095 = vmatprep.subr.mxu0 0.0
        %1096 = vmatpush2.xpose.msra.mxu0 0.0
        %1097 = vmatprep.subr.mxu0 0.0
        %1098 = vmatpush2.xpose.msra.mxu0 0.0
        %1099 = vmatprep.subr.mxu0 0.0
        %1100 = vmatpush2.xpose.msra.mxu0 0.0
        %1101 = vmatprep.subr.mxu0 0.0
        %1102 = vmatpush2.xpose.msra.mxu0 0.0
        %1103 = vmatprep.subr.mxu0 0.0
        %1104 = vmatpush2.xpose.msra.mxu0 0.0
        %1105 = vmatprep.subr.mxu0 0.0
        %1106 = vmatpush2.xpose.msra.mxu0 0.0
        %1107 = vmatprep.subr.mxu0 0.0
        %1108 = vmatpush2.xpose.msra.mxu0 0.0
        %1109 = vmatprep.mubr.f32.mxu0 0.0
        %1110 = vmatmul.mubr.f32.gmra.mxu0 %v966
        %v1111 = vpop.f32.mrf.mxu0
        %v1112 = vadd.f32 0.0, %v1111
        %v1113 = vpop.f32.mrf.mxu0
        %1114 = vmatprep.mubr.f32.mxu0 0.0
        %1115 = vmatmul.mubr.f32.gmra.mxu0 %v969
        %v1116 = vpop.f32.mrf.mxu0
        %v1117 = vadd.f32 0.0, %v1116
        %v1118 = vpop.f32.mrf.mxu0
        %1119 = vmatprep.mubr.f32.mxu0 0.0
        %1120 = vmatmul.mubr.f32.gmra.mxu0 %v972
        %v1121 = vpop.f32.mrf.mxu0
        %v1122 = vadd.f32 0.0, %v1121
        %v1123 = vpop.f32.mrf.mxu0
        %1124 = vmatprep.mubr.f32.mxu0 0.0
        %1125 = vmatmul.mubr.f32.gmra.mxu0 %v975
        %v1126 = vpop.f32.mrf.mxu0
        %v1127 = vadd.f32 0.0, %v1126
        %v1128 = vpop.f32.mrf.mxu0
        %1129 = vmatprep.mubr.f32.mxu0 0.0
        %1130 = vmatmul.mubr.f32.gmra.mxu0 %v978
        %v1131 = vpop.f32.mrf.mxu0
        %v1132 = vadd.f32 0.0, %v1131
        %v1133 = vpop.f32.mrf.mxu0
        %1134 = vmatprep.mubr.f32.mxu0 0.0
        %1135 = vmatmul.mubr.f32.gmra.mxu0 %v981
        %v1136 = vpop.f32.mrf.mxu0
        %v1137 = vadd.f32 0.0, %v1136
        %v1138 = vpop.f32.mrf.mxu0
        %1139 = vmatprep.mubr.f32.mxu0 0.0
        %1140 = vmatmul.mubr.f32.gmra.mxu0 %v984
        %v1141 = vpop.f32.mrf.mxu0
        %v1142 = vadd.f32 0.0, %v1141
        %v1143 = vpop.f32.mrf.mxu0
        %1144 = vmatprep.mubr.f32.mxu0 0.0
        %1145 = vmatmul.mubr.f32.gmra.mxu0 %v987
        %v1146 = vpop.f32.mrf.mxu0
        %v1147 = vadd.f32 0.0, %v1146
        %v1148 = vpop.f32.mrf.mxu0
        %1149 = vmatprep.mubr.f32.mxu0 0.0
        %1150 = vmatmul.mubr.f32.gmra.mxu0 %v990
        %v1151 = vpop.f32.mrf.mxu0
        %v1152 = vadd.f32 0.0, %v1151
        %v1153 = vpop.f32.mrf.mxu0
        %1154 = vmatprep.mubr.f32.mxu0 0.0
        %1155 = vmatmul.mubr.f32.gmra.mxu0 %v993
        %v1156 = vpop.f32.mrf.mxu0
        %v1157 = vadd.f32 0.0, %v1156
        %v1158 = vpop.f32.mrf.mxu0
        %1159 = vmatprep.mubr.f32.mxu0 0.0
        %1160 = vmatmul.mubr.f32.gmra.mxu0 %v996
        %v1161 = vpop.f32.mrf.mxu0
        %v1162 = vadd.f32 0.0, %v1161
        %v1163 = vpop.f32.mrf.mxu0
        %1164 = vmatprep.mubr.f32.mxu0 0.0
        %1165 = vmatmul.mubr.f32.gmra.mxu0 %v999
        %v1166 = vpop.f32.mrf.mxu0
        %v1167 = vadd.f32 0.0, %v1166
        %v1168 = vpop.f32.mrf.mxu0
        %1169 = vmatprep.mubr.f32.mxu0 0.0
        %1170 = vmatmul.mubr.f32.gmra.mxu0 %v1002
        %v1171 = vpop.f32.mrf.mxu0
        %v1172 = vadd.f32 0.0, %v1171
        %v1173 = vpop.f32.mrf.mxu0
        %1174 = vmatprep.mubr.f32.mxu0 0.0
        %1175 = vmatmul.mubr.f32.gmra.mxu0 %v1005
        %v1176 = vpop.f32.mrf.mxu0
        %v1177 = vadd.f32 0.0, %v1176
        %v1178 = vpop.f32.mrf.mxu0
        %1179 = vmatprep.mubr.f32.mxu0 0.0
        %1180 = vmatmul.mubr.f32.gmra.mxu0 %v1008
        %v1181 = vpop.f32.mrf.mxu0
        %v1182 = vadd.f32 0.0, %v1181
        %v1183 = vpop.f32.mrf.mxu0
        %1184 = vmatprep.mubr.f32.mxu0 0.0
        %1185 = vmatmul.mubr.f32.gmra.mxu0 %v1011
        %v1186 = vpop.f32.mrf.mxu0
        %v1187 = vadd.f32 0.0, %v1186
        %v1188 = vpop.f32.mrf.mxu0
        %1189 = vdwg.mxu0
        %v1190 = vmul.f32 %v1112, 0.17677669
        %v1191 = vmul.f32 %v1117, 0.17677669
        %v1192 = vmul.f32 %v1122, 0.17677669
        %v1193 = vmul.f32 %v1127, 0.17677669
        %v1194 = vmul.f32 %v1132, 0.17677669
        %v1195 = vmul.f32 %v1137, 0.17677669
        %v1196 = vmul.f32 %v1142, 0.17677669
        %v1197 = vmul.f32 %v1147, 0.17677669
        %v1198 = vmul.f32 %v1152, 0.17677669
        %v1199 = vmul.f32 %v1157, 0.17677669
        %v1200 = vmul.f32 %v1162, 0.17677669
        %v1201 = vmul.f32 %v1167, 0.17677669
        %v1202 = vmul.f32 %v1172, 0.17677669
        %v1203 = vmul.f32 %v1177, 0.17677669
        %v1204 = vmul.f32 %v1182, 0.17677669
        %v1205 = vmul.f32 %v1187, 0.17677669
        %v1206 = vsel %vm900, %v1190, -inf
        %v1207 = vsel %vm901, %v1191, -inf
        %v1208 = vsel %vm902, %v1192, -inf
        %v1209 = vsel %vm903, %v1193, -inf
        %v1210 = vsel %vm904, %v1194, -inf
        %v1211 = vsel %vm905, %v1195, -inf
        %v1212 = vsel %vm906, %v1196, -inf
        %v1213 = vsel %vm907, %v1197, -inf
        %v1214 = vsel %vm908, %v1198, -inf
        %v1215 = vsel %vm909, %v1199, -inf
        %v1216 = vsel %vm910, %v1200, -inf
        %v1217 = vsel %vm911, %v1201, -inf
        %v1218 = vsel %vm912, %v1202, -inf
        %v1219 = vsel %vm913, %v1203, -inf
        %v1220 = vsel %vm914, %v1204, -inf
        %v1221 = vsel %vm915, %v1205, -inf
        %1222 = vmax.xlane.f32.xlu0 %v1206
        %v1223 = vpop.xlane.xlu0 %1222
        %1224 = vmax.xlane.f32.xlu0 %v1207
        %v1225 = vpop.xlane.xlu0 %1224
        %1226 = vmax.xlane.f32.xlu0 %v1208
        %v1227 = vpop.xlane.xlu0 %1226
        %1228 = vmax.xlane.f32.xlu0 %v1209
        %v1229 = vpop.xlane.xlu0 %1228
        %1230 = vmax.xlane.f32.xlu0 %v1210
        %v1231 = vpop.xlane.xlu0 %1230
        %1232 = vmax.xlane.f32.xlu0 %v1211
        %v1233 = vpop.xlane.xlu0 %1232
        %1234 = vmax.xlane.f32.xlu0 %v1212
        %v1235 = vpop.xlane.xlu0 %1234
        %1236 = vmax.xlane.f32.xlu0 %v1213
        %v1237 = vpop.xlane.xlu0 %1236
        %1238 = vmax.xlane.f32.xlu0 %v1214
        %v1239 = vpop.xlane.xlu0 %1238
        %1240 = vmax.xlane.f32.xlu0 %v1215
        %v1241 = vpop.xlane.xlu0 %1240
        %1242 = vmax.xlane.f32.xlu0 %v1216
        %v1243 = vpop.xlane.xlu0 %1242
        %1244 = vmax.xlane.f32.xlu0 %v1217
        %v1245 = vpop.xlane.xlu0 %1244
        %1246 = vmax.xlane.f32.xlu0 %v1218
        %v1247 = vpop.xlane.xlu0 %1246
        %1248 = vmax.xlane.f32.xlu0 %v1219
        %v1249 = vpop.xlane.xlu0 %1248
        %1250 = vmax.xlane.f32.xlu0 %v1220
        %v1251 = vpop.xlane.xlu0 %1250
        %1252 = vmax.xlane.f32.xlu0 %v1221
        %v1253 = vpop.xlane.xlu0 %1252
        %v1254 = vsub.f32 %v1206, %v1223
        %v1255 = vsub.f32 %v1207, %v1225
        %v1256 = vsub.f32 %v1208, %v1227
        %v1257 = vsub.f32 %v1209, %v1229
        %v1258 = vsub.f32 %v1210, %v1231
        %v1259 = vsub.f32 %v1211, %v1233
        %v1260 = vsub.f32 %v1212, %v1235
        %v1261 = vsub.f32 %v1213, %v1237
        %v1262 = vsub.f32 %v1214, %v1239
        %v1263 = vsub.f32 %v1215, %v1241
        %v1264 = vsub.f32 %v1216, %v1243
        %v1265 = vsub.f32 %v1217, %v1245
        %v1266 = vsub.f32 %v1218, %v1247
        %v1267 = vsub.f32 %v1219, %v1249
        %v1268 = vsub.f32 %v1220, %v1251
        %v1269 = vsub.f32 %v1221, %v1253
        %v1270 = vmul.f32 %v1254, 1.442695
        %v1271 = vpow.pop %v1270
        %v1272 = vmul.f32 %v1255, 1.442695
        %v1273 = vpow.pop %v1272
        %v1274 = vmul.f32 %v1256, 1.442695
        %v1275 = vpow.pop %v1274
        %v1276 = vmul.f32 %v1257, 1.442695
        %v1277 = vpow.pop %v1276
        %v1278 = vmul.f32 %v1258, 1.442695
        %v1279 = vpow.pop %v1278
        %v1280 = vmul.f32 %v1259, 1.442695
        %v1281 = vpow.pop %v1280
        %v1282 = vmul.f32 %v1260, 1.442695
        %v1283 = vpow.pop %v1282
        %v1284 = vmul.f32 %v1261, 1.442695
        %v1285 = vpow.pop %v1284
        %v1286 = vmul.f32 %v1262, 1.442695
        %v1287 = vpow.pop %v1286
        %v1288 = vmul.f32 %v1263, 1.442695
        %v1289 = vpow.pop %v1288
        %v1290 = vmul.f32 %v1264, 1.442695
        %v1291 = vpow.pop %v1290
        %v1292 = vmul.f32 %v1265, 1.442695
        %v1293 = vpow.pop %v1292
        %v1294 = vmul.f32 %v1266, 1.442695
        %v1295 = vpow.pop %v1294
        %v1296 = vmul.f32 %v1267, 1.442695
        %v1297 = vpow.pop %v1296
        %v1298 = vmul.f32 %v1268, 1.442695
        %v1299 = vpow.pop %v1298
        %v1300 = vmul.f32 %v1269, 1.442695
        %v1301 = vpow.pop %v1300
        %1302 = vadd.xlane.f32.xlu0 %v1271
        %v1303 = vpop.xlane.xlu0 %1302
        %1304 = vadd.xlane.f32.xlu0 %v1273
        %v1305 = vpop.xlane.xlu0 %1304
        %1306 = vadd.xlane.f32.xlu0 %v1275
        %v1307 = vpop.xlane.xlu0 %1306
        %1308 = vadd.xlane.f32.xlu0 %v1277
        %v1309 = vpop.xlane.xlu0 %1308
        %1310 = vadd.xlane.f32.xlu0 %v1279
        %v1311 = vpop.xlane.xlu0 %1310
        %1312 = vadd.xlane.f32.xlu0 %v1281
        %v1313 = vpop.xlane.xlu0 %1312
        %1314 = vadd.xlane.f32.xlu0 %v1283
        %v1315 = vpop.xlane.xlu0 %1314
        %1316 = vadd.xlane.f32.xlu0 %v1285
        %v1317 = vpop.xlane.xlu0 %1316
        %1318 = vadd.xlane.f32.xlu0 %v1287
        %v1319 = vpop.xlane.xlu0 %1318
        %1320 = vadd.xlane.f32.xlu0 %v1289
        %v1321 = vpop.xlane.xlu0 %1320
        %1322 = vadd.xlane.f32.xlu0 %v1291
        %v1323 = vpop.xlane.xlu0 %1322
        %1324 = vadd.xlane.f32.xlu0 %v1293
        %v1325 = vpop.xlane.xlu0 %1324
        %1326 = vadd.xlane.f32.xlu0 %v1295
        %v1327 = vpop.xlane.xlu0 %1326
        %1328 = vadd.xlane.f32.xlu0 %v1297
        %v1329 = vpop.xlane.xlu0 %1328
        %1330 = vadd.xlane.f32.xlu0 %v1299
        %v1331 = vpop.xlane.xlu0 %1330
        %1332 = vadd.xlane.f32.xlu0 %v1301
        %v1333 = vpop.xlane.xlu0 %1332
        %v1334 = vrcp.pop %v1303
        %v1335 = vrcp.pop %v1305
        %v1336 = vrcp.pop %v1307
        %v1337 = vrcp.pop %v1309
        %v1338 = vrcp.pop %v1311
        %v1339 = vrcp.pop %v1313
        %v1340 = vrcp.pop %v1315
        %v1341 = vrcp.pop %v1317
        %v1342 = vrcp.pop %v1319
        %v1343 = vrcp.pop %v1321
        %v1344 = vrcp.pop %v1323
        %v1345 = vrcp.pop %v1325
        %v1346 = vrcp.pop %v1327
        %v1347 = vrcp.pop %v1329
        %v1348 = vrcp.pop %v1331
        %v1349 = vrcp.pop %v1333
        %v1350 = vmul.f32 %v1271, %v1334
        %v1351 = vmul.f32 %v1273, %v1335
        %v1352 = vmul.f32 %v1275, %v1336
        %v1353 = vmul.f32 %v1277, %v1337
        %v1354 = vmul.f32 %v1279, %v1338
        %v1355 = vmul.f32 %v1281, %v1339
        %v1356 = vmul.f32 %v1283, %v1340
        %v1357 = vmul.f32 %v1285, %v1341
        %v1358 = vmul.f32 %v1287, %v1342
        %v1359 = vmul.f32 %v1289, %v1343
        %v1360 = vmul.f32 %v1291, %v1344
        %v1361 = vmul.f32 %v1293, %v1345
        %v1362 = vmul.f32 %v1295, %v1346
        %v1363 = vmul.f32 %v1297, %v1347
        %v1364 = vmul.f32 %v1299, %v1348
        %v1365 = vmul.f32 %v1301, %v1349
        %1366 = vmatprep.subr.mxu0 0.0
        %1367 = vmatpush1.msra.mxu0 %v734
        %1368 = vmatprep.subr.mxu0 0.0
        %1369 = vmatpush1.msra.mxu0 %v728
        %1370 = vmatprep.subr.mxu0 0.0
        %1371 = vmatpush1.msra.mxu0 %v722
        %1372 = vmatprep.subr.mxu0 0.0
        %1373 = vmatpush1.msra.mxu0 %v716
        %1374 = vmatprep.subr.mxu0 0.0
        %1375 = vmatpush1.msra.mxu0 %v710
        %1376 = vmatprep.subr.mxu0 0.0
        %1377 = vmatpush1.msra.mxu0 %v704
        %1378 = vmatprep.subr.mxu0 0.0
        %1379 = vmatpush1.msra.mxu0 %v698
        %1380 = vmatprep.subr.mxu0 0.0
        %1381 = vmatpush1.msra.mxu0 %v692
        %1382 = vmatprep.subr.mxu0 0.0
        %1383 = vmatpush1.msra.mxu0 %v686
        %1384 = vmatprep.subr.mxu0 0.0
        %1385 = vmatpush1.msra.mxu0 %v680
        %1386 = vmatprep.subr.mxu0 0.0
        %1387 = vmatpush1.msra.mxu0 %v674
        %1388 = vmatprep.subr.mxu0 0.0
        %1389 = vmatpush1.msra.mxu0 %v668
        %1390 = vmatprep.subr.mxu0 0.0
        %1391 = vmatpush1.msra.mxu0 %v662
        %1392 = vmatprep.subr.mxu0 0.0
        %1393 = vmatpush1.msra.mxu0 %v656
        %1394 = vmatprep.subr.mxu0 0.0
        %1395 = vmatpush1.msra.mxu0 %v650
        %1396 = vmatprep.subr.mxu0 0.0
        %1397 = vmatpush1.msra.mxu0 %v644
        %1398 = vmatprep.subr.mxu0 0.0
        %1399 = vmatpush2.msra.mxu0 0.0
        %1400 = vmatprep.subr.mxu0 0.0
        %1401 = vmatpush2.msra.mxu0 0.0
        %1402 = vmatprep.subr.mxu0 0.0
        %1403 = vmatpush2.msra.mxu0 0.0
        %1404 = vmatprep.subr.mxu0 0.0
        %1405 = vmatpush2.msra.mxu0 0.0
        %1406 = vmatprep.subr.mxu0 0.0
        %1407 = vmatpush2.msra.mxu0 0.0
        %1408 = vmatprep.subr.mxu0 0.0
        %1409 = vmatpush2.msra.mxu0 0.0
        %1410 = vmatprep.subr.mxu0 0.0
        %1411 = vmatpush2.msra.mxu0 0.0
        %1412 = vmatprep.subr.mxu0 0.0
        %1413 = vmatpush2.msra.mxu0 0.0
        %1414 = vmatprep.subr.mxu0 0.0
        %1415 = vmatpush2.msra.mxu0 0.0
        %1416 = vmatprep.subr.mxu0 0.0
        %1417 = vmatpush2.msra.mxu0 0.0
        %1418 = vmatprep.subr.mxu0 0.0
        %1419 = vmatpush2.msra.mxu0 0.0
        %1420 = vmatprep.subr.mxu0 0.0
        %1421 = vmatpush2.msra.mxu0 0.0
        %1422 = vmatprep.subr.mxu0 0.0
        %1423 = vmatpush2.msra.mxu0 0.0
        %1424 = vmatprep.subr.mxu0 0.0
        %1425 = vmatpush2.msra.mxu0 0.0
        %1426 = vmatprep.subr.mxu0 0.0
        %1427 = vmatpush2.msra.mxu0 0.0
        %1428 = vmatprep.subr.mxu0 0.0
        %1429 = vmatpush2.msra.mxu0 0.0
        %1430 = vmatprep.mubr.f32.mxu0 0.0
        %1431 = vmatmul.mubr.f32.gmra.mxu0 %v1350
        %v1432 = vpop.f32.mrf.mxu0
        %v1433 = vadd.f32 0.0, %v1432
        %v1434 = vpop.f32.mrf.mxu0
        %1435 = vmatprep.mubr.f32.mxu0 0.0
        %1436 = vmatmul.mubr.f32.gmra.mxu0 %v1351
        %v1437 = vpop.f32.mrf.mxu0
        %v1438 = vadd.f32 0.0, %v1437
        %v1439 = vpop.f32.mrf.mxu0
        %1440 = vmatprep.mubr.f32.mxu0 0.0
        %1441 = vmatmul.mubr.f32.gmra.mxu0 %v1352
        %v1442 = vpop.f32.mrf.mxu0
        %v1443 = vadd.f32 0.0, %v1442
        %v1444 = vpop.f32.mrf.mxu0
        %1445 = vmatprep.mubr.f32.mxu0 0.0
        %1446 = vmatmul.mubr.f32.gmra.mxu0 %v1353
        %v1447 = vpop.f32.mrf.mxu0
        %v1448 = vadd.f32 0.0, %v1447
        %v1449 = vpop.f32.mrf.mxu0
        %1450 = vmatprep.mubr.f32.mxu0 0.0
        %1451 = vmatmul.mubr.f32.gmra.mxu0 %v1354
        %v1452 = vpop.f32.mrf.mxu0
        %v1453 = vadd.f32 0.0, %v1452
        %v1454 = vpop.f32.mrf.mxu0
        %1455 = vmatprep.mubr.f32.mxu0 0.0
        %1456 = vmatmul.mubr.f32.gmra.mxu0 %v1355
        %v1457 = vpop.f32.mrf.mxu0
        %v1458 = vadd.f32 0.0, %v1457
        %v1459 = vpop.f32.mrf.mxu0
        %1460 = vmatprep.mubr.f32.mxu0 0.0
        %1461 = vmatmul.mubr.f32.gmra.mxu0 %v1356
        %v1462 = vpop.f32.mrf.mxu0
        %v1463 = vadd.f32 0.0, %v1462
        %v1464 = vpop.f32.mrf.mxu0
        %1465 = vmatprep.mubr.f32.mxu0 0.0
        %1466 = vmatmul.mubr.f32.gmra.mxu0 %v1357
        %v1467 = vpop.f32.mrf.mxu0
        %v1468 = vadd.f32 0.0, %v1467
        %v1469 = vpop.f32.mrf.mxu0
        %1470 = vmatprep.mubr.f32.mxu0 0.0
        %1471 = vmatmul.mubr.f32.gmra.mxu0 %v1358
        %v1472 = vpop.f32.mrf.mxu0
        %v1473 = vadd.f32 0.0, %v1472
        %v1474 = vpop.f32.mrf.mxu0
        %1475 = vmatprep.mubr.f32.mxu0 0.0
        %1476 = vmatmul.mubr.f32.gmra.mxu0 %v1359
        %v1477 = vpop.f32.mrf.mxu0
        %v1478 = vadd.f32 0.0, %v1477
        %v1479 = vpop.f32.mrf.mxu0
        %1480 = vmatprep.mubr.f32.mxu0 0.0
        %1481 = vmatmul.mubr.f32.gmra.mxu0 %v1360
        %v1482 = vpop.f32.mrf.mxu0
        %v1483 = vadd.f32 0.0, %v1482
        %v1484 = vpop.f32.mrf.mxu0
        %1485 = vmatprep.mubr.f32.mxu0 0.0
        %1486 = vmatmul.mubr.f32.gmra.mxu0 %v1361
        %v1487 = vpop.f32.mrf.mxu0
        %v1488 = vadd.f32 0.0, %v1487
        %v1489 = vpop.f32.mrf.mxu0
        %1490 = vmatprep.mubr.f32.mxu0 0.0
        %1491 = vmatmul.mubr.f32.gmra.mxu0 %v1362
        %v1492 = vpop.f32.mrf.mxu0
        %v1493 = vadd.f32 0.0, %v1492
        %v1494 = vpop.f32.mrf.mxu0
        %1495 = vmatprep.mubr.f32.mxu0 0.0
        %1496 = vmatmul.mubr.f32.gmra.mxu0 %v1363
        %v1497 = vpop.f32.mrf.mxu0
        %v1498 = vadd.f32 0.0, %v1497
        %v1499 = vpop.f32.mrf.mxu0
        %1500 = vmatprep.mubr.f32.mxu0 0.0
        %1501 = vmatmul.mubr.f32.gmra.mxu0 %v1364
        %v1502 = vpop.f32.mrf.mxu0
        %v1503 = vadd.f32 0.0, %v1502
        %v1504 = vpop.f32.mrf.mxu0
        %1505 = vmatprep.mubr.f32.mxu0 0.0
        %1506 = vmatmul.mubr.f32.gmra.mxu0 %v1365
        %v1507 = vpop.f32.mrf.mxu0
        %v1508 = vadd.f32 0.0, %v1507
        %v1509 = vpop.f32.mrf.mxu0
        %1510 = vdwg.mxu0
        %1511 = vrot.lane.b32.xlu0 %v481, 96
        %v1512 = vpop.permute.xlu0 %1511
        %1513 = vrot.lane.b32.xlu0 %v487, 96
        %v1514 = vpop.permute.xlu0 %1513
        %1515 = vrot.lane.b32.xlu0 %v493, 96
        %v1516 = vpop.permute.xlu0 %1515
        %1517 = vrot.lane.b32.xlu0 %v499, 96
        %v1518 = vpop.permute.xlu0 %1517
        %1519 = vrot.lane.b32.xlu0 %v505, 96
        %v1520 = vpop.permute.xlu0 %1519
        %1521 = vrot.lane.b32.xlu0 %v511, 96
        %v1522 = vpop.permute.xlu0 %1521
        %1523 = vrot.lane.b32.xlu0 %v517, 96
        %v1524 = vpop.permute.xlu0 %1523
        %1525 = vrot.lane.b32.xlu0 %v523, 96
        %v1526 = vpop.permute.xlu0 %1525
        %1527 = vrot.lane.b32.xlu0 %v529, 96
        %v1528 = vpop.permute.xlu0 %1527
        %1529 = vrot.lane.b32.xlu0 %v535, 96
        %v1530 = vpop.permute.xlu0 %1529
        %1531 = vrot.lane.b32.xlu0 %v541, 96
        %v1532 = vpop.permute.xlu0 %1531
        %1533 = vrot.lane.b32.xlu0 %v547, 96
        %v1534 = vpop.permute.xlu0 %1533
        %1535 = vrot.lane.b32.xlu0 %v553, 96
        %v1536 = vpop.permute.xlu0 %1535
        %1537 = vrot.lane.b32.xlu0 %v559, 96
        %v1538 = vpop.permute.xlu0 %1537
        %1539 = vrot.lane.b32.xlu0 %v565, 96
        %v1540 = vpop.permute.xlu0 %1539
        %1541 = vrot.lane.b32.xlu0 %v571, 96
        %v1542 = vpop.permute.xlu0 %1541
        %1543 = vrot.lane.b32.xlu0 %v483, 32
        %v1544 = vpop.permute.xlu0 %1543
        %1545 = vrot.lane.b32.xlu0 %v489, 32
        %v1546 = vpop.permute.xlu0 %1545
        %1547 = vrot.lane.b32.xlu0 %v495, 32
        %v1548 = vpop.permute.xlu0 %1547
        %1549 = vrot.lane.b32.xlu0 %v501, 32
        %v1550 = vpop.permute.xlu0 %1549
        %1551 = vrot.lane.b32.xlu0 %v507, 32
        %v1552 = vpop.permute.xlu0 %1551
        %1553 = vrot.lane.b32.xlu0 %v513, 32
        %v1554 = vpop.permute.xlu0 %1553
        %1555 = vrot.lane.b32.xlu0 %v519, 32
        %v1556 = vpop.permute.xlu0 %1555
        %1557 = vrot.lane.b32.xlu0 %v525, 32
        %v1558 = vpop.permute.xlu0 %1557
        %1559 = vrot.lane.b32.xlu0 %v531, 32
        %v1560 = vpop.permute.xlu0 %1559
        %1561 = vrot.lane.b32.xlu0 %v537, 32
        %v1562 = vpop.permute.xlu0 %1561
        %1563 = vrot.lane.b32.xlu0 %v543, 32
        %v1564 = vpop.permute.xlu0 %1563
        %1565 = vrot.lane.b32.xlu0 %v549, 32
        %v1566 = vpop.permute.xlu0 %1565
        %1567 = vrot.lane.b32.xlu0 %v555, 32
        %v1568 = vpop.permute.xlu0 %1567
        %1569 = vrot.lane.b32.xlu0 %v561, 32
        %v1570 = vpop.permute.xlu0 %1569
        %1571 = vrot.lane.b32.xlu0 %v567, 32
        %v1572 = vpop.permute.xlu0 %1571
        %1573 = vrot.lane.b32.xlu0 %v573, 32
        %v1574 = vpop.permute.xlu0 %1573
        %v1575 = vsel %vm964, %v1512, 0
        %v1577 = vsel %vm964, %v1514, 0
        %v1579 = vsel %vm964, %v1516, 0
        %v1581 = vsel %vm964, %v1518, 0
        %v1583 = vsel %vm964, %v1520, 0
        %v1585 = vsel %vm964, %v1522, 0
        %v1587 = vsel %vm964, %v1524, 0
        %v1589 = vsel %vm964, %v1526, 0
        %v1591 = vsel %vm964, %v1528, 0
        %v1593 = vsel %vm964, %v1530, 0
        %v1595 = vsel %vm964, %v1532, 0
        %v1597 = vsel %vm964, %v1534, 0
        %v1599 = vsel %vm964, %v1536, 0
        %v1601 = vsel %vm964, %v1538, 0
        %v1603 = vsel %vm964, %v1540, 0
        %v1605 = vsel %vm964, %v1542, 0
        %v1607 = vsel %vm964, %v1544, 0
        %v1609 = vsel %vm964, %v1546, 0
        %v1611 = vsel %vm964, %v1548, 0
        %v1613 = vsel %vm964, %v1550, 0
        %v1615 = vsel %vm964, %v1552, 0
        %v1617 = vsel %vm964, %v1554, 0
        %v1619 = vsel %vm964, %v1556, 0
        %v1621 = vsel %vm964, %v1558, 0
        %v1623 = vsel %vm964, %v1560, 0
        %v1625 = vsel %vm964, %v1562, 0
        %v1627 = vsel %vm964, %v1564, 0
        %v1629 = vsel %vm964, %v1566, 0
        %v1631 = vsel %vm964, %v1568, 0
        %v1633 = vsel %vm964, %v1570, 0
        %v1635 = vsel %vm964, %v1572, 0
        %v1637 = vsel %vm964, %v1574, 0
        %1639 = vmatprep.subr.mxu0 0.0
        %1640 = vmatpush1.xpose.msra.mxu0 %v1637
        %1641 = vmatprep.subr.mxu0 0.0
        %1642 = vmatpush1.xpose.msra.mxu0 %v1635
        %1643 = vmatprep.subr.mxu0 0.0
        %1644 = vmatpush1.xpose.msra.mxu0 %v1633
        %1645 = vmatprep.subr.mxu0 0.0
        %1646 = vmatpush1.xpose.msra.mxu0 %v1631
        %1647 = vmatprep.subr.mxu0 0.0
        %1648 = vmatpush1.xpose.msra.mxu0 %v1629
        %1649 = vmatprep.subr.mxu0 0.0
        %1650 = vmatpush1.xpose.msra.mxu0 %v1627
        %1651 = vmatprep.subr.mxu0 0.0
        %1652 = vmatpush1.xpose.msra.mxu0 %v1625
        %1653 = vmatprep.subr.mxu0 0.0
        %1654 = vmatpush1.xpose.msra.mxu0 %v1623
        %1655 = vmatprep.subr.mxu0 0.0
        %1656 = vmatpush1.xpose.msra.mxu0 %v1621
        %1657 = vmatprep.subr.mxu0 0.0
        %1658 = vmatpush1.xpose.msra.mxu0 %v1619
        %1659 = vmatprep.subr.mxu0 0.0
        %1660 = vmatpush1.xpose.msra.mxu0 %v1617
        %1661 = vmatprep.subr.mxu0 0.0
        %1662 = vmatpush1.xpose.msra.mxu0 %v1615
        %1663 = vmatprep.subr.mxu0 0.0
        %1664 = vmatpush1.xpose.msra.mxu0 %v1613
        %1665 = vmatprep.subr.mxu0 0.0
        %1666 = vmatpush1.xpose.msra.mxu0 %v1611
        %1667 = vmatprep.subr.mxu0 0.0
        %1668 = vmatpush1.xpose.msra.mxu0 %v1609
        %1669 = vmatprep.subr.mxu0 0.0
        %1670 = vmatpush1.xpose.msra.mxu0 %v1607
        %1671 = vmatprep.subr.mxu0 0.0
        %1672 = vmatpush2.xpose.msra.mxu0 0.0
        %1673 = vmatprep.subr.mxu0 0.0
        %1674 = vmatpush2.xpose.msra.mxu0 0.0
        %1675 = vmatprep.subr.mxu0 0.0
        %1676 = vmatpush2.xpose.msra.mxu0 0.0
        %1677 = vmatprep.subr.mxu0 0.0
        %1678 = vmatpush2.xpose.msra.mxu0 0.0
        %1679 = vmatprep.subr.mxu0 0.0
        %1680 = vmatpush2.xpose.msra.mxu0 0.0
        %1681 = vmatprep.subr.mxu0 0.0
        %1682 = vmatpush2.xpose.msra.mxu0 0.0
        %1683 = vmatprep.subr.mxu0 0.0
        %1684 = vmatpush2.xpose.msra.mxu0 0.0
        %1685 = vmatprep.subr.mxu0 0.0
        %1686 = vmatpush2.xpose.msra.mxu0 0.0
        %1687 = vmatprep.subr.mxu0 0.0
        %1688 = vmatpush2.xpose.msra.mxu0 0.0
        %1689 = vmatprep.subr.mxu0 0.0
        %1690 = vmatpush2.xpose.msra.mxu0 0.0
        %1691 = vmatprep.subr.mxu0 0.0
        %1692 = vmatpush2.xpose.msra.mxu0 0.0
        %1693 = vmatprep.subr.mxu0 0.0
        %1694 = vmatpush2.xpose.msra.mxu0 0.0
        %1695 = vmatprep.subr.mxu0 0.0
        %1696 = vmatpush2.xpose.msra.mxu0 0.0
        %1697 = vmatprep.subr.mxu0 0.0
        %1698 = vmatpush2.xpose.msra.mxu0 0.0
        %1699 = vmatprep.subr.mxu0 0.0
        %1700 = vmatpush2.xpose.msra.mxu0 0.0
        %1701 = vmatprep.subr.mxu0 0.0
        %1702 = vmatpush2.xpose.msra.mxu0 0.0
        %1703 = vmatprep.mubr.f32.mxu0 0.0
        %1704 = vmatmul.mubr.f32.gmra.mxu0 %v1575
        %v1705 = vpop.f32.mrf.mxu0
        %v1706 = vadd.f32 0.0, %v1705
        %v1707 = vpop.f32.mrf.mxu0
        %1708 = vmatprep.mubr.f32.mxu0 0.0
        %1709 = vmatmul.mubr.f32.gmra.mxu0 %v1577
        %v1710 = vpop.f32.mrf.mxu0
        %v1711 = vadd.f32 0.0, %v1710
        %v1712 = vpop.f32.mrf.mxu0
        %1713 = vmatprep.mubr.f32.mxu0 0.0
        %1714 = vmatmul.mubr.f32.gmra.mxu0 %v1579
        %v1715 = vpop.f32.mrf.mxu0
        %v1716 = vadd.f32 0.0, %v1715
        %v1717 = vpop.f32.mrf.mxu0
        %1718 = vmatprep.mubr.f32.mxu0 0.0
        %1719 = vmatmul.mubr.f32.gmra.mxu0 %v1581
        %v1720 = vpop.f32.mrf.mxu0
        %v1721 = vadd.f32 0.0, %v1720
        %v1722 = vpop.f32.mrf.mxu0
        %1723 = vmatprep.mubr.f32.mxu0 0.0
        %1724 = vmatmul.mubr.f32.gmra.mxu0 %v1583
        %v1725 = vpop.f32.mrf.mxu0
        %v1726 = vadd.f32 0.0, %v1725
        %v1727 = vpop.f32.mrf.mxu0
        %1728 = vmatprep.mubr.f32.mxu0 0.0
        %1729 = vmatmul.mubr.f32.gmra.mxu0 %v1585
        %v1730 = vpop.f32.mrf.mxu0
        %v1731 = vadd.f32 0.0, %v1730
        %v1732 = vpop.f32.mrf.mxu0
        %1733 = vmatprep.mubr.f32.mxu0 0.0
        %1734 = vmatmul.mubr.f32.gmra.mxu0 %v1587
        %v1735 = vpop.f32.mrf.mxu0
        %v1736 = vadd.f32 0.0, %v1735
        %v1737 = vpop.f32.mrf.mxu0
        %1738 = vmatprep.mubr.f32.mxu0 0.0
        %1739 = vmatmul.mubr.f32.gmra.mxu0 %v1589
        %v1740 = vpop.f32.mrf.mxu0
        %v1741 = vadd.f32 0.0, %v1740
        %v1742 = vpop.f32.mrf.mxu0
        %1743 = vmatprep.mubr.f32.mxu0 0.0
        %1744 = vmatmul.mubr.f32.gmra.mxu0 %v1591
        %v1745 = vpop.f32.mrf.mxu0
        %v1746 = vadd.f32 0.0, %v1745
        %v1747 = vpop.f32.mrf.mxu0
        %1748 = vmatprep.mubr.f32.mxu0 0.0
        %1749 = vmatmul.mubr.f32.gmra.mxu0 %v1593
        %v1750 = vpop.f32.mrf.mxu0
        %v1751 = vadd.f32 0.0, %v1750
        %v1752 = vpop.f32.mrf.mxu0
        %1753 = vmatprep.mubr.f32.mxu0 0.0
        %1754 = vmatmul.mubr.f32.gmra.mxu0 %v1595
        %v1755 = vpop.f32.mrf.mxu0
        %v1756 = vadd.f32 0.0, %v1755
        %v1757 = vpop.f32.mrf.mxu0
        %1758 = vmatprep.mubr.f32.mxu0 0.0
        %1759 = vmatmul.mubr.f32.gmra.mxu0 %v1597
        %v1760 = vpop.f32.mrf.mxu0
        %v1761 = vadd.f32 0.0, %v1760
        %v1762 = vpop.f32.mrf.mxu0
        %1763 = vmatprep.mubr.f32.mxu0 0.0
        %1764 = vmatmul.mubr.f32.gmra.mxu0 %v1599
        %v1765 = vpop.f32.mrf.mxu0
        %v1766 = vadd.f32 0.0, %v1765
        %v1767 = vpop.f32.mrf.mxu0
        %1768 = vmatprep.mubr.f32.mxu0 0.0
        %1769 = vmatmul.mubr.f32.gmra.mxu0 %v1601
        %v1770 = vpop.f32.mrf.mxu0
        %v1771 = vadd.f32 0.0, %v1770
        %v1772 = vpop.f32.mrf.mxu0
        %1773 = vmatprep.mubr.f32.mxu0 0.0
        %1774 = vmatmul.mubr.f32.gmra.mxu0 %v1603
        %v1775 = vpop.f32.mrf.mxu0
        %v1776 = vadd.f32 0.0, %v1775
        %v1777 = vpop.f32.mrf.mxu0
        %1778 = vmatprep.mubr.f32.mxu0 0.0
        %1779 = vmatmul.mubr.f32.gmra.mxu0 %v1605
        %v1780 = vpop.f32.mrf.mxu0
        %v1781 = vadd.f32 0.0, %v1780
        %v1782 = vpop.f32.mrf.mxu0
        %1783 = vdwg.mxu0
        %v1784 = vmul.f32 %v1706, 0.17677669
        %v1785 = vmul.f32 %v1711, 0.17677669
        %v1786 = vmul.f32 %v1716, 0.17677669
        %v1787 = vmul.f32 %v1721, 0.17677669
        %v1788 = vmul.f32 %v1726, 0.17677669
        %v1789 = vmul.f32 %v1731, 0.17677669
        %v1790 = vmul.f32 %v1736, 0.17677669
        %v1791 = vmul.f32 %v1741, 0.17677669
        %v1792 = vmul.f32 %v1746, 0.17677669
        %v1793 = vmul.f32 %v1751, 0.17677669
        %v1794 = vmul.f32 %v1756, 0.17677669
        %v1795 = vmul.f32 %v1761, 0.17677669
        %v1796 = vmul.f32 %v1766, 0.17677669
        %v1797 = vmul.f32 %v1771, 0.17677669
        %v1798 = vmul.f32 %v1776, 0.17677669
        %v1799 = vmul.f32 %v1781, 0.17677669
        %v1800 = vsel %vm900, %v1784, -inf
        %v1801 = vsel %vm901, %v1785, -inf
        %v1802 = vsel %vm902, %v1786, -inf
        %v1803 = vsel %vm903, %v1787, -inf
        %v1804 = vsel %vm904, %v1788, -inf
        %v1805 = vsel %vm905, %v1789, -inf
        %v1806 = vsel %vm906, %v1790, -inf
        %v1807 = vsel %vm907, %v1791, -inf
        %v1808 = vsel %vm908, %v1792, -inf
        %v1809 = vsel %vm909, %v1793, -inf
        %v1810 = vsel %vm910, %v1794, -inf
        %v1811 = vsel %vm911, %v1795, -inf
        %v1812 = vsel %vm912, %v1796, -inf
        %v1813 = vsel %vm913, %v1797, -inf
        %v1814 = vsel %vm914, %v1798, -inf
        %v1815 = vsel %vm915, %v1799, -inf
        %1816 = vmax.xlane.f32.xlu0 %v1800
        %v1817 = vpop.xlane.xlu0 %1816
        %1818 = vmax.xlane.f32.xlu0 %v1801
        %v1819 = vpop.xlane.xlu0 %1818
        %1820 = vmax.xlane.f32.xlu0 %v1802
        %v1821 = vpop.xlane.xlu0 %1820
        %1822 = vmax.xlane.f32.xlu0 %v1803
        %v1823 = vpop.xlane.xlu0 %1822
        %1824 = vmax.xlane.f32.xlu0 %v1804
        %v1825 = vpop.xlane.xlu0 %1824
        %1826 = vmax.xlane.f32.xlu0 %v1805
        %v1827 = vpop.xlane.xlu0 %1826
        %1828 = vmax.xlane.f32.xlu0 %v1806
        %v1829 = vpop.xlane.xlu0 %1828
        %1830 = vmax.xlane.f32.xlu0 %v1807
        %v1831 = vpop.xlane.xlu0 %1830
        %1832 = vmax.xlane.f32.xlu0 %v1808
        %v1833 = vpop.xlane.xlu0 %1832
        %1834 = vmax.xlane.f32.xlu0 %v1809
        %v1835 = vpop.xlane.xlu0 %1834
        %1836 = vmax.xlane.f32.xlu0 %v1810
        %v1837 = vpop.xlane.xlu0 %1836
        %1838 = vmax.xlane.f32.xlu0 %v1811
        %v1839 = vpop.xlane.xlu0 %1838
        %1840 = vmax.xlane.f32.xlu0 %v1812
        %v1841 = vpop.xlane.xlu0 %1840
        %1842 = vmax.xlane.f32.xlu0 %v1813
        %v1843 = vpop.xlane.xlu0 %1842
        %1844 = vmax.xlane.f32.xlu0 %v1814
        %v1845 = vpop.xlane.xlu0 %1844
        %1846 = vmax.xlane.f32.xlu0 %v1815
        %v1847 = vpop.xlane.xlu0 %1846
        %v1848 = vsub.f32 %v1800, %v1817
        %v1849 = vsub.f32 %v1801, %v1819
        %v1850 = vsub.f32 %v1802, %v1821
        %v1851 = vsub.f32 %v1803, %v1823
        %v1852 = vsub.f32 %v1804, %v1825
        %v1853 = vsub.f32 %v1805, %v1827
        %v1854 = vsub.f32 %v1806, %v1829
        %v1855 = vsub.f32 %v1807, %v1831
        %v1856 = vsub.f32 %v1808, %v1833
        %v1857 = vsub.f32 %v1809, %v1835
        %v1858 = vsub.f32 %v1810, %v1837
        %v1859 = vsub.f32 %v1811, %v1839
        %v1860 = vsub.f32 %v1812, %v1841
        %v1861 = vsub.f32 %v1813, %v1843
        %v1862 = vsub.f32 %v1814, %v1845
        %v1863 = vsub.f32 %v1815, %v1847
        %v1864 = vmul.f32 %v1848, 1.442695
        %v1865 = vpow.pop %v1864
        %v1866 = vmul.f32 %v1849, 1.442695
        %v1867 = vpow.pop %v1866
        %v1868 = vmul.f32 %v1850, 1.442695
        %v1869 = vpow.pop %v1868
        %v1870 = vmul.f32 %v1851, 1.442695
        %v1871 = vpow.pop %v1870
        %v1872 = vmul.f32 %v1852, 1.442695
        %v1873 = vpow.pop %v1872
        %v1874 = vmul.f32 %v1853, 1.442695
        %v1875 = vpow.pop %v1874
        %v1876 = vmul.f32 %v1854, 1.442695
        %v1877 = vpow.pop %v1876
        %v1878 = vmul.f32 %v1855, 1.442695
        %v1879 = vpow.pop %v1878
        %v1880 = vmul.f32 %v1856, 1.442695
        %v1881 = vpow.pop %v1880
        %v1882 = vmul.f32 %v1857, 1.442695
        %v1883 = vpow.pop %v1882
        %v1884 = vmul.f32 %v1858, 1.442695
        %v1885 = vpow.pop %v1884
        %v1886 = vmul.f32 %v1859, 1.442695
        %v1887 = vpow.pop %v1886
        %v1888 = vmul.f32 %v1860, 1.442695
        %v1889 = vpow.pop %v1888
        %v1890 = vmul.f32 %v1861, 1.442695
        %v1891 = vpow.pop %v1890
        %v1892 = vmul.f32 %v1862, 1.442695
        %v1893 = vpow.pop %v1892
        %v1894 = vmul.f32 %v1863, 1.442695
        %v1895 = vpow.pop %v1894
        %1896 = vadd.xlane.f32.xlu0 %v1865
        %v1897 = vpop.xlane.xlu0 %1896
        %1898 = vadd.xlane.f32.xlu0 %v1867
        %v1899 = vpop.xlane.xlu0 %1898
        %1900 = vadd.xlane.f32.xlu0 %v1869
        %v1901 = vpop.xlane.xlu0 %1900
        %1902 = vadd.xlane.f32.xlu0 %v1871
        %v1903 = vpop.xlane.xlu0 %1902
        %1904 = vadd.xlane.f32.xlu0 %v1873
        %v1905 = vpop.xlane.xlu0 %1904
        %1906 = vadd.xlane.f32.xlu0 %v1875
        %v1907 = vpop.xlane.xlu0 %1906
        %1908 = vadd.xlane.f32.xlu0 %v1877
        %v1909 = vpop.xlane.xlu0 %1908
        %1910 = vadd.xlane.f32.xlu0 %v1879
        %v1911 = vpop.xlane.xlu0 %1910
        %1912 = vadd.xlane.f32.xlu0 %v1881
        %v1913 = vpop.xlane.xlu0 %1912
        %1914 = vadd.xlane.f32.xlu0 %v1883
        %v1915 = vpop.xlane.xlu0 %1914
        %1916 = vadd.xlane.f32.xlu0 %v1885
        %v1917 = vpop.xlane.xlu0 %1916
        %1918 = vadd.xlane.f32.xlu0 %v1887
        %v1919 = vpop.xlane.xlu0 %1918
        %1920 = vadd.xlane.f32.xlu0 %v1889
        %v1921 = vpop.xlane.xlu0 %1920
        %1922 = vadd.xlane.f32.xlu0 %v1891
        %v1923 = vpop.xlane.xlu0 %1922
        %1924 = vadd.xlane.f32.xlu0 %v1893
        %v1925 = vpop.xlane.xlu0 %1924
        %1926 = vadd.xlane.f32.xlu0 %v1895
        %v1927 = vpop.xlane.xlu0 %1926
        %v1928 = vrcp.pop %v1897
        %v1929 = vrcp.pop %v1899
        %v1930 = vrcp.pop %v1901
        %v1931 = vrcp.pop %v1903
        %v1932 = vrcp.pop %v1905
        %v1933 = vrcp.pop %v1907
        %v1934 = vrcp.pop %v1909
        %v1935 = vrcp.pop %v1911
        %v1936 = vrcp.pop %v1913
        %v1937 = vrcp.pop %v1915
        %v1938 = vrcp.pop %v1917
        %v1939 = vrcp.pop %v1919
        %v1940 = vrcp.pop %v1921
        %v1941 = vrcp.pop %v1923
        %v1942 = vrcp.pop %v1925
        %v1943 = vrcp.pop %v1927
        %v1944 = vmul.f32 %v1865, %v1928
        %v1945 = vmul.f32 %v1867, %v1929
        %v1946 = vmul.f32 %v1869, %v1930
        %v1947 = vmul.f32 %v1871, %v1931
        %v1948 = vmul.f32 %v1873, %v1932
        %v1949 = vmul.f32 %v1875, %v1933
        %v1950 = vmul.f32 %v1877, %v1934
        %v1951 = vmul.f32 %v1879, %v1935
        %v1952 = vmul.f32 %v1881, %v1936
        %v1953 = vmul.f32 %v1883, %v1937
        %v1954 = vmul.f32 %v1885, %v1938
        %v1955 = vmul.f32 %v1887, %v1939
        %v1956 = vmul.f32 %v1889, %v1940
        %v1957 = vmul.f32 %v1891, %v1941
        %v1958 = vmul.f32 %v1893, %v1942
        %v1959 = vmul.f32 %v1895, %v1943
        %1976 = vrot.lane.b32.xlu0 %v644, 96
        %v1977 = vpop.permute.xlu0 %1976
        %1978 = vrot.lane.b32.xlu0 %v650, 96
        %v1979 = vpop.permute.xlu0 %1978
        %1980 = vrot.lane.b32.xlu0 %v656, 96
        %v1981 = vpop.permute.xlu0 %1980
        %1982 = vrot.lane.b32.xlu0 %v662, 96
        %v1983 = vpop.permute.xlu0 %1982
        %1984 = vrot.lane.b32.xlu0 %v668, 96
        %v1985 = vpop.permute.xlu0 %1984
        %1986 = vrot.lane.b32.xlu0 %v674, 96
        %v1987 = vpop.permute.xlu0 %1986
        %1988 = vrot.lane.b32.xlu0 %v680, 96
        %v1989 = vpop.permute.xlu0 %1988
        %1990 = vrot.lane.b32.xlu0 %v686, 96
        %v1991 = vpop.permute.xlu0 %1990
        %1992 = vrot.lane.b32.xlu0 %v692, 96
        %v1993 = vpop.permute.xlu0 %1992
        %1994 = vrot.lane.b32.xlu0 %v698, 96
        %v1995 = vpop.permute.xlu0 %1994
        %1996 = vrot.lane.b32.xlu0 %v704, 96
        %v1997 = vpop.permute.xlu0 %1996
        %1998 = vrot.lane.b32.xlu0 %v710, 96
        %v1999 = vpop.permute.xlu0 %1998
        %2000 = vrot.lane.b32.xlu0 %v716, 96
        %v2001 = vpop.permute.xlu0 %2000
        %2002 = vrot.lane.b32.xlu0 %v722, 96
        %v2003 = vpop.permute.xlu0 %2002
        %2004 = vrot.lane.b32.xlu0 %v728, 96
        %v2005 = vpop.permute.xlu0 %2004
        %2006 = vrot.lane.b32.xlu0 %v734, 96
        %v2007 = vpop.permute.xlu0 %2006
        %2024 = vmatprep.subr.mxu0 0.0
        %2025 = vmatpush1.msra.mxu0 %v2007
        %2026 = vmatprep.subr.mxu0 0.0
        %2027 = vmatpush1.msra.mxu0 %v2005
        %2028 = vmatprep.subr.mxu0 0.0
        %2029 = vmatpush1.msra.mxu0 %v2003
        %2030 = vmatprep.subr.mxu0 0.0
        %2031 = vmatpush1.msra.mxu0 %v2001
        %2032 = vmatprep.subr.mxu0 0.0
        %2033 = vmatpush1.msra.mxu0 %v1999
        %2034 = vmatprep.subr.mxu0 0.0
        %2035 = vmatpush1.msra.mxu0 %v1997
        %2036 = vmatprep.subr.mxu0 0.0
        %2037 = vmatpush1.msra.mxu0 %v1995
        %2038 = vmatprep.subr.mxu0 0.0
        %2039 = vmatpush1.msra.mxu0 %v1993
        %2040 = vmatprep.subr.mxu0 0.0
        %2041 = vmatpush1.msra.mxu0 %v1991
        %2042 = vmatprep.subr.mxu0 0.0
        %2043 = vmatpush1.msra.mxu0 %v1989
        %2044 = vmatprep.subr.mxu0 0.0
        %2045 = vmatpush1.msra.mxu0 %v1987
        %2046 = vmatprep.subr.mxu0 0.0
        %2047 = vmatpush1.msra.mxu0 %v1985
        %2048 = vmatprep.subr.mxu0 0.0
        %2049 = vmatpush1.msra.mxu0 %v1983
        %2050 = vmatprep.subr.mxu0 0.0
        %2051 = vmatpush1.msra.mxu0 %v1981
        %2052 = vmatprep.subr.mxu0 0.0
        %2053 = vmatpush1.msra.mxu0 %v1979
        %2054 = vmatprep.subr.mxu0 0.0
        %2055 = vmatpush1.msra.mxu0 %v1977
        %2056 = vmatprep.subr.mxu0 0.0
        %2057 = vmatpush2.msra.mxu0 0.0
        %2058 = vmatprep.subr.mxu0 0.0
        %2059 = vmatpush2.msra.mxu0 0.0
        %2060 = vmatprep.subr.mxu0 0.0
        %2061 = vmatpush2.msra.mxu0 0.0
        %2062 = vmatprep.subr.mxu0 0.0
        %2063 = vmatpush2.msra.mxu0 0.0
        %2064 = vmatprep.subr.mxu0 0.0
        %2065 = vmatpush2.msra.mxu0 0.0
        %2066 = vmatprep.subr.mxu0 0.0
        %2067 = vmatpush2.msra.mxu0 0.0
        %2068 = vmatprep.subr.mxu0 0.0
        %2069 = vmatpush2.msra.mxu0 0.0
        %2070 = vmatprep.subr.mxu0 0.0
        %2071 = vmatpush2.msra.mxu0 0.0
        %2072 = vmatprep.subr.mxu0 0.0
        %2073 = vmatpush2.msra.mxu0 0.0
        %2074 = vmatprep.subr.mxu0 0.0
        %2075 = vmatpush2.msra.mxu0 0.0
        %2076 = vmatprep.subr.mxu0 0.0
        %2077 = vmatpush2.msra.mxu0 0.0
        %2078 = vmatprep.subr.mxu0 0.0
        %2079 = vmatpush2.msra.mxu0 0.0
        %2080 = vmatprep.subr.mxu0 0.0
        %2081 = vmatpush2.msra.mxu0 0.0
        %2082 = vmatprep.subr.mxu0 0.0
        %2083 = vmatpush2.msra.mxu0 0.0
        %2084 = vmatprep.subr.mxu0 0.0
        %2085 = vmatpush2.msra.mxu0 0.0
        %2086 = vmatprep.subr.mxu0 0.0
        %2087 = vmatpush2.msra.mxu0 0.0
        %2088 = vmatprep.mubr.f32.mxu0 0.0
        %2089 = vmatmul.mubr.f32.gmra.mxu0 %v1944
        %v2090 = vpop.f32.mrf.mxu0
        %v2091 = vadd.f32 0.0, %v2090
        %v2092 = vpop.f32.mrf.mxu0
        %2093 = vmatprep.mubr.f32.mxu0 0.0
        %2094 = vmatmul.mubr.f32.gmra.mxu0 %v1945
        %v2095 = vpop.f32.mrf.mxu0
        %v2096 = vadd.f32 0.0, %v2095
        %v2097 = vpop.f32.mrf.mxu0
        %2098 = vmatprep.mubr.f32.mxu0 0.0
        %2099 = vmatmul.mubr.f32.gmra.mxu0 %v1946
        %v2100 = vpop.f32.mrf.mxu0
        %v2101 = vadd.f32 0.0, %v2100
        %v2102 = vpop.f32.mrf.mxu0
        %2103 = vmatprep.mubr.f32.mxu0 0.0
        %2104 = vmatmul.mubr.f32.gmra.mxu0 %v1947
        %v2105 = vpop.f32.mrf.mxu0
        %v2106 = vadd.f32 0.0, %v2105
        %v2107 = vpop.f32.mrf.mxu0
        %2108 = vmatprep.mubr.f32.mxu0 0.0
        %2109 = vmatmul.mubr.f32.gmra.mxu0 %v1948
        %v2110 = vpop.f32.mrf.mxu0
        %v2111 = vadd.f32 0.0, %v2110
        %v2112 = vpop.f32.mrf.mxu0
        %2113 = vmatprep.mubr.f32.mxu0 0.0
        %2114 = vmatmul.mubr.f32.gmra.mxu0 %v1949
        %v2115 = vpop.f32.mrf.mxu0
        %v2116 = vadd.f32 0.0, %v2115
        %v2117 = vpop.f32.mrf.mxu0
        %2118 = vmatprep.mubr.f32.mxu0 0.0
        %2119 = vmatmul.mubr.f32.gmra.mxu0 %v1950
        %v2120 = vpop.f32.mrf.mxu0
        %v2121 = vadd.f32 0.0, %v2120
        %v2122 = vpop.f32.mrf.mxu0
        %2123 = vmatprep.mubr.f32.mxu0 0.0
        %2124 = vmatmul.mubr.f32.gmra.mxu0 %v1951
        %v2125 = vpop.f32.mrf.mxu0
        %v2126 = vadd.f32 0.0, %v2125
        %v2127 = vpop.f32.mrf.mxu0
        %2128 = vmatprep.mubr.f32.mxu0 0.0
        %2129 = vmatmul.mubr.f32.gmra.mxu0 %v1952
        %v2130 = vpop.f32.mrf.mxu0
        %v2131 = vadd.f32 0.0, %v2130
        %v2132 = vpop.f32.mrf.mxu0
        %2133 = vmatprep.mubr.f32.mxu0 0.0
        %2134 = vmatmul.mubr.f32.gmra.mxu0 %v1953
        %v2135 = vpop.f32.mrf.mxu0
        %v2136 = vadd.f32 0.0, %v2135
        %v2137 = vpop.f32.mrf.mxu0
        %2138 = vmatprep.mubr.f32.mxu0 0.0
        %2139 = vmatmul.mubr.f32.gmra.mxu0 %v1954
        %v2140 = vpop.f32.mrf.mxu0
        %v2141 = vadd.f32 0.0, %v2140
        %v2142 = vpop.f32.mrf.mxu0
        %2143 = vmatprep.mubr.f32.mxu0 0.0
        %2144 = vmatmul.mubr.f32.gmra.mxu0 %v1955
        %v2145 = vpop.f32.mrf.mxu0
        %v2146 = vadd.f32 0.0, %v2145
        %v2147 = vpop.f32.mrf.mxu0
        %2148 = vmatprep.mubr.f32.mxu0 0.0
        %2149 = vmatmul.mubr.f32.gmra.mxu0 %v1956
        %v2150 = vpop.f32.mrf.mxu0
        %v2151 = vadd.f32 0.0, %v2150
        %v2152 = vpop.f32.mrf.mxu0
        %2153 = vmatprep.mubr.f32.mxu0 0.0
        %2154 = vmatmul.mubr.f32.gmra.mxu0 %v1957
        %v2155 = vpop.f32.mrf.mxu0
        %v2156 = vadd.f32 0.0, %v2155
        %v2157 = vpop.f32.mrf.mxu0
        %2158 = vmatprep.mubr.f32.mxu0 0.0
        %2159 = vmatmul.mubr.f32.gmra.mxu0 %v1958
        %v2160 = vpop.f32.mrf.mxu0
        %v2161 = vadd.f32 0.0, %v2160
        %v2162 = vpop.f32.mrf.mxu0
        %2163 = vmatprep.mubr.f32.mxu0 0.0
        %2164 = vmatmul.mubr.f32.gmra.mxu0 %v1959
        %v2165 = vpop.f32.mrf.mxu0
        %v2166 = vadd.f32 0.0, %v2165
        %v2167 = vpop.f32.mrf.mxu0
        %2168 = vdwg.mxu0
        %2169 = vrot.lane.b32.xlu0 %v481, 64
        %v2170 = vpop.permute.xlu0 %2169
        %2171 = vrot.lane.b32.xlu0 %v487, 64
        %v2172 = vpop.permute.xlu0 %2171
        %2173 = vrot.lane.b32.xlu0 %v493, 64
        %v2174 = vpop.permute.xlu0 %2173
        %2175 = vrot.lane.b32.xlu0 %v499, 64
        %v2176 = vpop.permute.xlu0 %2175
        %2177 = vrot.lane.b32.xlu0 %v505, 64
        %v2178 = vpop.permute.xlu0 %2177
        %2179 = vrot.lane.b32.xlu0 %v511, 64
        %v2180 = vpop.permute.xlu0 %2179
        %2181 = vrot.lane.b32.xlu0 %v517, 64
        %v2182 = vpop.permute.xlu0 %2181
        %2183 = vrot.lane.b32.xlu0 %v523, 64
        %v2184 = vpop.permute.xlu0 %2183
        %2185 = vrot.lane.b32.xlu0 %v529, 64
        %v2186 = vpop.permute.xlu0 %2185
        %2187 = vrot.lane.b32.xlu0 %v535, 64
        %v2188 = vpop.permute.xlu0 %2187
        %2189 = vrot.lane.b32.xlu0 %v541, 64
        %v2190 = vpop.permute.xlu0 %2189
        %2191 = vrot.lane.b32.xlu0 %v547, 64
        %v2192 = vpop.permute.xlu0 %2191
        %2193 = vrot.lane.b32.xlu0 %v553, 64
        %v2194 = vpop.permute.xlu0 %2193
        %2195 = vrot.lane.b32.xlu0 %v559, 64
        %v2196 = vpop.permute.xlu0 %2195
        %2197 = vrot.lane.b32.xlu0 %v565, 64
        %v2198 = vpop.permute.xlu0 %2197
        %2199 = vrot.lane.b32.xlu0 %v571, 64
        %v2200 = vpop.permute.xlu0 %2199
        %v2201 = vsel %vm964, %v2170, 0
        %v2203 = vsel %vm964, %v2172, 0
        %v2205 = vsel %vm964, %v2174, 0
        %v2207 = vsel %vm964, %v2176, 0
        %v2209 = vsel %vm964, %v2178, 0
        %v2211 = vsel %vm964, %v2180, 0
        %v2213 = vsel %vm964, %v2182, 0
        %v2215 = vsel %vm964, %v2184, 0
        %v2217 = vsel %vm964, %v2186, 0
        %v2219 = vsel %vm964, %v2188, 0
        %v2221 = vsel %vm964, %v2190, 0
        %v2223 = vsel %vm964, %v2192, 0
        %v2225 = vsel %vm964, %v2194, 0
        %v2227 = vsel %vm964, %v2196, 0
        %v2229 = vsel %vm964, %v2198, 0
        %v2231 = vsel %vm964, %v2200, 0
        %v2234 = vsel %vm964, %v642, 0
        %v2237 = vsel %vm964, %v648, 0
        %v2240 = vsel %vm964, %v654, 0
        %v2243 = vsel %vm964, %v660, 0
        %v2246 = vsel %vm964, %v666, 0
        %v2249 = vsel %vm964, %v672, 0
        %v2252 = vsel %vm964, %v678, 0
        %v2255 = vsel %vm964, %v684, 0
        %v2258 = vsel %vm964, %v690, 0
        %v2261 = vsel %vm964, %v696, 0
        %v2264 = vsel %vm964, %v702, 0
        %v2267 = vsel %vm964, %v708, 0
        %v2270 = vsel %vm964, %v714, 0
        %v2273 = vsel %vm964, %v720, 0
        %v2276 = vsel %vm964, %v726, 0
        %v2279 = vsel %vm964, %v732, 0
        %2281 = vmatprep.subr.mxu0 0.0
        %2282 = vmatpush1.xpose.msra.mxu0 %v2279
        %2283 = vmatprep.subr.mxu0 0.0
        %2284 = vmatpush1.xpose.msra.mxu0 %v2276
        %2285 = vmatprep.subr.mxu0 0.0
        %2286 = vmatpush1.xpose.msra.mxu0 %v2273
        %2287 = vmatprep.subr.mxu0 0.0
        %2288 = vmatpush1.xpose.msra.mxu0 %v2270
        %2289 = vmatprep.subr.mxu0 0.0
        %2290 = vmatpush1.xpose.msra.mxu0 %v2267
        %2291 = vmatprep.subr.mxu0 0.0
        %2292 = vmatpush1.xpose.msra.mxu0 %v2264
        %2293 = vmatprep.subr.mxu0 0.0
        %2294 = vmatpush1.xpose.msra.mxu0 %v2261
        %2295 = vmatprep.subr.mxu0 0.0
        %2296 = vmatpush1.xpose.msra.mxu0 %v2258
        %2297 = vmatprep.subr.mxu0 0.0
        %2298 = vmatpush1.xpose.msra.mxu0 %v2255
        %2299 = vmatprep.subr.mxu0 0.0
        %2300 = vmatpush1.xpose.msra.mxu0 %v2252
        %2301 = vmatprep.subr.mxu0 0.0
        %2302 = vmatpush1.xpose.msra.mxu0 %v2249
        %2303 = vmatprep.subr.mxu0 0.0
        %2304 = vmatpush1.xpose.msra.mxu0 %v2246
        %2305 = vmatprep.subr.mxu0 0.0
        %2306 = vmatpush1.xpose.msra.mxu0 %v2243
        %2307 = vmatprep.subr.mxu0 0.0
        %2308 = vmatpush1.xpose.msra.mxu0 %v2240
        %2309 = vmatprep.subr.mxu0 0.0
        %2310 = vmatpush1.xpose.msra.mxu0 %v2237
        %2311 = vmatprep.subr.mxu0 0.0
        %2312 = vmatpush1.xpose.msra.mxu0 %v2234
        %2313 = vmatprep.subr.mxu0 0.0
        %2314 = vmatpush2.xpose.msra.mxu0 0.0
        %2315 = vmatprep.subr.mxu0 0.0
        %2316 = vmatpush2.xpose.msra.mxu0 0.0
        %2317 = vmatprep.subr.mxu0 0.0
        %2318 = vmatpush2.xpose.msra.mxu0 0.0
        %2319 = vmatprep.subr.mxu0 0.0
        %2320 = vmatpush2.xpose.msra.mxu0 0.0
        %2321 = vmatprep.subr.mxu0 0.0
        %2322 = vmatpush2.xpose.msra.mxu0 0.0
        %2323 = vmatprep.subr.mxu0 0.0
        %2324 = vmatpush2.xpose.msra.mxu0 0.0
        %2325 = vmatprep.subr.mxu0 0.0
        %2326 = vmatpush2.xpose.msra.mxu0 0.0
        %2327 = vmatprep.subr.mxu0 0.0
        %2328 = vmatpush2.xpose.msra.mxu0 0.0
        %2329 = vmatprep.subr.mxu0 0.0
        %2330 = vmatpush2.xpose.msra.mxu0 0.0
        %2331 = vmatprep.subr.mxu0 0.0
        %2332 = vmatpush2.xpose.msra.mxu0 0.0
        %2333 = vmatprep.subr.mxu0 0.0
        %2334 = vmatpush2.xpose.msra.mxu0 0.0
        %2335 = vmatprep.subr.mxu0 0.0
        %2336 = vmatpush2.xpose.msra.mxu0 0.0
        %2337 = vmatprep.subr.mxu0 0.0
        %2338 = vmatpush2.xpose.msra.mxu0 0.0
        %2339 = vmatprep.subr.mxu0 0.0
        %2340 = vmatpush2.xpose.msra.mxu0 0.0
        %2341 = vmatprep.subr.mxu0 0.0
        %2342 = vmatpush2.xpose.msra.mxu0 0.0
        %2343 = vmatprep.subr.mxu0 0.0
        %2344 = vmatpush2.xpose.msra.mxu0 0.0
        %2345 = vmatprep.mubr.f32.mxu0 0.0
        %2346 = vmatmul.mubr.f32.gmra.mxu0 %v2201
        %v2347 = vpop.f32.mrf.mxu0
        %v2348 = vadd.f32 0.0, %v2347
        %v2349 = vpop.f32.mrf.mxu0
        %2350 = vmatprep.mubr.f32.mxu0 0.0
        %2351 = vmatmul.mubr.f32.gmra.mxu0 %v2203
        %v2352 = vpop.f32.mrf.mxu0
        %v2353 = vadd.f32 0.0, %v2352
        %v2354 = vpop.f32.mrf.mxu0
        %2355 = vmatprep.mubr.f32.mxu0 0.0
        %2356 = vmatmul.mubr.f32.gmra.mxu0 %v2205
        %v2357 = vpop.f32.mrf.mxu0
        %v2358 = vadd.f32 0.0, %v2357
        %v2359 = vpop.f32.mrf.mxu0
        %2360 = vmatprep.mubr.f32.mxu0 0.0
        %2361 = vmatmul.mubr.f32.gmra.mxu0 %v2207
        %v2362 = vpop.f32.mrf.mxu0
        %v2363 = vadd.f32 0.0, %v2362
        %v2364 = vpop.f32.mrf.mxu0
        %2365 = vmatprep.mubr.f32.mxu0 0.0
        %2366 = vmatmul.mubr.f32.gmra.mxu0 %v2209
        %v2367 = vpop.f32.mrf.mxu0
        %v2368 = vadd.f32 0.0, %v2367
        %v2369 = vpop.f32.mrf.mxu0
        %2370 = vmatprep.mubr.f32.mxu0 0.0
        %2371 = vmatmul.mubr.f32.gmra.mxu0 %v2211
        %v2372 = vpop.f32.mrf.mxu0
        %v2373 = vadd.f32 0.0, %v2372
        %v2374 = vpop.f32.mrf.mxu0
        %2375 = vmatprep.mubr.f32.mxu0 0.0
        %2376 = vmatmul.mubr.f32.gmra.mxu0 %v2213
        %v2377 = vpop.f32.mrf.mxu0
        %v2378 = vadd.f32 0.0, %v2377
        %v2379 = vpop.f32.mrf.mxu0
        %2380 = vmatprep.mubr.f32.mxu0 0.0
        %2381 = vmatmul.mubr.f32.gmra.mxu0 %v2215
        %v2382 = vpop.f32.mrf.mxu0
        %v2383 = vadd.f32 0.0, %v2382
        %v2384 = vpop.f32.mrf.mxu0
        %2385 = vmatprep.mubr.f32.mxu0 0.0
        %2386 = vmatmul.mubr.f32.gmra.mxu0 %v2217
        %v2387 = vpop.f32.mrf.mxu0
        %v2388 = vadd.f32 0.0, %v2387
        %v2389 = vpop.f32.mrf.mxu0
        %2390 = vmatprep.mubr.f32.mxu0 0.0
        %2391 = vmatmul.mubr.f32.gmra.mxu0 %v2219
        %v2392 = vpop.f32.mrf.mxu0
        %v2393 = vadd.f32 0.0, %v2392
        %v2394 = vpop.f32.mrf.mxu0
        %2395 = vmatprep.mubr.f32.mxu0 0.0
        %2396 = vmatmul.mubr.f32.gmra.mxu0 %v2221
        %v2397 = vpop.f32.mrf.mxu0
        %v2398 = vadd.f32 0.0, %v2397
        %v2399 = vpop.f32.mrf.mxu0
        %2400 = vmatprep.mubr.f32.mxu0 0.0
        %2401 = vmatmul.mubr.f32.gmra.mxu0 %v2223
        %v2402 = vpop.f32.mrf.mxu0
        %v2403 = vadd.f32 0.0, %v2402
        %v2404 = vpop.f32.mrf.mxu0
        %2405 = vmatprep.mubr.f32.mxu0 0.0
        %2406 = vmatmul.mubr.f32.gmra.mxu0 %v2225
        %v2407 = vpop.f32.mrf.mxu0
        %v2408 = vadd.f32 0.0, %v2407
        %v2409 = vpop.f32.mrf.mxu0
        %2410 = vmatprep.mubr.f32.mxu0 0.0
        %2411 = vmatmul.mubr.f32.gmra.mxu0 %v2227
        %v2412 = vpop.f32.mrf.mxu0
        %v2413 = vadd.f32 0.0, %v2412
        %v2414 = vpop.f32.mrf.mxu0
        %2415 = vmatprep.mubr.f32.mxu0 0.0
        %2416 = vmatmul.mubr.f32.gmra.mxu0 %v2229
        %v2417 = vpop.f32.mrf.mxu0
        %v2418 = vadd.f32 0.0, %v2417
        %v2419 = vpop.f32.mrf.mxu0
        %2420 = vmatprep.mubr.f32.mxu0 0.0
        %2421 = vmatmul.mubr.f32.gmra.mxu0 %v2231
        %v2422 = vpop.f32.mrf.mxu0
        %v2423 = vadd.f32 0.0, %v2422
        %v2424 = vpop.f32.mrf.mxu0
        %2425 = vdwg.mxu0
        %v2426 = vmul.f32 %v2348, 0.17677669
        %v2427 = vmul.f32 %v2353, 0.17677669
        %v2428 = vmul.f32 %v2358, 0.17677669
        %v2429 = vmul.f32 %v2363, 0.17677669
        %v2430 = vmul.f32 %v2368, 0.17677669
        %v2431 = vmul.f32 %v2373, 0.17677669
        %v2432 = vmul.f32 %v2378, 0.17677669
        %v2433 = vmul.f32 %v2383, 0.17677669
        %v2434 = vmul.f32 %v2388, 0.17677669
        %v2435 = vmul.f32 %v2393, 0.17677669
        %v2436 = vmul.f32 %v2398, 0.17677669
        %v2437 = vmul.f32 %v2403, 0.17677669
        %v2438 = vmul.f32 %v2408, 0.17677669
        %v2439 = vmul.f32 %v2413, 0.17677669
        %v2440 = vmul.f32 %v2418, 0.17677669
        %v2441 = vmul.f32 %v2423, 0.17677669
        %v2442 = vsel %vm900, %v2426, -inf
        %v2443 = vsel %vm901, %v2427, -inf
        %v2444 = vsel %vm902, %v2428, -inf
        %v2445 = vsel %vm903, %v2429, -inf
        %v2446 = vsel %vm904, %v2430, -inf
        %v2447 = vsel %vm905, %v2431, -inf
        %v2448 = vsel %vm906, %v2432, -inf
        %v2449 = vsel %vm907, %v2433, -inf
        %v2450 = vsel %vm908, %v2434, -inf
        %v2451 = vsel %vm909, %v2435, -inf
        %v2452 = vsel %vm910, %v2436, -inf
        %v2453 = vsel %vm911, %v2437, -inf
        %v2454 = vsel %vm912, %v2438, -inf
        %v2455 = vsel %vm913, %v2439, -inf
        %v2456 = vsel %vm914, %v2440, -inf
        %v2457 = vsel %vm915, %v2441, -inf
        %2458 = vmax.xlane.f32.xlu0 %v2442
        %v2459 = vpop.xlane.xlu0 %2458
        %2460 = vmax.xlane.f32.xlu0 %v2443
        %v2461 = vpop.xlane.xlu0 %2460
        %2462 = vmax.xlane.f32.xlu0 %v2444
        %v2463 = vpop.xlane.xlu0 %2462
        %2464 = vmax.xlane.f32.xlu0 %v2445
        %v2465 = vpop.xlane.xlu0 %2464
        %2466 = vmax.xlane.f32.xlu0 %v2446
        %v2467 = vpop.xlane.xlu0 %2466
        %2468 = vmax.xlane.f32.xlu0 %v2447
        %v2469 = vpop.xlane.xlu0 %2468
        %2470 = vmax.xlane.f32.xlu0 %v2448
        %v2471 = vpop.xlane.xlu0 %2470
        %2472 = vmax.xlane.f32.xlu0 %v2449
        %v2473 = vpop.xlane.xlu0 %2472
        %2474 = vmax.xlane.f32.xlu0 %v2450
        %v2475 = vpop.xlane.xlu0 %2474
        %2476 = vmax.xlane.f32.xlu0 %v2451
        %v2477 = vpop.xlane.xlu0 %2476
        %2478 = vmax.xlane.f32.xlu0 %v2452
        %v2479 = vpop.xlane.xlu0 %2478
        %2480 = vmax.xlane.f32.xlu0 %v2453
        %v2481 = vpop.xlane.xlu0 %2480
        %2482 = vmax.xlane.f32.xlu0 %v2454
        %v2483 = vpop.xlane.xlu0 %2482
        %2484 = vmax.xlane.f32.xlu0 %v2455
        %v2485 = vpop.xlane.xlu0 %2484
        %2486 = vmax.xlane.f32.xlu0 %v2456
        %v2487 = vpop.xlane.xlu0 %2486
        %2488 = vmax.xlane.f32.xlu0 %v2457
        %v2489 = vpop.xlane.xlu0 %2488
        %v2490 = vsub.f32 %v2442, %v2459
        %v2491 = vsub.f32 %v2443, %v2461
        %v2492 = vsub.f32 %v2444, %v2463
        %v2493 = vsub.f32 %v2445, %v2465
        %v2494 = vsub.f32 %v2446, %v2467
        %v2495 = vsub.f32 %v2447, %v2469
        %v2496 = vsub.f32 %v2448, %v2471
        %v2497 = vsub.f32 %v2449, %v2473
        %v2498 = vsub.f32 %v2450, %v2475
        %v2499 = vsub.f32 %v2451, %v2477
        %v2500 = vsub.f32 %v2452, %v2479
        %v2501 = vsub.f32 %v2453, %v2481
        %v2502 = vsub.f32 %v2454, %v2483
        %v2503 = vsub.f32 %v2455, %v2485
        %v2504 = vsub.f32 %v2456, %v2487
        %v2505 = vsub.f32 %v2457, %v2489
        %v2506 = vmul.f32 %v2490, 1.442695
        %v2507 = vpow.pop %v2506
        %v2508 = vmul.f32 %v2491, 1.442695
        %v2509 = vpow.pop %v2508
        %v2510 = vmul.f32 %v2492, 1.442695
        %v2511 = vpow.pop %v2510
        %v2512 = vmul.f32 %v2493, 1.442695
        %v2513 = vpow.pop %v2512
        %v2514 = vmul.f32 %v2494, 1.442695
        %v2515 = vpow.pop %v2514
        %v2516 = vmul.f32 %v2495, 1.442695
        %v2517 = vpow.pop %v2516
        %v2518 = vmul.f32 %v2496, 1.442695
        %v2519 = vpow.pop %v2518
        %v2520 = vmul.f32 %v2497, 1.442695
        %v2521 = vpow.pop %v2520
        %v2522 = vmul.f32 %v2498, 1.442695
        %v2523 = vpow.pop %v2522
        %v2524 = vmul.f32 %v2499, 1.442695
        %v2525 = vpow.pop %v2524
        %v2526 = vmul.f32 %v2500, 1.442695
        %v2527 = vpow.pop %v2526
        %v2528 = vmul.f32 %v2501, 1.442695
        %v2529 = vpow.pop %v2528
        %v2530 = vmul.f32 %v2502, 1.442695
        %v2531 = vpow.pop %v2530
        %v2532 = vmul.f32 %v2503, 1.442695
        %v2533 = vpow.pop %v2532
        %v2534 = vmul.f32 %v2504, 1.442695
        %v2535 = vpow.pop %v2534
        %v2536 = vmul.f32 %v2505, 1.442695
        %v2537 = vpow.pop %v2536
        %2538 = vadd.xlane.f32.xlu0 %v2507
        %v2539 = vpop.xlane.xlu0 %2538
        %2540 = vadd.xlane.f32.xlu0 %v2509
        %v2541 = vpop.xlane.xlu0 %2540
        %2542 = vadd.xlane.f32.xlu0 %v2511
        %v2543 = vpop.xlane.xlu0 %2542
        %2544 = vadd.xlane.f32.xlu0 %v2513
        %v2545 = vpop.xlane.xlu0 %2544
        %2546 = vadd.xlane.f32.xlu0 %v2515
        %v2547 = vpop.xlane.xlu0 %2546
        %2548 = vadd.xlane.f32.xlu0 %v2517
        %v2549 = vpop.xlane.xlu0 %2548
        %2550 = vadd.xlane.f32.xlu0 %v2519
        %v2551 = vpop.xlane.xlu0 %2550
        %2552 = vadd.xlane.f32.xlu0 %v2521
        %v2553 = vpop.xlane.xlu0 %2552
        %2554 = vadd.xlane.f32.xlu0 %v2523
        %v2555 = vpop.xlane.xlu0 %2554
        %2556 = vadd.xlane.f32.xlu0 %v2525
        %v2557 = vpop.xlane.xlu0 %2556
        %2558 = vadd.xlane.f32.xlu0 %v2527
        %v2559 = vpop.xlane.xlu0 %2558
        %2560 = vadd.xlane.f32.xlu0 %v2529
        %v2561 = vpop.xlane.xlu0 %2560
        %2562 = vadd.xlane.f32.xlu0 %v2531
        %v2563 = vpop.xlane.xlu0 %2562
        %2564 = vadd.xlane.f32.xlu0 %v2533
        %v2565 = vpop.xlane.xlu0 %2564
        %2566 = vadd.xlane.f32.xlu0 %v2535
        %v2567 = vpop.xlane.xlu0 %2566
        %2568 = vadd.xlane.f32.xlu0 %v2537
        %v2569 = vpop.xlane.xlu0 %2568
        %v2570 = vrcp.pop %v2539
        %v2571 = vrcp.pop %v2541
        %v2572 = vrcp.pop %v2543
        %v2573 = vrcp.pop %v2545
        %v2574 = vrcp.pop %v2547
        %v2575 = vrcp.pop %v2549
        %v2576 = vrcp.pop %v2551
        %v2577 = vrcp.pop %v2553
        %v2578 = vrcp.pop %v2555
        %v2579 = vrcp.pop %v2557
        %v2580 = vrcp.pop %v2559
        %v2581 = vrcp.pop %v2561
        %v2582 = vrcp.pop %v2563
        %v2583 = vrcp.pop %v2565
        %v2584 = vrcp.pop %v2567
        %v2585 = vrcp.pop %v2569
        %v2586 = vmul.f32 %v2507, %v2570
        %v2587 = vmul.f32 %v2509, %v2571
        %v2588 = vmul.f32 %v2511, %v2572
        %v2589 = vmul.f32 %v2513, %v2573
        %v2590 = vmul.f32 %v2515, %v2574
        %v2591 = vmul.f32 %v2517, %v2575
        %v2592 = vmul.f32 %v2519, %v2576
        %v2593 = vmul.f32 %v2521, %v2577
        %v2594 = vmul.f32 %v2523, %v2578
        %v2595 = vmul.f32 %v2525, %v2579
        %v2596 = vmul.f32 %v2527, %v2580
        %v2597 = vmul.f32 %v2529, %v2581
        %v2598 = vmul.f32 %v2531, %v2582
        %v2599 = vmul.f32 %v2533, %v2583
        %v2600 = vmul.f32 %v2535, %v2584
        %v2601 = vmul.f32 %v2537, %v2585
        %2602 = vrot.lane.b32.xlu0 %v644, 64
        %v2603 = vpop.permute.xlu0 %2602
        %2604 = vrot.lane.b32.xlu0 %v650, 64
        %v2605 = vpop.permute.xlu0 %2604
        %2606 = vrot.lane.b32.xlu0 %v656, 64
        %v2607 = vpop.permute.xlu0 %2606
        %2608 = vrot.lane.b32.xlu0 %v662, 64
        %v2609 = vpop.permute.xlu0 %2608
        %2610 = vrot.lane.b32.xlu0 %v668, 64
        %v2611 = vpop.permute.xlu0 %2610
        %2612 = vrot.lane.b32.xlu0 %v674, 64
        %v2613 = vpop.permute.xlu0 %2612
        %2614 = vrot.lane.b32.xlu0 %v680, 64
        %v2615 = vpop.permute.xlu0 %2614
        %2616 = vrot.lane.b32.xlu0 %v686, 64
        %v2617 = vpop.permute.xlu0 %2616
        %2618 = vrot.lane.b32.xlu0 %v692, 64
        %v2619 = vpop.permute.xlu0 %2618
        %2620 = vrot.lane.b32.xlu0 %v698, 64
        %v2621 = vpop.permute.xlu0 %2620
        %2622 = vrot.lane.b32.xlu0 %v704, 64
        %v2623 = vpop.permute.xlu0 %2622
        %2624 = vrot.lane.b32.xlu0 %v710, 64
        %v2625 = vpop.permute.xlu0 %2624
        %2626 = vrot.lane.b32.xlu0 %v716, 64
        %v2627 = vpop.permute.xlu0 %2626
        %2628 = vrot.lane.b32.xlu0 %v722, 64
        %v2629 = vpop.permute.xlu0 %2628
        %2630 = vrot.lane.b32.xlu0 %v728, 64
        %v2631 = vpop.permute.xlu0 %2630
        %2632 = vrot.lane.b32.xlu0 %v734, 64
        %v2633 = vpop.permute.xlu0 %2632
        %2650 = vmatprep.subr.mxu0 0.0
        %2651 = vmatpush1.msra.mxu0 %v2633
        %2652 = vmatprep.subr.mxu0 0.0
        %2653 = vmatpush1.msra.mxu0 %v2631
        %2654 = vmatprep.subr.mxu0 0.0
        %2655 = vmatpush1.msra.mxu0 %v2629
        %2656 = vmatprep.subr.mxu0 0.0
        %2657 = vmatpush1.msra.mxu0 %v2627
        %2658 = vmatprep.subr.mxu0 0.0
        %2659 = vmatpush1.msra.mxu0 %v2625
        %2660 = vmatprep.subr.mxu0 0.0
        %2661 = vmatpush1.msra.mxu0 %v2623
        %2662 = vmatprep.subr.mxu0 0.0
        %2663 = vmatpush1.msra.mxu0 %v2621
        %2664 = vmatprep.subr.mxu0 0.0
        %2665 = vmatpush1.msra.mxu0 %v2619
        %2666 = vmatprep.subr.mxu0 0.0
        %2667 = vmatpush1.msra.mxu0 %v2617
        %2668 = vmatprep.subr.mxu0 0.0
        %2669 = vmatpush1.msra.mxu0 %v2615
        %2670 = vmatprep.subr.mxu0 0.0
        %2671 = vmatpush1.msra.mxu0 %v2613
        %2672 = vmatprep.subr.mxu0 0.0
        %2673 = vmatpush1.msra.mxu0 %v2611
        %2674 = vmatprep.subr.mxu0 0.0
        %2675 = vmatpush1.msra.mxu0 %v2609
        %2676 = vmatprep.subr.mxu0 0.0
        %2677 = vmatpush1.msra.mxu0 %v2607
        %2678 = vmatprep.subr.mxu0 0.0
        %2679 = vmatpush1.msra.mxu0 %v2605
        %2680 = vmatprep.subr.mxu0 0.0
        %2681 = vmatpush1.msra.mxu0 %v2603
        %2682 = vmatprep.subr.mxu0 0.0
        %2683 = vmatpush2.msra.mxu0 0.0
        %2684 = vmatprep.subr.mxu0 0.0
        %2685 = vmatpush2.msra.mxu0 0.0
        %2686 = vmatprep.subr.mxu0 0.0
        %2687 = vmatpush2.msra.mxu0 0.0
        %2688 = vmatprep.subr.mxu0 0.0
        %2689 = vmatpush2.msra.mxu0 0.0
        %2690 = vmatprep.subr.mxu0 0.0
        %2691 = vmatpush2.msra.mxu0 0.0
        %2692 = vmatprep.subr.mxu0 0.0
        %2693 = vmatpush2.msra.mxu0 0.0
        %2694 = vmatprep.subr.mxu0 0.0
        %2695 = vmatpush2.msra.mxu0 0.0
        %2696 = vmatprep.subr.mxu0 0.0
        %2697 = vmatpush2.msra.mxu0 0.0
        %2698 = vmatprep.subr.mxu0 0.0
        %2699 = vmatpush2.msra.mxu0 0.0
        %2700 = vmatprep.subr.mxu0 0.0
        %2701 = vmatpush2.msra.mxu0 0.0
        %2702 = vmatprep.subr.mxu0 0.0
        %2703 = vmatpush2.msra.mxu0 0.0
        %2704 = vmatprep.subr.mxu0 0.0
        %2705 = vmatpush2.msra.mxu0 0.0
        %2706 = vmatprep.subr.mxu0 0.0
        %2707 = vmatpush2.msra.mxu0 0.0
        %2708 = vmatprep.subr.mxu0 0.0
        %2709 = vmatpush2.msra.mxu0 0.0
        %2710 = vmatprep.subr.mxu0 0.0
        %2711 = vmatpush2.msra.mxu0 0.0
        %2712 = vmatprep.subr.mxu0 0.0
        %2713 = vmatpush2.msra.mxu0 0.0
        %2714 = vmatprep.mubr.f32.mxu0 0.0
        %2715 = vmatmul.mubr.f32.gmra.mxu0 %v2586
        %v2716 = vpop.f32.mrf.mxu0
        %v2717 = vadd.f32 0.0, %v2716
        %v2718 = vpop.f32.mrf.mxu0
        %2719 = vmatprep.mubr.f32.mxu0 0.0
        %2720 = vmatmul.mubr.f32.gmra.mxu0 %v2587
        %v2721 = vpop.f32.mrf.mxu0
        %v2722 = vadd.f32 0.0, %v2721
        %v2723 = vpop.f32.mrf.mxu0
        %2724 = vmatprep.mubr.f32.mxu0 0.0
        %2725 = vmatmul.mubr.f32.gmra.mxu0 %v2588
        %v2726 = vpop.f32.mrf.mxu0
        %v2727 = vadd.f32 0.0, %v2726
        %v2728 = vpop.f32.mrf.mxu0
        %2729 = vmatprep.mubr.f32.mxu0 0.0
        %2730 = vmatmul.mubr.f32.gmra.mxu0 %v2589
        %v2731 = vpop.f32.mrf.mxu0
        %v2732 = vadd.f32 0.0, %v2731
        %v2733 = vpop.f32.mrf.mxu0
        %2734 = vmatprep.mubr.f32.mxu0 0.0
        %2735 = vmatmul.mubr.f32.gmra.mxu0 %v2590
        %v2736 = vpop.f32.mrf.mxu0
        %v2737 = vadd.f32 0.0, %v2736
        %v2738 = vpop.f32.mrf.mxu0
        %2739 = vmatprep.mubr.f32.mxu0 0.0
        %2740 = vmatmul.mubr.f32.gmra.mxu0 %v2591
        %v2741 = vpop.f32.mrf.mxu0
        %v2742 = vadd.f32 0.0, %v2741
        %v2743 = vpop.f32.mrf.mxu0
        %2744 = vmatprep.mubr.f32.mxu0 0.0
        %2745 = vmatmul.mubr.f32.gmra.mxu0 %v2592
        %v2746 = vpop.f32.mrf.mxu0
        %v2747 = vadd.f32 0.0, %v2746
        %v2748 = vpop.f32.mrf.mxu0
        %2749 = vmatprep.mubr.f32.mxu0 0.0
        %2750 = vmatmul.mubr.f32.gmra.mxu0 %v2593
        %v2751 = vpop.f32.mrf.mxu0
        %v2752 = vadd.f32 0.0, %v2751
        %v2753 = vpop.f32.mrf.mxu0
        %2754 = vmatprep.mubr.f32.mxu0 0.0
        %2755 = vmatmul.mubr.f32.gmra.mxu0 %v2594
        %v2756 = vpop.f32.mrf.mxu0
        %v2757 = vadd.f32 0.0, %v2756
        %v2758 = vpop.f32.mrf.mxu0
        %2759 = vmatprep.mubr.f32.mxu0 0.0
        %2760 = vmatmul.mubr.f32.gmra.mxu0 %v2595
        %v2761 = vpop.f32.mrf.mxu0
        %v2762 = vadd.f32 0.0, %v2761
        %v2763 = vpop.f32.mrf.mxu0
        %2764 = vmatprep.mubr.f32.mxu0 0.0
        %2765 = vmatmul.mubr.f32.gmra.mxu0 %v2596
        %v2766 = vpop.f32.mrf.mxu0
        %v2767 = vadd.f32 0.0, %v2766
        %v2768 = vpop.f32.mrf.mxu0
        %2769 = vmatprep.mubr.f32.mxu0 0.0
        %2770 = vmatmul.mubr.f32.gmra.mxu0 %v2597
        %v2771 = vpop.f32.mrf.mxu0
        %v2772 = vadd.f32 0.0, %v2771
        %v2773 = vpop.f32.mrf.mxu0
        %2774 = vmatprep.mubr.f32.mxu0 0.0
        %2775 = vmatmul.mubr.f32.gmra.mxu0 %v2598
        %v2776 = vpop.f32.mrf.mxu0
        %v2777 = vadd.f32 0.0, %v2776
        %v2778 = vpop.f32.mrf.mxu0
        %2779 = vmatprep.mubr.f32.mxu0 0.0
        %2780 = vmatmul.mubr.f32.gmra.mxu0 %v2599
        %v2781 = vpop.f32.mrf.mxu0
        %v2782 = vadd.f32 0.0, %v2781
        %v2783 = vpop.f32.mrf.mxu0
        %2784 = vmatprep.mubr.f32.mxu0 0.0
        %2785 = vmatmul.mubr.f32.gmra.mxu0 %v2600
        %v2786 = vpop.f32.mrf.mxu0
        %v2787 = vadd.f32 0.0, %v2786
        %v2788 = vpop.f32.mrf.mxu0
        %2789 = vmatprep.mubr.f32.mxu0 0.0
        %2790 = vmatmul.mubr.f32.gmra.mxu0 %v2601
        %v2791 = vpop.f32.mrf.mxu0
        %v2792 = vadd.f32 0.0, %v2791
        %v2793 = vpop.f32.mrf.mxu0
        %2794 = vdwg.mxu0
        %2795 = vrot.lane.b32.xlu0 %v481, 32
        %v2796 = vpop.permute.xlu0 %2795
        %2797 = vrot.lane.b32.xlu0 %v487, 32
        %v2798 = vpop.permute.xlu0 %2797
        %2799 = vrot.lane.b32.xlu0 %v493, 32
        %v2800 = vpop.permute.xlu0 %2799
        %2801 = vrot.lane.b32.xlu0 %v499, 32
        %v2802 = vpop.permute.xlu0 %2801
        %2803 = vrot.lane.b32.xlu0 %v505, 32
        %v2804 = vpop.permute.xlu0 %2803
        %2805 = vrot.lane.b32.xlu0 %v511, 32
        %v2806 = vpop.permute.xlu0 %2805
        %2807 = vrot.lane.b32.xlu0 %v517, 32
        %v2808 = vpop.permute.xlu0 %2807
        %2809 = vrot.lane.b32.xlu0 %v523, 32
        %v2810 = vpop.permute.xlu0 %2809
        %2811 = vrot.lane.b32.xlu0 %v529, 32
        %v2812 = vpop.permute.xlu0 %2811
        %2813 = vrot.lane.b32.xlu0 %v535, 32
        %v2814 = vpop.permute.xlu0 %2813
        %2815 = vrot.lane.b32.xlu0 %v541, 32
        %v2816 = vpop.permute.xlu0 %2815
        %2817 = vrot.lane.b32.xlu0 %v547, 32
        %v2818 = vpop.permute.xlu0 %2817
        %2819 = vrot.lane.b32.xlu0 %v553, 32
        %v2820 = vpop.permute.xlu0 %2819
        %2821 = vrot.lane.b32.xlu0 %v559, 32
        %v2822 = vpop.permute.xlu0 %2821
        %2823 = vrot.lane.b32.xlu0 %v565, 32
        %v2824 = vpop.permute.xlu0 %2823
        %2825 = vrot.lane.b32.xlu0 %v571, 32
        %v2826 = vpop.permute.xlu0 %2825
        %2827 = vrot.lane.b32.xlu0 %v642, 96
        %v2828 = vpop.permute.xlu0 %2827
        %2829 = vrot.lane.b32.xlu0 %v648, 96
        %v2830 = vpop.permute.xlu0 %2829
        %2831 = vrot.lane.b32.xlu0 %v654, 96
        %v2832 = vpop.permute.xlu0 %2831
        %2833 = vrot.lane.b32.xlu0 %v660, 96
        %v2834 = vpop.permute.xlu0 %2833
        %2835 = vrot.lane.b32.xlu0 %v666, 96
        %v2836 = vpop.permute.xlu0 %2835
        %2837 = vrot.lane.b32.xlu0 %v672, 96
        %v2838 = vpop.permute.xlu0 %2837
        %2839 = vrot.lane.b32.xlu0 %v678, 96
        %v2840 = vpop.permute.xlu0 %2839
        %2841 = vrot.lane.b32.xlu0 %v684, 96
        %v2842 = vpop.permute.xlu0 %2841
        %2843 = vrot.lane.b32.xlu0 %v690, 96
        %v2844 = vpop.permute.xlu0 %2843
        %2845 = vrot.lane.b32.xlu0 %v696, 96
        %v2846 = vpop.permute.xlu0 %2845
        %2847 = vrot.lane.b32.xlu0 %v702, 96
        %v2848 = vpop.permute.xlu0 %2847
        %2849 = vrot.lane.b32.xlu0 %v708, 96
        %v2850 = vpop.permute.xlu0 %2849
        %2851 = vrot.lane.b32.xlu0 %v714, 96
        %v2852 = vpop.permute.xlu0 %2851
        %2853 = vrot.lane.b32.xlu0 %v720, 96
        %v2854 = vpop.permute.xlu0 %2853
        %2855 = vrot.lane.b32.xlu0 %v726, 96
        %v2856 = vpop.permute.xlu0 %2855
        %2857 = vrot.lane.b32.xlu0 %v732, 96
        %v2858 = vpop.permute.xlu0 %2857
        %v2859 = vsel %vm964, %v2796, 0
        %v2861 = vsel %vm964, %v2798, 0
        %v2863 = vsel %vm964, %v2800, 0
        %v2865 = vsel %vm964, %v2802, 0
        %v2867 = vsel %vm964, %v2804, 0
        %v2869 = vsel %vm964, %v2806, 0
        %v2871 = vsel %vm964, %v2808, 0
        %v2873 = vsel %vm964, %v2810, 0
        %v2875 = vsel %vm964, %v2812, 0
        %v2877 = vsel %vm964, %v2814, 0
        %v2879 = vsel %vm964, %v2816, 0
        %v2881 = vsel %vm964, %v2818, 0
        %v2883 = vsel %vm964, %v2820, 0
        %v2885 = vsel %vm964, %v2822, 0
        %v2887 = vsel %vm964, %v2824, 0
        %v2889 = vsel %vm964, %v2826, 0
        %v2891 = vsel %vm964, %v2828, 0
        %v2893 = vsel %vm964, %v2830, 0
        %v2895 = vsel %vm964, %v2832, 0
        %v2897 = vsel %vm964, %v2834, 0
        %v2899 = vsel %vm964, %v2836, 0
        %v2901 = vsel %vm964, %v2838, 0
        %v2903 = vsel %vm964, %v2840, 0
        %v2905 = vsel %vm964, %v2842, 0
        %v2907 = vsel %vm964, %v2844, 0
        %v2909 = vsel %vm964, %v2846, 0
        %v2911 = vsel %vm964, %v2848, 0
        %v2913 = vsel %vm964, %v2850, 0
        %v2915 = vsel %vm964, %v2852, 0
        %v2917 = vsel %vm964, %v2854, 0
        %v2919 = vsel %vm964, %v2856, 0
        %v2921 = vsel %vm964, %v2858, 0
        %2923 = vmatprep.subr.mxu0 0.0
        %2924 = vmatpush1.xpose.msra.mxu0 %v2921
        %2925 = vmatprep.subr.mxu0 0.0
        %2926 = vmatpush1.xpose.msra.mxu0 %v2919
        %2927 = vmatprep.subr.mxu0 0.0
        %2928 = vmatpush1.xpose.msra.mxu0 %v2917
        %2929 = vmatprep.subr.mxu0 0.0
        %2930 = vmatpush1.xpose.msra.mxu0 %v2915
        %2931 = vmatprep.subr.mxu0 0.0
        %2932 = vmatpush1.xpose.msra.mxu0 %v2913
        %2933 = vmatprep.subr.mxu0 0.0
        %2934 = vmatpush1.xpose.msra.mxu0 %v2911
        %2935 = vmatprep.subr.mxu0 0.0
        %2936 = vmatpush1.xpose.msra.mxu0 %v2909
        %2937 = vmatprep.subr.mxu0 0.0
        %2938 = vmatpush1.xpose.msra.mxu0 %v2907
        %2939 = vmatprep.subr.mxu0 0.0
        %2940 = vmatpush1.xpose.msra.mxu0 %v2905
        %2941 = vmatprep.subr.mxu0 0.0
        %2942 = vmatpush1.xpose.msra.mxu0 %v2903
        %2943 = vmatprep.subr.mxu0 0.0
        %2944 = vmatpush1.xpose.msra.mxu0 %v2901
        %2945 = vmatprep.subr.mxu0 0.0
        %2946 = vmatpush1.xpose.msra.mxu0 %v2899
        %2947 = vmatprep.subr.mxu0 0.0
        %2948 = vmatpush1.xpose.msra.mxu0 %v2897
        %2949 = vmatprep.subr.mxu0 0.0
        %2950 = vmatpush1.xpose.msra.mxu0 %v2895
        %2951 = vmatprep.subr.mxu0 0.0
        %2952 = vmatpush1.xpose.msra.mxu0 %v2893
        %2953 = vmatprep.subr.mxu0 0.0
        %2954 = vmatpush1.xpose.msra.mxu0 %v2891
        %2955 = vmatprep.subr.mxu0 0.0
        %2956 = vmatpush2.xpose.msra.mxu0 0.0
        %2957 = vmatprep.subr.mxu0 0.0
        %2958 = vmatpush2.xpose.msra.mxu0 0.0
        %2959 = vmatprep.subr.mxu0 0.0
        %2960 = vmatpush2.xpose.msra.mxu0 0.0
        %2961 = vmatprep.subr.mxu0 0.0
        %2962 = vmatpush2.xpose.msra.mxu0 0.0
        %2963 = vmatprep.subr.mxu0 0.0
        %2964 = vmatpush2.xpose.msra.mxu0 0.0
        %2965 = vmatprep.subr.mxu0 0.0
        %2966 = vmatpush2.xpose.msra.mxu0 0.0
        %2967 = vmatprep.subr.mxu0 0.0
        %2968 = vmatpush2.xpose.msra.mxu0 0.0
        %2969 = vmatprep.subr.mxu0 0.0
        %2970 = vmatpush2.xpose.msra.mxu0 0.0
        %2971 = vmatprep.subr.mxu0 0.0
        %2972 = vmatpush2.xpose.msra.mxu0 0.0
        %2973 = vmatprep.subr.mxu0 0.0
        %2974 = vmatpush2.xpose.msra.mxu0 0.0
        %2975 = vmatprep.subr.mxu0 0.0
        %2976 = vmatpush2.xpose.msra.mxu0 0.0
        %2977 = vmatprep.subr.mxu0 0.0
        %2978 = vmatpush2.xpose.msra.mxu0 0.0
        %2979 = vmatprep.subr.mxu0 0.0
        %2980 = vmatpush2.xpose.msra.mxu0 0.0
        %2981 = vmatprep.subr.mxu0 0.0
        %2982 = vmatpush2.xpose.msra.mxu0 0.0
        %2983 = vmatprep.subr.mxu0 0.0
        %2984 = vmatpush2.xpose.msra.mxu0 0.0
        %2985 = vmatprep.subr.mxu0 0.0
        %2986 = vmatpush2.xpose.msra.mxu0 0.0
        %2987 = vmatprep.mubr.f32.mxu0 0.0
        %2988 = vmatmul.mubr.f32.gmra.mxu0 %v2859
        %v2989 = vpop.f32.mrf.mxu0
        %v2990 = vadd.f32 0.0, %v2989
        %v2991 = vpop.f32.mrf.mxu0
        %2992 = vmatprep.mubr.f32.mxu0 0.0
        %2993 = vmatmul.mubr.f32.gmra.mxu0 %v2861
        %v2994 = vpop.f32.mrf.mxu0
        %v2995 = vadd.f32 0.0, %v2994
        %v2996 = vpop.f32.mrf.mxu0
        %2997 = vmatprep.mubr.f32.mxu0 0.0
        %2998 = vmatmul.mubr.f32.gmra.mxu0 %v2863
        %v2999 = vpop.f32.mrf.mxu0
        %v3000 = vadd.f32 0.0, %v2999
        %v3001 = vpop.f32.mrf.mxu0
        %3002 = vmatprep.mubr.f32.mxu0 0.0
        %3003 = vmatmul.mubr.f32.gmra.mxu0 %v2865
        %v3004 = vpop.f32.mrf.mxu0
        %v3005 = vadd.f32 0.0, %v3004
        %v3006 = vpop.f32.mrf.mxu0
        %3007 = vmatprep.mubr.f32.mxu0 0.0
        %3008 = vmatmul.mubr.f32.gmra.mxu0 %v2867
        %v3009 = vpop.f32.mrf.mxu0
        %v3010 = vadd.f32 0.0, %v3009
        %v3011 = vpop.f32.mrf.mxu0
        %3012 = vmatprep.mubr.f32.mxu0 0.0
        %3013 = vmatmul.mubr.f32.gmra.mxu0 %v2869
        %v3014 = vpop.f32.mrf.mxu0
        %v3015 = vadd.f32 0.0, %v3014
        %v3016 = vpop.f32.mrf.mxu0
        %3017 = vmatprep.mubr.f32.mxu0 0.0
        %3018 = vmatmul.mubr.f32.gmra.mxu0 %v2871
        %v3019 = vpop.f32.mrf.mxu0
        %v3020 = vadd.f32 0.0, %v3019
        %v3021 = vpop.f32.mrf.mxu0
        %3022 = vmatprep.mubr.f32.mxu0 0.0
        %3023 = vmatmul.mubr.f32.gmra.mxu0 %v2873
        %v3024 = vpop.f32.mrf.mxu0
        %v3025 = vadd.f32 0.0, %v3024
        %v3026 = vpop.f32.mrf.mxu0
        %3027 = vmatprep.mubr.f32.mxu0 0.0
        %3028 = vmatmul.mubr.f32.gmra.mxu0 %v2875
        %v3029 = vpop.f32.mrf.mxu0
        %v3030 = vadd.f32 0.0, %v3029
        %v3031 = vpop.f32.mrf.mxu0
        %3032 = vmatprep.mubr.f32.mxu0 0.0
        %3033 = vmatmul.mubr.f32.gmra.mxu0 %v2877
        %v3034 = vpop.f32.mrf.mxu0
        %v3035 = vadd.f32 0.0, %v3034
        %v3036 = vpop.f32.mrf.mxu0
        %3037 = vmatprep.mubr.f32.mxu0 0.0
        %3038 = vmatmul.mubr.f32.gmra.mxu0 %v2879
        %v3039 = vpop.f32.mrf.mxu0
        %v3040 = vadd.f32 0.0, %v3039
        %v3041 = vpop.f32.mrf.mxu0
        %3042 = vmatprep.mubr.f32.mxu0 0.0
        %3043 = vmatmul.mubr.f32.gmra.mxu0 %v2881
        %v3044 = vpop.f32.mrf.mxu0
        %v3045 = vadd.f32 0.0, %v3044
        %v3046 = vpop.f32.mrf.mxu0
        %3047 = vmatprep.mubr.f32.mxu0 0.0
        %3048 = vmatmul.mubr.f32.gmra.mxu0 %v2883
        %v3049 = vpop.f32.mrf.mxu0
        %v3050 = vadd.f32 0.0, %v3049
        %v3051 = vpop.f32.mrf.mxu0
        %3052 = vmatprep.mubr.f32.mxu0 0.0
        %3053 = vmatmul.mubr.f32.gmra.mxu0 %v2885
        %v3054 = vpop.f32.mrf.mxu0
        %v3055 = vadd.f32 0.0, %v3054
        %v3056 = vpop.f32.mrf.mxu0
        %3057 = vmatprep.mubr.f32.mxu0 0.0
        %3058 = vmatmul.mubr.f32.gmra.mxu0 %v2887
        %v3059 = vpop.f32.mrf.mxu0
        %v3060 = vadd.f32 0.0, %v3059
        %v3061 = vpop.f32.mrf.mxu0
        %3062 = vmatprep.mubr.f32.mxu0 0.0
        %3063 = vmatmul.mubr.f32.gmra.mxu0 %v2889
        %v3064 = vpop.f32.mrf.mxu0
        %v3065 = vadd.f32 0.0, %v3064
        %v3066 = vpop.f32.mrf.mxu0
        %3067 = vdwg.mxu0
        %v3068 = vmul.f32 %v2990, 0.17677669
        %v3069 = vmul.f32 %v2995, 0.17677669
        %v3070 = vmul.f32 %v3000, 0.17677669
        %v3071 = vmul.f32 %v3005, 0.17677669
        %v3072 = vmul.f32 %v3010, 0.17677669
        %v3073 = vmul.f32 %v3015, 0.17677669
        %v3074 = vmul.f32 %v3020, 0.17677669
        %v3075 = vmul.f32 %v3025, 0.17677669
        %v3076 = vmul.f32 %v3030, 0.17677669
        %v3077 = vmul.f32 %v3035, 0.17677669
        %v3078 = vmul.f32 %v3040, 0.17677669
        %v3079 = vmul.f32 %v3045, 0.17677669
        %v3080 = vmul.f32 %v3050, 0.17677669
        %v3081 = vmul.f32 %v3055, 0.17677669
        %v3082 = vmul.f32 %v3060, 0.17677669
        %v3083 = vmul.f32 %v3065, 0.17677669
        %v3084 = vsel %vm900, %v3068, -inf
        %v3085 = vsel %vm901, %v3069, -inf
        %v3086 = vsel %vm902, %v3070, -inf
        %v3087 = vsel %vm903, %v3071, -inf
        %v3088 = vsel %vm904, %v3072, -inf
        %v3089 = vsel %vm905, %v3073, -inf
        %v3090 = vsel %vm906, %v3074, -inf
        %v3091 = vsel %vm907, %v3075, -inf
        %v3092 = vsel %vm908, %v3076, -inf
        %v3093 = vsel %vm909, %v3077, -inf
        %v3094 = vsel %vm910, %v3078, -inf
        %v3095 = vsel %vm911, %v3079, -inf
        %v3096 = vsel %vm912, %v3080, -inf
        %v3097 = vsel %vm913, %v3081, -inf
        %v3098 = vsel %vm914, %v3082, -inf
        %v3099 = vsel %vm915, %v3083, -inf
        %3100 = vmax.xlane.f32.xlu0 %v3084
        %v3101 = vpop.xlane.xlu0 %3100
        %3102 = vmax.xlane.f32.xlu0 %v3085
        %v3103 = vpop.xlane.xlu0 %3102
        %3104 = vmax.xlane.f32.xlu0 %v3086
        %v3105 = vpop.xlane.xlu0 %3104
        %3106 = vmax.xlane.f32.xlu0 %v3087
        %v3107 = vpop.xlane.xlu0 %3106
        %3108 = vmax.xlane.f32.xlu0 %v3088
        %v3109 = vpop.xlane.xlu0 %3108
        %3110 = vmax.xlane.f32.xlu0 %v3089
        %v3111 = vpop.xlane.xlu0 %3110
        %3112 = vmax.xlane.f32.xlu0 %v3090
        %v3113 = vpop.xlane.xlu0 %3112
        %3114 = vmax.xlane.f32.xlu0 %v3091
        %v3115 = vpop.xlane.xlu0 %3114
        %3116 = vmax.xlane.f32.xlu0 %v3092
        %v3117 = vpop.xlane.xlu0 %3116
        %3118 = vmax.xlane.f32.xlu0 %v3093
        %v3119 = vpop.xlane.xlu0 %3118
        %3120 = vmax.xlane.f32.xlu0 %v3094
        %v3121 = vpop.xlane.xlu0 %3120
        %3122 = vmax.xlane.f32.xlu0 %v3095
        %v3123 = vpop.xlane.xlu0 %3122
        %3124 = vmax.xlane.f32.xlu0 %v3096
        %v3125 = vpop.xlane.xlu0 %3124
        %3126 = vmax.xlane.f32.xlu0 %v3097
        %v3127 = vpop.xlane.xlu0 %3126
        %3128 = vmax.xlane.f32.xlu0 %v3098
        %v3129 = vpop.xlane.xlu0 %3128
        %3130 = vmax.xlane.f32.xlu0 %v3099
        %v3131 = vpop.xlane.xlu0 %3130
        %v3132 = vsub.f32 %v3084, %v3101
        %v3133 = vsub.f32 %v3085, %v3103
        %v3134 = vsub.f32 %v3086, %v3105
        %v3135 = vsub.f32 %v3087, %v3107
        %v3136 = vsub.f32 %v3088, %v3109
        %v3137 = vsub.f32 %v3089, %v3111
        %v3138 = vsub.f32 %v3090, %v3113
        %v3139 = vsub.f32 %v3091, %v3115
        %v3140 = vsub.f32 %v3092, %v3117
        %v3141 = vsub.f32 %v3093, %v3119
        %v3142 = vsub.f32 %v3094, %v3121
        %v3143 = vsub.f32 %v3095, %v3123
        %v3144 = vsub.f32 %v3096, %v3125
        %v3145 = vsub.f32 %v3097, %v3127
        %v3146 = vsub.f32 %v3098, %v3129
        %v3147 = vsub.f32 %v3099, %v3131
        %v3148 = vmul.f32 %v3132, 1.442695
        %v3149 = vpow.pop %v3148
        %v3150 = vmul.f32 %v3133, 1.442695
        %v3151 = vpow.pop %v3150
        %v3152 = vmul.f32 %v3134, 1.442695
        %v3153 = vpow.pop %v3152
        %v3154 = vmul.f32 %v3135, 1.442695
        %v3155 = vpow.pop %v3154
        %v3156 = vmul.f32 %v3136, 1.442695
        %v3157 = vpow.pop %v3156
        %v3158 = vmul.f32 %v3137, 1.442695
        %v3159 = vpow.pop %v3158
        %v3160 = vmul.f32 %v3138, 1.442695
        %v3161 = vpow.pop %v3160
        %v3162 = vmul.f32 %v3139, 1.442695
        %v3163 = vpow.pop %v3162
        %v3164 = vmul.f32 %v3140, 1.442695
        %v3165 = vpow.pop %v3164
        %v3166 = vmul.f32 %v3141, 1.442695
        %v3167 = vpow.pop %v3166
        %v3168 = vmul.f32 %v3142, 1.442695
        %v3169 = vpow.pop %v3168
        %v3170 = vmul.f32 %v3143, 1.442695
        %v3171 = vpow.pop %v3170
        %v3172 = vmul.f32 %v3144, 1.442695
        %v3173 = vpow.pop %v3172
        %v3174 = vmul.f32 %v3145, 1.442695
        %v3175 = vpow.pop %v3174
        %v3176 = vmul.f32 %v3146, 1.442695
        %v3177 = vpow.pop %v3176
        %v3178 = vmul.f32 %v3147, 1.442695
        %v3179 = vpow.pop %v3178
        %3180 = vadd.xlane.f32.xlu0 %v3149
        %v3181 = vpop.xlane.xlu0 %3180
        %3182 = vadd.xlane.f32.xlu0 %v3151
        %v3183 = vpop.xlane.xlu0 %3182
        %3184 = vadd.xlane.f32.xlu0 %v3153
        %v3185 = vpop.xlane.xlu0 %3184
        %3186 = vadd.xlane.f32.xlu0 %v3155
        %v3187 = vpop.xlane.xlu0 %3186
        %3188 = vadd.xlane.f32.xlu0 %v3157
        %v3189 = vpop.xlane.xlu0 %3188
        %3190 = vadd.xlane.f32.xlu0 %v3159
        %v3191 = vpop.xlane.xlu0 %3190
        %3192 = vadd.xlane.f32.xlu0 %v3161
        %v3193 = vpop.xlane.xlu0 %3192
        %3194 = vadd.xlane.f32.xlu0 %v3163
        %v3195 = vpop.xlane.xlu0 %3194
        %3196 = vadd.xlane.f32.xlu0 %v3165
        %v3197 = vpop.xlane.xlu0 %3196
        %3198 = vadd.xlane.f32.xlu0 %v3167
        %v3199 = vpop.xlane.xlu0 %3198
        %3200 = vadd.xlane.f32.xlu0 %v3169
        %v3201 = vpop.xlane.xlu0 %3200
        %3202 = vadd.xlane.f32.xlu0 %v3171
        %v3203 = vpop.xlane.xlu0 %3202
        %3204 = vadd.xlane.f32.xlu0 %v3173
        %v3205 = vpop.xlane.xlu0 %3204
        %3206 = vadd.xlane.f32.xlu0 %v3175
        %v3207 = vpop.xlane.xlu0 %3206
        %3208 = vadd.xlane.f32.xlu0 %v3177
        %v3209 = vpop.xlane.xlu0 %3208
        %3210 = vadd.xlane.f32.xlu0 %v3179
        %v3211 = vpop.xlane.xlu0 %3210
        %v3212 = vrcp.pop %v3181
        %v3213 = vrcp.pop %v3183
        %v3214 = vrcp.pop %v3185
        %v3215 = vrcp.pop %v3187
        %v3216 = vrcp.pop %v3189
        %v3217 = vrcp.pop %v3191
        %v3218 = vrcp.pop %v3193
        %v3219 = vrcp.pop %v3195
        %v3220 = vrcp.pop %v3197
        %v3221 = vrcp.pop %v3199
        %v3222 = vrcp.pop %v3201
        %v3223 = vrcp.pop %v3203
        %v3224 = vrcp.pop %v3205
        %v3225 = vrcp.pop %v3207
        %v3226 = vrcp.pop %v3209
        %v3227 = vrcp.pop %v3211
        %v3228 = vmul.f32 %v3149, %v3212
        %v3229 = vmul.f32 %v3151, %v3213
        %v3230 = vmul.f32 %v3153, %v3214
        %v3231 = vmul.f32 %v3155, %v3215
        %v3232 = vmul.f32 %v3157, %v3216
        %v3233 = vmul.f32 %v3159, %v3217
        %v3234 = vmul.f32 %v3161, %v3218
        %v3235 = vmul.f32 %v3163, %v3219
        %v3236 = vmul.f32 %v3165, %v3220
        %v3237 = vmul.f32 %v3167, %v3221
        %v3238 = vmul.f32 %v3169, %v3222
        %v3239 = vmul.f32 %v3171, %v3223
        %v3240 = vmul.f32 %v3173, %v3224
        %v3241 = vmul.f32 %v3175, %v3225
        %v3242 = vmul.f32 %v3177, %v3226
        %v3243 = vmul.f32 %v3179, %v3227
        %3244 = vrot.lane.b32.xlu0 %v644, 32
        %v3245 = vpop.permute.xlu0 %3244
        %3246 = vrot.lane.b32.xlu0 %v650, 32
        %v3247 = vpop.permute.xlu0 %3246
        %3248 = vrot.lane.b32.xlu0 %v656, 32
        %v3249 = vpop.permute.xlu0 %3248
        %3250 = vrot.lane.b32.xlu0 %v662, 32
        %v3251 = vpop.permute.xlu0 %3250
        %3252 = vrot.lane.b32.xlu0 %v668, 32
        %v3253 = vpop.permute.xlu0 %3252
        %3254 = vrot.lane.b32.xlu0 %v674, 32
        %v3255 = vpop.permute.xlu0 %3254
        %3256 = vrot.lane.b32.xlu0 %v680, 32
        %v3257 = vpop.permute.xlu0 %3256
        %3258 = vrot.lane.b32.xlu0 %v686, 32
        %v3259 = vpop.permute.xlu0 %3258
        %3260 = vrot.lane.b32.xlu0 %v692, 32
        %v3261 = vpop.permute.xlu0 %3260
        %3262 = vrot.lane.b32.xlu0 %v698, 32
        %v3263 = vpop.permute.xlu0 %3262
        %3264 = vrot.lane.b32.xlu0 %v704, 32
        %v3265 = vpop.permute.xlu0 %3264
        %3266 = vrot.lane.b32.xlu0 %v710, 32
        %v3267 = vpop.permute.xlu0 %3266
        %3268 = vrot.lane.b32.xlu0 %v716, 32
        %v3269 = vpop.permute.xlu0 %3268
        %3270 = vrot.lane.b32.xlu0 %v722, 32
        %v3271 = vpop.permute.xlu0 %3270
        %3272 = vrot.lane.b32.xlu0 %v728, 32
        %v3273 = vpop.permute.xlu0 %3272
        %3274 = vrot.lane.b32.xlu0 %v734, 32
        %v3275 = vpop.permute.xlu0 %3274
        %3292 = vmatprep.subr.mxu0 0.0
        %3293 = vmatpush1.msra.mxu0 %v3275
        %3294 = vmatprep.subr.mxu0 0.0
        %3295 = vmatpush1.msra.mxu0 %v3273
        %3296 = vmatprep.subr.mxu0 0.0
        %3297 = vmatpush1.msra.mxu0 %v3271
        %3298 = vmatprep.subr.mxu0 0.0
        %3299 = vmatpush1.msra.mxu0 %v3269
        %3300 = vmatprep.subr.mxu0 0.0
        %3301 = vmatpush1.msra.mxu0 %v3267
        %3302 = vmatprep.subr.mxu0 0.0
        %3303 = vmatpush1.msra.mxu0 %v3265
        %3304 = vmatprep.subr.mxu0 0.0
        %3305 = vmatpush1.msra.mxu0 %v3263
        %3306 = vmatprep.subr.mxu0 0.0
        %3307 = vmatpush1.msra.mxu0 %v3261
        %3308 = vmatprep.subr.mxu0 0.0
        %3309 = vmatpush1.msra.mxu0 %v3259
        %3310 = vmatprep.subr.mxu0 0.0
        %3311 = vmatpush1.msra.mxu0 %v3257
        %3312 = vmatprep.subr.mxu0 0.0
        %3313 = vmatpush1.msra.mxu0 %v3255
        %3314 = vmatprep.subr.mxu0 0.0
        %3315 = vmatpush1.msra.mxu0 %v3253
        %3316 = vmatprep.subr.mxu0 0.0
        %3317 = vmatpush1.msra.mxu0 %v3251
        %3318 = vmatprep.subr.mxu0 0.0
        %3319 = vmatpush1.msra.mxu0 %v3249
        %3320 = vmatprep.subr.mxu0 0.0
        %3321 = vmatpush1.msra.mxu0 %v3247
        %3322 = vmatprep.subr.mxu0 0.0
        %3323 = vmatpush1.msra.mxu0 %v3245
        %3324 = vmatprep.subr.mxu0 0.0
        %3325 = vmatpush2.msra.mxu0 0.0
        %3326 = vmatprep.subr.mxu0 0.0
        %3327 = vmatpush2.msra.mxu0 0.0
        %3328 = vmatprep.subr.mxu0 0.0
        %3329 = vmatpush2.msra.mxu0 0.0
        %3330 = vmatprep.subr.mxu0 0.0
        %3331 = vmatpush2.msra.mxu0 0.0
        %3332 = vmatprep.subr.mxu0 0.0
        %3333 = vmatpush2.msra.mxu0 0.0
        %3334 = vmatprep.subr.mxu0 0.0
        %3335 = vmatpush2.msra.mxu0 0.0
        %3336 = vmatprep.subr.mxu0 0.0
        %3337 = vmatpush2.msra.mxu0 0.0
        %3338 = vmatprep.subr.mxu0 0.0
        %3339 = vmatpush2.msra.mxu0 0.0
        %3340 = vmatprep.subr.mxu0 0.0
        %3341 = vmatpush2.msra.mxu0 0.0
        %3342 = vmatprep.subr.mxu0 0.0
        %3343 = vmatpush2.msra.mxu0 0.0
        %3344 = vmatprep.subr.mxu0 0.0
        %3345 = vmatpush2.msra.mxu0 0.0
        %3346 = vmatprep.subr.mxu0 0.0
        %3347 = vmatpush2.msra.mxu0 0.0
        %3348 = vmatprep.subr.mxu0 0.0
        %3349 = vmatpush2.msra.mxu0 0.0
        %3350 = vmatprep.subr.mxu0 0.0
        %3351 = vmatpush2.msra.mxu0 0.0
        %3352 = vmatprep.subr.mxu0 0.0
        %3353 = vmatpush2.msra.mxu0 0.0
        %3354 = vmatprep.subr.mxu0 0.0
        %3355 = vmatpush2.msra.mxu0 0.0
        %3356 = vmatprep.mubr.f32.mxu0 0.0
        %3357 = vmatmul.mubr.f32.gmra.mxu0 %v3228
        %v3358 = vpop.f32.mrf.mxu0
        %v3359 = vadd.f32 0.0, %v3358
        %v3360 = vpop.f32.mrf.mxu0
        %3361 = vmatprep.mubr.f32.mxu0 0.0
        %3362 = vmatmul.mubr.f32.gmra.mxu0 %v3229
        %v3363 = vpop.f32.mrf.mxu0
        %v3364 = vadd.f32 0.0, %v3363
        %v3365 = vpop.f32.mrf.mxu0
        %3366 = vmatprep.mubr.f32.mxu0 0.0
        %3367 = vmatmul.mubr.f32.gmra.mxu0 %v3230
        %v3368 = vpop.f32.mrf.mxu0
        %v3369 = vadd.f32 0.0, %v3368
        %v3370 = vpop.f32.mrf.mxu0
        %3371 = vmatprep.mubr.f32.mxu0 0.0
        %3372 = vmatmul.mubr.f32.gmra.mxu0 %v3231
        %v3373 = vpop.f32.mrf.mxu0
        %v3374 = vadd.f32 0.0, %v3373
        %v3375 = vpop.f32.mrf.mxu0
        %3376 = vmatprep.mubr.f32.mxu0 0.0
        %3377 = vmatmul.mubr.f32.gmra.mxu0 %v3232
        %v3378 = vpop.f32.mrf.mxu0
        %v3379 = vadd.f32 0.0, %v3378
        %v3380 = vpop.f32.mrf.mxu0
        %3381 = vmatprep.mubr.f32.mxu0 0.0
        %3382 = vmatmul.mubr.f32.gmra.mxu0 %v3233
        %v3383 = vpop.f32.mrf.mxu0
        %v3384 = vadd.f32 0.0, %v3383
        %v3385 = vpop.f32.mrf.mxu0
        %3386 = vmatprep.mubr.f32.mxu0 0.0
        %3387 = vmatmul.mubr.f32.gmra.mxu0 %v3234
        %v3388 = vpop.f32.mrf.mxu0
        %v3389 = vadd.f32 0.0, %v3388
        %v3390 = vpop.f32.mrf.mxu0
        %3391 = vmatprep.mubr.f32.mxu0 0.0
        %3392 = vmatmul.mubr.f32.gmra.mxu0 %v3235
        %v3393 = vpop.f32.mrf.mxu0
        %v3394 = vadd.f32 0.0, %v3393
        %v3395 = vpop.f32.mrf.mxu0
        %3396 = vmatprep.mubr.f32.mxu0 0.0
        %3397 = vmatmul.mubr.f32.gmra.mxu0 %v3236
        %v3398 = vpop.f32.mrf.mxu0
        %v3399 = vadd.f32 0.0, %v3398
        %v3400 = vpop.f32.mrf.mxu0
        %3401 = vmatprep.mubr.f32.mxu0 0.0
        %3402 = vmatmul.mubr.f32.gmra.mxu0 %v3237
        %v3403 = vpop.f32.mrf.mxu0
        %v3404 = vadd.f32 0.0, %v3403
        %v3405 = vpop.f32.mrf.mxu0
        %3406 = vmatprep.mubr.f32.mxu0 0.0
        %3407 = vmatmul.mubr.f32.gmra.mxu0 %v3238
        %v3408 = vpop.f32.mrf.mxu0
        %v3409 = vadd.f32 0.0, %v3408
        %v3410 = vpop.f32.mrf.mxu0
        %3411 = vmatprep.mubr.f32.mxu0 0.0
        %3412 = vmatmul.mubr.f32.gmra.mxu0 %v3239
        %v3413 = vpop.f32.mrf.mxu0
        %v3414 = vadd.f32 0.0, %v3413
        %v3415 = vpop.f32.mrf.mxu0
        %3416 = vmatprep.mubr.f32.mxu0 0.0
        %3417 = vmatmul.mubr.f32.gmra.mxu0 %v3240
        %v3418 = vpop.f32.mrf.mxu0
        %v3419 = vadd.f32 0.0, %v3418
        %v3420 = vpop.f32.mrf.mxu0
        %3421 = vmatprep.mubr.f32.mxu0 0.0
        %3422 = vmatmul.mubr.f32.gmra.mxu0 %v3241
        %v3423 = vpop.f32.mrf.mxu0
        %v3424 = vadd.f32 0.0, %v3423
        %v3425 = vpop.f32.mrf.mxu0
        %3426 = vmatprep.mubr.f32.mxu0 0.0
        %3427 = vmatmul.mubr.f32.gmra.mxu0 %v3242
        %v3428 = vpop.f32.mrf.mxu0
        %v3429 = vadd.f32 0.0, %v3428
        %v3430 = vpop.f32.mrf.mxu0
        %3431 = vmatprep.mubr.f32.mxu0 0.0
        %3432 = vmatmul.mubr.f32.gmra.mxu0 %v3243
        %v3433 = vpop.f32.mrf.mxu0
        %v3434 = vadd.f32 0.0, %v3433
        %v3435 = vpop.f32.mrf.mxu0
        %3436 = vdwg.mxu0
        %3437 = vrot.lane.b32.xlu0 %v642, 64
        %v3438 = vpop.permute.xlu0 %3437
        %3439 = vrot.lane.b32.xlu0 %v648, 64
        %v3440 = vpop.permute.xlu0 %3439
        %3441 = vrot.lane.b32.xlu0 %v654, 64
        %v3442 = vpop.permute.xlu0 %3441
        %3443 = vrot.lane.b32.xlu0 %v660, 64
        %v3444 = vpop.permute.xlu0 %3443
        %3445 = vrot.lane.b32.xlu0 %v666, 64
        %v3446 = vpop.permute.xlu0 %3445
        %3447 = vrot.lane.b32.xlu0 %v672, 64
        %v3448 = vpop.permute.xlu0 %3447
        %3449 = vrot.lane.b32.xlu0 %v678, 64
        %v3450 = vpop.permute.xlu0 %3449
        %3451 = vrot.lane.b32.xlu0 %v684, 64
        %v3452 = vpop.permute.xlu0 %3451
        %3453 = vrot.lane.b32.xlu0 %v690, 64
        %v3454 = vpop.permute.xlu0 %3453
        %3455 = vrot.lane.b32.xlu0 %v696, 64
        %v3456 = vpop.permute.xlu0 %3455
        %3457 = vrot.lane.b32.xlu0 %v702, 64
        %v3458 = vpop.permute.xlu0 %3457
        %3459 = vrot.lane.b32.xlu0 %v708, 64
        %v3460 = vpop.permute.xlu0 %3459
        %3461 = vrot.lane.b32.xlu0 %v714, 64
        %v3462 = vpop.permute.xlu0 %3461
        %3463 = vrot.lane.b32.xlu0 %v720, 64
        %v3464 = vpop.permute.xlu0 %3463
        %3465 = vrot.lane.b32.xlu0 %v726, 64
        %v3466 = vpop.permute.xlu0 %3465
        %3467 = vrot.lane.b32.xlu0 %v732, 64
        %v3468 = vpop.permute.xlu0 %3467
        %v3469 = vsel %vm964, %v483, 0
        %v3471 = vsel %vm964, %v489, 0
        %v3473 = vsel %vm964, %v495, 0
        %v3475 = vsel %vm964, %v501, 0
        %v3477 = vsel %vm964, %v507, 0
        %v3479 = vsel %vm964, %v513, 0
        %v3481 = vsel %vm964, %v519, 0
        %v3483 = vsel %vm964, %v525, 0
        %v3485 = vsel %vm964, %v531, 0
        %v3487 = vsel %vm964, %v537, 0
        %v3489 = vsel %vm964, %v543, 0
        %v3491 = vsel %vm964, %v549, 0
        %v3493 = vsel %vm964, %v555, 0
        %v3495 = vsel %vm964, %v561, 0
        %v3497 = vsel %vm964, %v567, 0
        %v3499 = vsel %vm964, %v573, 0
        %v3501 = vsel %vm964, %v3438, 0
        %v3503 = vsel %vm964, %v3440, 0
        %v3505 = vsel %vm964, %v3442, 0
        %v3507 = vsel %vm964, %v3444, 0
        %v3509 = vsel %vm964, %v3446, 0
        %v3511 = vsel %vm964, %v3448, 0
        %v3513 = vsel %vm964, %v3450, 0
        %v3515 = vsel %vm964, %v3452, 0
        %v3517 = vsel %vm964, %v3454, 0
        %v3519 = vsel %vm964, %v3456, 0
        %v3521 = vsel %vm964, %v3458, 0
        %v3523 = vsel %vm964, %v3460, 0
        %v3525 = vsel %vm964, %v3462, 0
        %v3527 = vsel %vm964, %v3464, 0
        %v3529 = vsel %vm964, %v3466, 0
        %v3531 = vsel %vm964, %v3468, 0
        %3533 = vmatprep.subr.mxu0 0.0
        %3534 = vmatpush1.xpose.msra.mxu0 %v3531
        %3535 = vmatprep.subr.mxu0 0.0
        %3536 = vmatpush1.xpose.msra.mxu0 %v3529
        %3537 = vmatprep.subr.mxu0 0.0
        %3538 = vmatpush1.xpose.msra.mxu0 %v3527
        %3539 = vmatprep.subr.mxu0 0.0
        %3540 = vmatpush1.xpose.msra.mxu0 %v3525
        %3541 = vmatprep.subr.mxu0 0.0
        %3542 = vmatpush1.xpose.msra.mxu0 %v3523
        %3543 = vmatprep.subr.mxu0 0.0
        %3544 = vmatpush1.xpose.msra.mxu0 %v3521
        %3545 = vmatprep.subr.mxu0 0.0
        %3546 = vmatpush1.xpose.msra.mxu0 %v3519
        %3547 = vmatprep.subr.mxu0 0.0
        %3548 = vmatpush1.xpose.msra.mxu0 %v3517
        %3549 = vmatprep.subr.mxu0 0.0
        %3550 = vmatpush1.xpose.msra.mxu0 %v3515
        %3551 = vmatprep.subr.mxu0 0.0
        %3552 = vmatpush1.xpose.msra.mxu0 %v3513
        %3553 = vmatprep.subr.mxu0 0.0
        %3554 = vmatpush1.xpose.msra.mxu0 %v3511
        %3555 = vmatprep.subr.mxu0 0.0
        %3556 = vmatpush1.xpose.msra.mxu0 %v3509
        %3557 = vmatprep.subr.mxu0 0.0
        %3558 = vmatpush1.xpose.msra.mxu0 %v3507
        %3559 = vmatprep.subr.mxu0 0.0
        %3560 = vmatpush1.xpose.msra.mxu0 %v3505
        %3561 = vmatprep.subr.mxu0 0.0
        %3562 = vmatpush1.xpose.msra.mxu0 %v3503
        %3563 = vmatprep.subr.mxu0 0.0
        %3564 = vmatpush1.xpose.msra.mxu0 %v3501
        %3565 = vmatprep.subr.mxu0 0.0
        %3566 = vmatpush2.xpose.msra.mxu0 0.0
        %3567 = vmatprep.subr.mxu0 0.0
        %3568 = vmatpush2.xpose.msra.mxu0 0.0
        %3569 = vmatprep.subr.mxu0 0.0
        %3570 = vmatpush2.xpose.msra.mxu0 0.0
        %3571 = vmatprep.subr.mxu0 0.0
        %3572 = vmatpush2.xpose.msra.mxu0 0.0
        %3573 = vmatprep.subr.mxu0 0.0
        %3574 = vmatpush2.xpose.msra.mxu0 0.0
        %3575 = vmatprep.subr.mxu0 0.0
        %3576 = vmatpush2.xpose.msra.mxu0 0.0
        %3577 = vmatprep.subr.mxu0 0.0
        %3578 = vmatpush2.xpose.msra.mxu0 0.0
        %3579 = vmatprep.subr.mxu0 0.0
        %3580 = vmatpush2.xpose.msra.mxu0 0.0
        %3581 = vmatprep.subr.mxu0 0.0
        %3582 = vmatpush2.xpose.msra.mxu0 0.0
        %3583 = vmatprep.subr.mxu0 0.0
        %3584 = vmatpush2.xpose.msra.mxu0 0.0
        %3585 = vmatprep.subr.mxu0 0.0
        %3586 = vmatpush2.xpose.msra.mxu0 0.0
        %3587 = vmatprep.subr.mxu0 0.0
        %3588 = vmatpush2.xpose.msra.mxu0 0.0
        %3589 = vmatprep.subr.mxu0 0.0
        %3590 = vmatpush2.xpose.msra.mxu0 0.0
        %3591 = vmatprep.subr.mxu0 0.0
        %3592 = vmatpush2.xpose.msra.mxu0 0.0
        %3593 = vmatprep.subr.mxu0 0.0
        %3594 = vmatpush2.xpose.msra.mxu0 0.0
        %3595 = vmatprep.subr.mxu0 0.0
        %3596 = vmatpush2.xpose.msra.mxu0 0.0
        %3597 = vmatprep.mubr.f32.mxu0 0.0
        %3598 = vmatmul.mubr.f32.gmra.mxu0 %v3469
        %v3599 = vpop.f32.mrf.mxu0
        %v3600 = vadd.f32 0.0, %v3599
        %v3601 = vpop.f32.mrf.mxu0
        %3602 = vmatprep.mubr.f32.mxu0 0.0
        %3603 = vmatmul.mubr.f32.gmra.mxu0 %v3471
        %v3604 = vpop.f32.mrf.mxu0
        %v3605 = vadd.f32 0.0, %v3604
        %v3606 = vpop.f32.mrf.mxu0
        %3607 = vmatprep.mubr.f32.mxu0 0.0
        %3608 = vmatmul.mubr.f32.gmra.mxu0 %v3473
        %v3609 = vpop.f32.mrf.mxu0
        %v3610 = vadd.f32 0.0, %v3609
        %v3611 = vpop.f32.mrf.mxu0
        %3612 = vmatprep.mubr.f32.mxu0 0.0
        %3613 = vmatmul.mubr.f32.gmra.mxu0 %v3475
        %v3614 = vpop.f32.mrf.mxu0
        %v3615 = vadd.f32 0.0, %v3614
        %v3616 = vpop.f32.mrf.mxu0
        %3617 = vmatprep.mubr.f32.mxu0 0.0
        %3618 = vmatmul.mubr.f32.gmra.mxu0 %v3477
        %v3619 = vpop.f32.mrf.mxu0
        %v3620 = vadd.f32 0.0, %v3619
        %v3621 = vpop.f32.mrf.mxu0
        %3622 = vmatprep.mubr.f32.mxu0 0.0
        %3623 = vmatmul.mubr.f32.gmra.mxu0 %v3479
        %v3624 = vpop.f32.mrf.mxu0
        %v3625 = vadd.f32 0.0, %v3624
        %v3626 = vpop.f32.mrf.mxu0
        %3627 = vmatprep.mubr.f32.mxu0 0.0
        %3628 = vmatmul.mubr.f32.gmra.mxu0 %v3481
        %v3629 = vpop.f32.mrf.mxu0
        %v3630 = vadd.f32 0.0, %v3629
        %v3631 = vpop.f32.mrf.mxu0
        %3632 = vmatprep.mubr.f32.mxu0 0.0
        %3633 = vmatmul.mubr.f32.gmra.mxu0 %v3483
        %v3634 = vpop.f32.mrf.mxu0
        %v3635 = vadd.f32 0.0, %v3634
        %v3636 = vpop.f32.mrf.mxu0
        %3637 = vmatprep.mubr.f32.mxu0 0.0
        %3638 = vmatmul.mubr.f32.gmra.mxu0 %v3485
        %v3639 = vpop.f32.mrf.mxu0
        %v3640 = vadd.f32 0.0, %v3639
        %v3641 = vpop.f32.mrf.mxu0
        %3642 = vmatprep.mubr.f32.mxu0 0.0
        %3643 = vmatmul.mubr.f32.gmra.mxu0 %v3487
        %v3644 = vpop.f32.mrf.mxu0
        %v3645 = vadd.f32 0.0, %v3644
        %v3646 = vpop.f32.mrf.mxu0
        %3647 = vmatprep.mubr.f32.mxu0 0.0
        %3648 = vmatmul.mubr.f32.gmra.mxu0 %v3489
        %v3649 = vpop.f32.mrf.mxu0
        %v3650 = vadd.f32 0.0, %v3649
        %v3651 = vpop.f32.mrf.mxu0
        %3652 = vmatprep.mubr.f32.mxu0 0.0
        %3653 = vmatmul.mubr.f32.gmra.mxu0 %v3491
        %v3654 = vpop.f32.mrf.mxu0
        %v3655 = vadd.f32 0.0, %v3654
        %v3656 = vpop.f32.mrf.mxu0
        %3657 = vmatprep.mubr.f32.mxu0 0.0
        %3658 = vmatmul.mubr.f32.gmra.mxu0 %v3493
        %v3659 = vpop.f32.mrf.mxu0
        %v3660 = vadd.f32 0.0, %v3659
        %v3661 = vpop.f32.mrf.mxu0
        %3662 = vmatprep.mubr.f32.mxu0 0.0
        %3663 = vmatmul.mubr.f32.gmra.mxu0 %v3495
        %v3664 = vpop.f32.mrf.mxu0
        %v3665 = vadd.f32 0.0, %v3664
        %v3666 = vpop.f32.mrf.mxu0
        %3667 = vmatprep.mubr.f32.mxu0 0.0
        %3668 = vmatmul.mubr.f32.gmra.mxu0 %v3497
        %v3669 = vpop.f32.mrf.mxu0
        %v3670 = vadd.f32 0.0, %v3669
        %v3671 = vpop.f32.mrf.mxu0
        %3672 = vmatprep.mubr.f32.mxu0 0.0
        %3673 = vmatmul.mubr.f32.gmra.mxu0 %v3499
        %v3674 = vpop.f32.mrf.mxu0
        %v3675 = vadd.f32 0.0, %v3674
        %v3676 = vpop.f32.mrf.mxu0
        %3677 = vdwg.mxu0
        %v3678 = vmul.f32 %v3600, 0.17677669
        %v3679 = vmul.f32 %v3605, 0.17677669
        %v3680 = vmul.f32 %v3610, 0.17677669
        %v3681 = vmul.f32 %v3615, 0.17677669
        %v3682 = vmul.f32 %v3620, 0.17677669
        %v3683 = vmul.f32 %v3625, 0.17677669
        %v3684 = vmul.f32 %v3630, 0.17677669
        %v3685 = vmul.f32 %v3635, 0.17677669
        %v3686 = vmul.f32 %v3640, 0.17677669
        %v3687 = vmul.f32 %v3645, 0.17677669
        %v3688 = vmul.f32 %v3650, 0.17677669
        %v3689 = vmul.f32 %v3655, 0.17677669
        %v3690 = vmul.f32 %v3660, 0.17677669
        %v3691 = vmul.f32 %v3665, 0.17677669
        %v3692 = vmul.f32 %v3670, 0.17677669
        %v3693 = vmul.f32 %v3675, 0.17677669
        %v3694 = vsel %vm900, %v3678, -inf
        %v3695 = vsel %vm901, %v3679, -inf
        %v3696 = vsel %vm902, %v3680, -inf
        %v3697 = vsel %vm903, %v3681, -inf
        %v3698 = vsel %vm904, %v3682, -inf
        %v3699 = vsel %vm905, %v3683, -inf
        %v3700 = vsel %vm906, %v3684, -inf
        %v3701 = vsel %vm907, %v3685, -inf
        %v3702 = vsel %vm908, %v3686, -inf
        %v3703 = vsel %vm909, %v3687, -inf
        %v3704 = vsel %vm910, %v3688, -inf
        %v3705 = vsel %vm911, %v3689, -inf
        %v3706 = vsel %vm912, %v3690, -inf
        %v3707 = vsel %vm913, %v3691, -inf
        %v3708 = vsel %vm914, %v3692, -inf
        %v3709 = vsel %vm915, %v3693, -inf
        %3710 = vmax.xlane.f32.xlu0 %v3694
        %v3711 = vpop.xlane.xlu0 %3710
        %3712 = vmax.xlane.f32.xlu0 %v3695
        %v3713 = vpop.xlane.xlu0 %3712
        %3714 = vmax.xlane.f32.xlu0 %v3696
        %v3715 = vpop.xlane.xlu0 %3714
        %3716 = vmax.xlane.f32.xlu0 %v3697
        %v3717 = vpop.xlane.xlu0 %3716
        %3718 = vmax.xlane.f32.xlu0 %v3698
        %v3719 = vpop.xlane.xlu0 %3718
        %3720 = vmax.xlane.f32.xlu0 %v3699
        %v3721 = vpop.xlane.xlu0 %3720
        %3722 = vmax.xlane.f32.xlu0 %v3700
        %v3723 = vpop.xlane.xlu0 %3722
        %3724 = vmax.xlane.f32.xlu0 %v3701
        %v3725 = vpop.xlane.xlu0 %3724
        %3726 = vmax.xlane.f32.xlu0 %v3702
        %v3727 = vpop.xlane.xlu0 %3726
        %3728 = vmax.xlane.f32.xlu0 %v3703
        %v3729 = vpop.xlane.xlu0 %3728
        %3730 = vmax.xlane.f32.xlu0 %v3704
        %v3731 = vpop.xlane.xlu0 %3730
        %3732 = vmax.xlane.f32.xlu0 %v3705
        %v3733 = vpop.xlane.xlu0 %3732
        %3734 = vmax.xlane.f32.xlu0 %v3706
        %v3735 = vpop.xlane.xlu0 %3734
        %3736 = vmax.xlane.f32.xlu0 %v3707
        %v3737 = vpop.xlane.xlu0 %3736
        %3738 = vmax.xlane.f32.xlu0 %v3708
        %v3739 = vpop.xlane.xlu0 %3738
        %3740 = vmax.xlane.f32.xlu0 %v3709
        %v3741 = vpop.xlane.xlu0 %3740
        %v3742 = vsub.f32 %v3694, %v3711
        %v3743 = vsub.f32 %v3695, %v3713
        %v3744 = vsub.f32 %v3696, %v3715
        %v3745 = vsub.f32 %v3697, %v3717
        %v3746 = vsub.f32 %v3698, %v3719
        %v3747 = vsub.f32 %v3699, %v3721
        %v3748 = vsub.f32 %v3700, %v3723
        %v3749 = vsub.f32 %v3701, %v3725
        %v3750 = vsub.f32 %v3702, %v3727
        %v3751 = vsub.f32 %v3703, %v3729
        %v3752 = vsub.f32 %v3704, %v3731
        %v3753 = vsub.f32 %v3705, %v3733
        %v3754 = vsub.f32 %v3706, %v3735
        %v3755 = vsub.f32 %v3707, %v3737
        %v3756 = vsub.f32 %v3708, %v3739
        %v3757 = vsub.f32 %v3709, %v3741
        %v3758 = vmul.f32 %v3742, 1.442695
        %v3759 = vpow.pop %v3758
        %v3760 = vmul.f32 %v3743, 1.442695
        %v3761 = vpow.pop %v3760
        %v3762 = vmul.f32 %v3744, 1.442695
        %v3763 = vpow.pop %v3762
        %v3764 = vmul.f32 %v3745, 1.442695
        %v3765 = vpow.pop %v3764
        %v3766 = vmul.f32 %v3746, 1.442695
        %v3767 = vpow.pop %v3766
        %v3768 = vmul.f32 %v3747, 1.442695
        %v3769 = vpow.pop %v3768
        %v3770 = vmul.f32 %v3748, 1.442695
        %v3771 = vpow.pop %v3770
        %v3772 = vmul.f32 %v3749, 1.442695
        %v3773 = vpow.pop %v3772
        %v3774 = vmul.f32 %v3750, 1.442695
        %v3775 = vpow.pop %v3774
        %v3776 = vmul.f32 %v3751, 1.442695
        %v3777 = vpow.pop %v3776
        %v3778 = vmul.f32 %v3752, 1.442695
        %v3779 = vpow.pop %v3778
        %v3780 = vmul.f32 %v3753, 1.442695
        %v3781 = vpow.pop %v3780
        %v3782 = vmul.f32 %v3754, 1.442695
        %v3783 = vpow.pop %v3782
        %v3784 = vmul.f32 %v3755, 1.442695
        %v3785 = vpow.pop %v3784
        %v3786 = vmul.f32 %v3756, 1.442695
        %v3787 = vpow.pop %v3786
        %v3788 = vmul.f32 %v3757, 1.442695
        %v3789 = vpow.pop %v3788
        %3790 = vadd.xlane.f32.xlu0 %v3759
        %v3791 = vpop.xlane.xlu0 %3790
        %3792 = vadd.xlane.f32.xlu0 %v3761
        %v3793 = vpop.xlane.xlu0 %3792
        %3794 = vadd.xlane.f32.xlu0 %v3763
        %v3795 = vpop.xlane.xlu0 %3794
        %3796 = vadd.xlane.f32.xlu0 %v3765
        %v3797 = vpop.xlane.xlu0 %3796
        %3798 = vadd.xlane.f32.xlu0 %v3767
        %v3799 = vpop.xlane.xlu0 %3798
        %3800 = vadd.xlane.f32.xlu0 %v3769
        %v3801 = vpop.xlane.xlu0 %3800
        %3802 = vadd.xlane.f32.xlu0 %v3771
        %v3803 = vpop.xlane.xlu0 %3802
        %3804 = vadd.xlane.f32.xlu0 %v3773
        %v3805 = vpop.xlane.xlu0 %3804
        %3806 = vadd.xlane.f32.xlu0 %v3775
        %v3807 = vpop.xlane.xlu0 %3806
        %3808 = vadd.xlane.f32.xlu0 %v3777
        %v3809 = vpop.xlane.xlu0 %3808
        %3810 = vadd.xlane.f32.xlu0 %v3779
        %v3811 = vpop.xlane.xlu0 %3810
        %3812 = vadd.xlane.f32.xlu0 %v3781
        %v3813 = vpop.xlane.xlu0 %3812
        %3814 = vadd.xlane.f32.xlu0 %v3783
        %v3815 = vpop.xlane.xlu0 %3814
        %3816 = vadd.xlane.f32.xlu0 %v3785
        %v3817 = vpop.xlane.xlu0 %3816
        %3818 = vadd.xlane.f32.xlu0 %v3787
        %v3819 = vpop.xlane.xlu0 %3818
        %3820 = vadd.xlane.f32.xlu0 %v3789
        %v3821 = vpop.xlane.xlu0 %3820
        %v3822 = vrcp.pop %v3791
        %v3823 = vrcp.pop %v3793
        %v3824 = vrcp.pop %v3795
        %v3825 = vrcp.pop %v3797
        %v3826 = vrcp.pop %v3799
        %v3827 = vrcp.pop %v3801
        %v3828 = vrcp.pop %v3803
        %v3829 = vrcp.pop %v3805
        %v3830 = vrcp.pop %v3807
        %v3831 = vrcp.pop %v3809
        %v3832 = vrcp.pop %v3811
        %v3833 = vrcp.pop %v3813
        %v3834 = vrcp.pop %v3815
        %v3835 = vrcp.pop %v3817
        %v3836 = vrcp.pop %v3819
        %v3837 = vrcp.pop %v3821
        %v3838 = vmul.f32 %v3759, %v3822
        %v3839 = vmul.f32 %v3761, %v3823
        %v3840 = vmul.f32 %v3763, %v3824
        %v3841 = vmul.f32 %v3765, %v3825
        %v3842 = vmul.f32 %v3767, %v3826
        %v3843 = vmul.f32 %v3769, %v3827
        %v3844 = vmul.f32 %v3771, %v3828
        %v3845 = vmul.f32 %v3773, %v3829
        %v3846 = vmul.f32 %v3775, %v3830
        %v3847 = vmul.f32 %v3777, %v3831
        %v3848 = vmul.f32 %v3779, %v3832
        %v3849 = vmul.f32 %v3781, %v3833
        %v3850 = vmul.f32 %v3783, %v3834
        %v3851 = vmul.f32 %v3785, %v3835
        %v3852 = vmul.f32 %v3787, %v3836
        %v3853 = vmul.f32 %v3789, %v3837
        %3854 = vmatprep.subr.mxu0 0.0
        %3855 = vmatpush1.msra.mxu0 %v878
        %3856 = vmatprep.subr.mxu0 0.0
        %3857 = vmatpush1.msra.mxu0 %v873
        %3858 = vmatprep.subr.mxu0 0.0
        %3859 = vmatpush1.msra.mxu0 %v868
        %3860 = vmatprep.subr.mxu0 0.0
        %3861 = vmatpush1.msra.mxu0 %v863
        %3862 = vmatprep.subr.mxu0 0.0
        %3863 = vmatpush1.msra.mxu0 %v858
        %3864 = vmatprep.subr.mxu0 0.0
        %3865 = vmatpush1.msra.mxu0 %v853
        %3866 = vmatprep.subr.mxu0 0.0
        %3867 = vmatpush1.msra.mxu0 %v848
        %3868 = vmatprep.subr.mxu0 0.0
        %3869 = vmatpush1.msra.mxu0 %v843
        %3870 = vmatprep.subr.mxu0 0.0
        %3871 = vmatpush1.msra.mxu0 %v838
        %3872 = vmatprep.subr.mxu0 0.0
        %3873 = vmatpush1.msra.mxu0 %v833
        %3874 = vmatprep.subr.mxu0 0.0
        %3875 = vmatpush1.msra.mxu0 %v828
        %3876 = vmatprep.subr.mxu0 0.0
        %3877 = vmatpush1.msra.mxu0 %v823
        %3878 = vmatprep.subr.mxu0 0.0
        %3879 = vmatpush1.msra.mxu0 %v818
        %3880 = vmatprep.subr.mxu0 0.0
        %3881 = vmatpush1.msra.mxu0 %v813
        %3882 = vmatprep.subr.mxu0 0.0
        %3883 = vmatpush1.msra.mxu0 %v808
        %3884 = vmatprep.subr.mxu0 0.0
        %3885 = vmatpush1.msra.mxu0 %v803
        %3886 = vmatprep.subr.mxu0 0.0
        %3887 = vmatpush2.msra.mxu0 0.0
        %3888 = vmatprep.subr.mxu0 0.0
        %3889 = vmatpush2.msra.mxu0 0.0
        %3890 = vmatprep.subr.mxu0 0.0
        %3891 = vmatpush2.msra.mxu0 0.0
        %3892 = vmatprep.subr.mxu0 0.0
        %3893 = vmatpush2.msra.mxu0 0.0
        %3894 = vmatprep.subr.mxu0 0.0
        %3895 = vmatpush2.msra.mxu0 0.0
        %3896 = vmatprep.subr.mxu0 0.0
        %3897 = vmatpush2.msra.mxu0 0.0
        %3898 = vmatprep.subr.mxu0 0.0
        %3899 = vmatpush2.msra.mxu0 0.0
        %3900 = vmatprep.subr.mxu0 0.0
        %3901 = vmatpush2.msra.mxu0 0.0
        %3902 = vmatprep.subr.mxu0 0.0
        %3903 = vmatpush2.msra.mxu0 0.0
        %3904 = vmatprep.subr.mxu0 0.0
        %3905 = vmatpush2.msra.mxu0 0.0
        %3906 = vmatprep.subr.mxu0 0.0
        %3907 = vmatpush2.msra.mxu0 0.0
        %3908 = vmatprep.subr.mxu0 0.0
        %3909 = vmatpush2.msra.mxu0 0.0
        %3910 = vmatprep.subr.mxu0 0.0
        %3911 = vmatpush2.msra.mxu0 0.0
        %3912 = vmatprep.subr.mxu0 0.0
        %3913 = vmatpush2.msra.mxu0 0.0
        %3914 = vmatprep.subr.mxu0 0.0
        %3915 = vmatpush2.msra.mxu0 0.0
        %3916 = vmatprep.subr.mxu0 0.0
        %3917 = vmatpush2.msra.mxu0 0.0
        %3918 = vmatprep.mubr.f32.mxu0 0.0
        %3919 = vmatmul.mubr.f32.gmra.mxu0 %v3838
        %v3920 = vpop.f32.mrf.mxu0
        %v3921 = vadd.f32 0.0, %v3920
        %v3922 = vpop.f32.mrf.mxu0
        %3923 = vmatprep.mubr.f32.mxu0 0.0
        %3924 = vmatmul.mubr.f32.gmra.mxu0 %v3839
        %v3925 = vpop.f32.mrf.mxu0
        %v3926 = vadd.f32 0.0, %v3925
        %v3927 = vpop.f32.mrf.mxu0
        %3928 = vmatprep.mubr.f32.mxu0 0.0
        %3929 = vmatmul.mubr.f32.gmra.mxu0 %v3840
        %v3930 = vpop.f32.mrf.mxu0
        %v3931 = vadd.f32 0.0, %v3930
        %v3932 = vpop.f32.mrf.mxu0
        %3933 = vmatprep.mubr.f32.mxu0 0.0
        %3934 = vmatmul.mubr.f32.gmra.mxu0 %v3841
        %v3935 = vpop.f32.mrf.mxu0
        %v3936 = vadd.f32 0.0, %v3935
        %v3937 = vpop.f32.mrf.mxu0
        %3938 = vmatprep.mubr.f32.mxu0 0.0
        %3939 = vmatmul.mubr.f32.gmra.mxu0 %v3842
        %v3940 = vpop.f32.mrf.mxu0
        %v3941 = vadd.f32 0.0, %v3940
        %v3942 = vpop.f32.mrf.mxu0
        %3943 = vmatprep.mubr.f32.mxu0 0.0
        %3944 = vmatmul.mubr.f32.gmra.mxu0 %v3843
        %v3945 = vpop.f32.mrf.mxu0
        %v3946 = vadd.f32 0.0, %v3945
        %v3947 = vpop.f32.mrf.mxu0
        %3948 = vmatprep.mubr.f32.mxu0 0.0
        %3949 = vmatmul.mubr.f32.gmra.mxu0 %v3844
        %v3950 = vpop.f32.mrf.mxu0
        %v3951 = vadd.f32 0.0, %v3950
        %v3952 = vpop.f32.mrf.mxu0
        %3953 = vmatprep.mubr.f32.mxu0 0.0
        %3954 = vmatmul.mubr.f32.gmra.mxu0 %v3845
        %v3955 = vpop.f32.mrf.mxu0
        %v3956 = vadd.f32 0.0, %v3955
        %v3957 = vpop.f32.mrf.mxu0
        %3958 = vmatprep.mubr.f32.mxu0 0.0
        %3959 = vmatmul.mubr.f32.gmra.mxu0 %v3846
        %v3960 = vpop.f32.mrf.mxu0
        %v3961 = vadd.f32 0.0, %v3960
        %v3962 = vpop.f32.mrf.mxu0
        %3963 = vmatprep.mubr.f32.mxu0 0.0
        %3964 = vmatmul.mubr.f32.gmra.mxu0 %v3847
        %v3965 = vpop.f32.mrf.mxu0
        %v3966 = vadd.f32 0.0, %v3965
        %v3967 = vpop.f32.mrf.mxu0
        %3968 = vmatprep.mubr.f32.mxu0 0.0
        %3969 = vmatmul.mubr.f32.gmra.mxu0 %v3848
        %v3970 = vpop.f32.mrf.mxu0
        %v3971 = vadd.f32 0.0, %v3970
        %v3972 = vpop.f32.mrf.mxu0
        %3973 = vmatprep.mubr.f32.mxu0 0.0
        %3974 = vmatmul.mubr.f32.gmra.mxu0 %v3849
        %v3975 = vpop.f32.mrf.mxu0
        %v3976 = vadd.f32 0.0, %v3975
        %v3977 = vpop.f32.mrf.mxu0
        %3978 = vmatprep.mubr.f32.mxu0 0.0
        %3979 = vmatmul.mubr.f32.gmra.mxu0 %v3850
        %v3980 = vpop.f32.mrf.mxu0
        %v3981 = vadd.f32 0.0, %v3980
        %v3982 = vpop.f32.mrf.mxu0
        %3983 = vmatprep.mubr.f32.mxu0 0.0
        %3984 = vmatmul.mubr.f32.gmra.mxu0 %v3851
        %v3985 = vpop.f32.mrf.mxu0
        %v3986 = vadd.f32 0.0, %v3985
        %v3987 = vpop.f32.mrf.mxu0
        %3988 = vmatprep.mubr.f32.mxu0 0.0
        %3989 = vmatmul.mubr.f32.gmra.mxu0 %v3852
        %v3990 = vpop.f32.mrf.mxu0
        %v3991 = vadd.f32 0.0, %v3990
        %v3992 = vpop.f32.mrf.mxu0
        %3993 = vmatprep.mubr.f32.mxu0 0.0
        %3994 = vmatmul.mubr.f32.gmra.mxu0 %v3853
        %v3995 = vpop.f32.mrf.mxu0
        %v3996 = vadd.f32 0.0, %v3995
        %v3997 = vpop.f32.mrf.mxu0
        %3998 = vdwg.mxu0
        %3999 = vrot.lane.b32.xlu0 %v483, 96
        %v4000 = vpop.permute.xlu0 %3999
        %4001 = vrot.lane.b32.xlu0 %v489, 96
        %v4002 = vpop.permute.xlu0 %4001
        %4003 = vrot.lane.b32.xlu0 %v495, 96
        %v4004 = vpop.permute.xlu0 %4003
        %4005 = vrot.lane.b32.xlu0 %v501, 96
        %v4006 = vpop.permute.xlu0 %4005
        %4007 = vrot.lane.b32.xlu0 %v507, 96
        %v4008 = vpop.permute.xlu0 %4007
        %4009 = vrot.lane.b32.xlu0 %v513, 96
        %v4010 = vpop.permute.xlu0 %4009
        %4011 = vrot.lane.b32.xlu0 %v519, 96
        %v4012 = vpop.permute.xlu0 %4011
        %4013 = vrot.lane.b32.xlu0 %v525, 96
        %v4014 = vpop.permute.xlu0 %4013
        %4015 = vrot.lane.b32.xlu0 %v531, 96
        %v4016 = vpop.permute.xlu0 %4015
        %4017 = vrot.lane.b32.xlu0 %v537, 96
        %v4018 = vpop.permute.xlu0 %4017
        %4019 = vrot.lane.b32.xlu0 %v543, 96
        %v4020 = vpop.permute.xlu0 %4019
        %4021 = vrot.lane.b32.xlu0 %v549, 96
        %v4022 = vpop.permute.xlu0 %4021
        %4023 = vrot.lane.b32.xlu0 %v555, 96
        %v4024 = vpop.permute.xlu0 %4023
        %4025 = vrot.lane.b32.xlu0 %v561, 96
        %v4026 = vpop.permute.xlu0 %4025
        %4027 = vrot.lane.b32.xlu0 %v567, 96
        %v4028 = vpop.permute.xlu0 %4027
        %4029 = vrot.lane.b32.xlu0 %v573, 96
        %v4030 = vpop.permute.xlu0 %4029
        %4031 = vrot.lane.b32.xlu0 %v642, 32
        %v4032 = vpop.permute.xlu0 %4031
        %4033 = vrot.lane.b32.xlu0 %v648, 32
        %v4034 = vpop.permute.xlu0 %4033
        %4035 = vrot.lane.b32.xlu0 %v654, 32
        %v4036 = vpop.permute.xlu0 %4035
        %4037 = vrot.lane.b32.xlu0 %v660, 32
        %v4038 = vpop.permute.xlu0 %4037
        %4039 = vrot.lane.b32.xlu0 %v666, 32
        %v4040 = vpop.permute.xlu0 %4039
        %4041 = vrot.lane.b32.xlu0 %v672, 32
        %v4042 = vpop.permute.xlu0 %4041
        %4043 = vrot.lane.b32.xlu0 %v678, 32
        %v4044 = vpop.permute.xlu0 %4043
        %4045 = vrot.lane.b32.xlu0 %v684, 32
        %v4046 = vpop.permute.xlu0 %4045
        %4047 = vrot.lane.b32.xlu0 %v690, 32
        %v4048 = vpop.permute.xlu0 %4047
        %4049 = vrot.lane.b32.xlu0 %v696, 32
        %v4050 = vpop.permute.xlu0 %4049
        %4051 = vrot.lane.b32.xlu0 %v702, 32
        %v4052 = vpop.permute.xlu0 %4051
        %4053 = vrot.lane.b32.xlu0 %v708, 32
        %v4054 = vpop.permute.xlu0 %4053
        %4055 = vrot.lane.b32.xlu0 %v714, 32
        %v4056 = vpop.permute.xlu0 %4055
        %4057 = vrot.lane.b32.xlu0 %v720, 32
        %v4058 = vpop.permute.xlu0 %4057
        %4059 = vrot.lane.b32.xlu0 %v726, 32
        %v4060 = vpop.permute.xlu0 %4059
        %4061 = vrot.lane.b32.xlu0 %v732, 32
        %v4062 = vpop.permute.xlu0 %4061
        %v4063 = vsel %vm964, %v4000, 0
        %v4065 = vsel %vm964, %v4002, 0
        %v4067 = vsel %vm964, %v4004, 0
        %v4069 = vsel %vm964, %v4006, 0
        %v4071 = vsel %vm964, %v4008, 0
        %v4073 = vsel %vm964, %v4010, 0
        %v4075 = vsel %vm964, %v4012, 0
        %v4077 = vsel %vm964, %v4014, 0
        %v4079 = vsel %vm964, %v4016, 0
        %v4081 = vsel %vm964, %v4018, 0
        %v4083 = vsel %vm964, %v4020, 0
        %v4085 = vsel %vm964, %v4022, 0
        %v4087 = vsel %vm964, %v4024, 0
        %v4089 = vsel %vm964, %v4026, 0
        %v4091 = vsel %vm964, %v4028, 0
        %v4093 = vsel %vm964, %v4030, 0
        %v4095 = vsel %vm964, %v4032, 0
        %v4097 = vsel %vm964, %v4034, 0
        %v4099 = vsel %vm964, %v4036, 0
        %v4101 = vsel %vm964, %v4038, 0
        %v4103 = vsel %vm964, %v4040, 0
        %v4105 = vsel %vm964, %v4042, 0
        %v4107 = vsel %vm964, %v4044, 0
        %v4109 = vsel %vm964, %v4046, 0
        %v4111 = vsel %vm964, %v4048, 0
        %v4113 = vsel %vm964, %v4050, 0
        %v4115 = vsel %vm964, %v4052, 0
        %v4117 = vsel %vm964, %v4054, 0
        %v4119 = vsel %vm964, %v4056, 0
        %v4121 = vsel %vm964, %v4058, 0
        %v4123 = vsel %vm964, %v4060, 0
        %v4125 = vsel %vm964, %v4062, 0
        %4127 = vmatprep.subr.mxu0 0.0
        %4128 = vmatpush1.xpose.msra.mxu0 %v4125
        %4129 = vmatprep.subr.mxu0 0.0
        %4130 = vmatpush1.xpose.msra.mxu0 %v4123
        %4131 = vmatprep.subr.mxu0 0.0
        %4132 = vmatpush1.xpose.msra.mxu0 %v4121
        %4133 = vmatprep.subr.mxu0 0.0
        %4134 = vmatpush1.xpose.msra.mxu0 %v4119
        %4135 = vmatprep.subr.mxu0 0.0
        %4136 = vmatpush1.xpose.msra.mxu0 %v4117
        %4137 = vmatprep.subr.mxu0 0.0
        %4138 = vmatpush1.xpose.msra.mxu0 %v4115
        %4139 = vmatprep.subr.mxu0 0.0
        %4140 = vmatpush1.xpose.msra.mxu0 %v4113
        %4141 = vmatprep.subr.mxu0 0.0
        %4142 = vmatpush1.xpose.msra.mxu0 %v4111
        %4143 = vmatprep.subr.mxu0 0.0
        %4144 = vmatpush1.xpose.msra.mxu0 %v4109
        %4145 = vmatprep.subr.mxu0 0.0
        %4146 = vmatpush1.xpose.msra.mxu0 %v4107
        %4147 = vmatprep.subr.mxu0 0.0
        %4148 = vmatpush1.xpose.msra.mxu0 %v4105
        %4149 = vmatprep.subr.mxu0 0.0
        %4150 = vmatpush1.xpose.msra.mxu0 %v4103
        %4151 = vmatprep.subr.mxu0 0.0
        %4152 = vmatpush1.xpose.msra.mxu0 %v4101
        %4153 = vmatprep.subr.mxu0 0.0
        %4154 = vmatpush1.xpose.msra.mxu0 %v4099
        %4155 = vmatprep.subr.mxu0 0.0
        %4156 = vmatpush1.xpose.msra.mxu0 %v4097
        %4157 = vmatprep.subr.mxu0 0.0
        %4158 = vmatpush1.xpose.msra.mxu0 %v4095
        %4159 = vmatprep.subr.mxu0 0.0
        %4160 = vmatpush2.xpose.msra.mxu0 0.0
        %4161 = vmatprep.subr.mxu0 0.0
        %4162 = vmatpush2.xpose.msra.mxu0 0.0
        %4163 = vmatprep.subr.mxu0 0.0
        %4164 = vmatpush2.xpose.msra.mxu0 0.0
        %4165 = vmatprep.subr.mxu0 0.0
        %4166 = vmatpush2.xpose.msra.mxu0 0.0
        %4167 = vmatprep.subr.mxu0 0.0
        %4168 = vmatpush2.xpose.msra.mxu0 0.0
        %4169 = vmatprep.subr.mxu0 0.0
        %4170 = vmatpush2.xpose.msra.mxu0 0.0
        %4171 = vmatprep.subr.mxu0 0.0
        %4172 = vmatpush2.xpose.msra.mxu0 0.0
        %4173 = vmatprep.subr.mxu0 0.0
        %4174 = vmatpush2.xpose.msra.mxu0 0.0
        %4175 = vmatprep.subr.mxu0 0.0
        %4176 = vmatpush2.xpose.msra.mxu0 0.0
        %4177 = vmatprep.subr.mxu0 0.0
        %4178 = vmatpush2.xpose.msra.mxu0 0.0
        %4179 = vmatprep.subr.mxu0 0.0
        %4180 = vmatpush2.xpose.msra.mxu0 0.0
        %4181 = vmatprep.subr.mxu0 0.0
        %4182 = vmatpush2.xpose.msra.mxu0 0.0
        %4183 = vmatprep.subr.mxu0 0.0
        %4184 = vmatpush2.xpose.msra.mxu0 0.0
        %4185 = vmatprep.subr.mxu0 0.0
        %4186 = vmatpush2.xpose.msra.mxu0 0.0
        %4187 = vmatprep.subr.mxu0 0.0
        %4188 = vmatpush2.xpose.msra.mxu0 0.0
        %4189 = vmatprep.subr.mxu0 0.0
        %4190 = vmatpush2.xpose.msra.mxu0 0.0
        %4191 = vmatprep.mubr.f32.mxu0 0.0
        %4192 = vmatmul.mubr.f32.gmra.mxu0 %v4063
        %v4193 = vpop.f32.mrf.mxu0
        %v4194 = vadd.f32 0.0, %v4193
        %v4195 = vpop.f32.mrf.mxu0
        %4196 = vmatprep.mubr.f32.mxu0 0.0
        %4197 = vmatmul.mubr.f32.gmra.mxu0 %v4065
        %v4198 = vpop.f32.mrf.mxu0
        %v4199 = vadd.f32 0.0, %v4198
        %v4200 = vpop.f32.mrf.mxu0
        %4201 = vmatprep.mubr.f32.mxu0 0.0
        %4202 = vmatmul.mubr.f32.gmra.mxu0 %v4067
        %v4203 = vpop.f32.mrf.mxu0
        %v4204 = vadd.f32 0.0, %v4203
        %v4205 = vpop.f32.mrf.mxu0
        %4206 = vmatprep.mubr.f32.mxu0 0.0
        %4207 = vmatmul.mubr.f32.gmra.mxu0 %v4069
        %v4208 = vpop.f32.mrf.mxu0
        %v4209 = vadd.f32 0.0, %v4208
        %v4210 = vpop.f32.mrf.mxu0
        %4211 = vmatprep.mubr.f32.mxu0 0.0
        %4212 = vmatmul.mubr.f32.gmra.mxu0 %v4071
        %v4213 = vpop.f32.mrf.mxu0
        %v4214 = vadd.f32 0.0, %v4213
        %v4215 = vpop.f32.mrf.mxu0
        %4216 = vmatprep.mubr.f32.mxu0 0.0
        %4217 = vmatmul.mubr.f32.gmra.mxu0 %v4073
        %v4218 = vpop.f32.mrf.mxu0
        %v4219 = vadd.f32 0.0, %v4218
        %v4220 = vpop.f32.mrf.mxu0
        %4221 = vmatprep.mubr.f32.mxu0 0.0
        %4222 = vmatmul.mubr.f32.gmra.mxu0 %v4075
        %v4223 = vpop.f32.mrf.mxu0
        %v4224 = vadd.f32 0.0, %v4223
        %v4225 = vpop.f32.mrf.mxu0
        %4226 = vmatprep.mubr.f32.mxu0 0.0
        %4227 = vmatmul.mubr.f32.gmra.mxu0 %v4077
        %v4228 = vpop.f32.mrf.mxu0
        %v4229 = vadd.f32 0.0, %v4228
        %v4230 = vpop.f32.mrf.mxu0
        %4231 = vmatprep.mubr.f32.mxu0 0.0
        %4232 = vmatmul.mubr.f32.gmra.mxu0 %v4079
        %v4233 = vpop.f32.mrf.mxu0
        %v4234 = vadd.f32 0.0, %v4233
        %v4235 = vpop.f32.mrf.mxu0
        %4236 = vmatprep.mubr.f32.mxu0 0.0
        %4237 = vmatmul.mubr.f32.gmra.mxu0 %v4081
        %v4238 = vpop.f32.mrf.mxu0
        %v4239 = vadd.f32 0.0, %v4238
        %v4240 = vpop.f32.mrf.mxu0
        %4241 = vmatprep.mubr.f32.mxu0 0.0
        %4242 = vmatmul.mubr.f32.gmra.mxu0 %v4083
        %v4243 = vpop.f32.mrf.mxu0
        %v4244 = vadd.f32 0.0, %v4243
        %v4245 = vpop.f32.mrf.mxu0
        %4246 = vmatprep.mubr.f32.mxu0 0.0
        %4247 = vmatmul.mubr.f32.gmra.mxu0 %v4085
        %v4248 = vpop.f32.mrf.mxu0
        %v4249 = vadd.f32 0.0, %v4248
        %v4250 = vpop.f32.mrf.mxu0
        %4251 = vmatprep.mubr.f32.mxu0 0.0
        %4252 = vmatmul.mubr.f32.gmra.mxu0 %v4087
        %v4253 = vpop.f32.mrf.mxu0
        %v4254 = vadd.f32 0.0, %v4253
        %v4255 = vpop.f32.mrf.mxu0
        %4256 = vmatprep.mubr.f32.mxu0 0.0
        %4257 = vmatmul.mubr.f32.gmra.mxu0 %v4089
        %v4258 = vpop.f32.mrf.mxu0
        %v4259 = vadd.f32 0.0, %v4258
        %v4260 = vpop.f32.mrf.mxu0
        %4261 = vmatprep.mubr.f32.mxu0 0.0
        %4262 = vmatmul.mubr.f32.gmra.mxu0 %v4091
        %v4263 = vpop.f32.mrf.mxu0
        %v4264 = vadd.f32 0.0, %v4263
        %v4265 = vpop.f32.mrf.mxu0
        %4266 = vmatprep.mubr.f32.mxu0 0.0
        %4267 = vmatmul.mubr.f32.gmra.mxu0 %v4093
        %v4268 = vpop.f32.mrf.mxu0
        %v4269 = vadd.f32 0.0, %v4268
        %v4270 = vpop.f32.mrf.mxu0
        %4271 = vdwg.mxu0
        %v4272 = vmul.f32 %v4194, 0.17677669
        %v4273 = vmul.f32 %v4199, 0.17677669
        %v4274 = vmul.f32 %v4204, 0.17677669
        %v4275 = vmul.f32 %v4209, 0.17677669
        %v4276 = vmul.f32 %v4214, 0.17677669
        %v4277 = vmul.f32 %v4219, 0.17677669
        %v4278 = vmul.f32 %v4224, 0.17677669
        %v4279 = vmul.f32 %v4229, 0.17677669
        %v4280 = vmul.f32 %v4234, 0.17677669
        %v4281 = vmul.f32 %v4239, 0.17677669
        %v4282 = vmul.f32 %v4244, 0.17677669
        %v4283 = vmul.f32 %v4249, 0.17677669
        %v4284 = vmul.f32 %v4254, 0.17677669
        %v4285 = vmul.f32 %v4259, 0.17677669
        %v4286 = vmul.f32 %v4264, 0.17677669
        %v4287 = vmul.f32 %v4269, 0.17677669
        %v4288 = vsel %vm900, %v4272, -inf
        %v4289 = vsel %vm901, %v4273, -inf
        %v4290 = vsel %vm902, %v4274, -inf
        %v4291 = vsel %vm903, %v4275, -inf
        %v4292 = vsel %vm904, %v4276, -inf
        %v4293 = vsel %vm905, %v4277, -inf
        %v4294 = vsel %vm906, %v4278, -inf
        %v4295 = vsel %vm907, %v4279, -inf
        %v4296 = vsel %vm908, %v4280, -inf
        %v4297 = vsel %vm909, %v4281, -inf
        %v4298 = vsel %vm910, %v4282, -inf
        %v4299 = vsel %vm911, %v4283, -inf
        %v4300 = vsel %vm912, %v4284, -inf
        %v4301 = vsel %vm913, %v4285, -inf
        %v4302 = vsel %vm914, %v4286, -inf
        %v4303 = vsel %vm915, %v4287, -inf
        %4304 = vmax.xlane.f32.xlu0 %v4288
        %v4305 = vpop.xlane.xlu0 %4304
        %4306 = vmax.xlane.f32.xlu0 %v4289
        %v4307 = vpop.xlane.xlu0 %4306
        %4308 = vmax.xlane.f32.xlu0 %v4290
        %v4309 = vpop.xlane.xlu0 %4308
        %4310 = vmax.xlane.f32.xlu0 %v4291
        %v4311 = vpop.xlane.xlu0 %4310
        %4312 = vmax.xlane.f32.xlu0 %v4292
        %v4313 = vpop.xlane.xlu0 %4312
        %4314 = vmax.xlane.f32.xlu0 %v4293
        %v4315 = vpop.xlane.xlu0 %4314
        %4316 = vmax.xlane.f32.xlu0 %v4294
        %v4317 = vpop.xlane.xlu0 %4316
        %4318 = vmax.xlane.f32.xlu0 %v4295
        %v4319 = vpop.xlane.xlu0 %4318
        %4320 = vmax.xlane.f32.xlu0 %v4296
        %v4321 = vpop.xlane.xlu0 %4320
        %4322 = vmax.xlane.f32.xlu0 %v4297
        %v4323 = vpop.xlane.xlu0 %4322
        %4324 = vmax.xlane.f32.xlu0 %v4298
        %v4325 = vpop.xlane.xlu0 %4324
        %4326 = vmax.xlane.f32.xlu0 %v4299
        %v4327 = vpop.xlane.xlu0 %4326
        %4328 = vmax.xlane.f32.xlu0 %v4300
        %v4329 = vpop.xlane.xlu0 %4328
        %4330 = vmax.xlane.f32.xlu0 %v4301
        %v4331 = vpop.xlane.xlu0 %4330
        %4332 = vmax.xlane.f32.xlu0 %v4302
        %v4333 = vpop.xlane.xlu0 %4332
        %4334 = vmax.xlane.f32.xlu0 %v4303
        %v4335 = vpop.xlane.xlu0 %4334
        %v4336 = vsub.f32 %v4288, %v4305
        %v4337 = vsub.f32 %v4289, %v4307
        %v4338 = vsub.f32 %v4290, %v4309
        %v4339 = vsub.f32 %v4291, %v4311
        %v4340 = vsub.f32 %v4292, %v4313
        %v4341 = vsub.f32 %v4293, %v4315
        %v4342 = vsub.f32 %v4294, %v4317
        %v4343 = vsub.f32 %v4295, %v4319
        %v4344 = vsub.f32 %v4296, %v4321
        %v4345 = vsub.f32 %v4297, %v4323
        %v4346 = vsub.f32 %v4298, %v4325
        %v4347 = vsub.f32 %v4299, %v4327
        %v4348 = vsub.f32 %v4300, %v4329
        %v4349 = vsub.f32 %v4301, %v4331
        %v4350 = vsub.f32 %v4302, %v4333
        %v4351 = vsub.f32 %v4303, %v4335
        %v4352 = vmul.f32 %v4336, 1.442695
        %v4353 = vpow.pop %v4352
        %v4354 = vmul.f32 %v4337, 1.442695
        %v4355 = vpow.pop %v4354
        %v4356 = vmul.f32 %v4338, 1.442695
        %v4357 = vpow.pop %v4356
        %v4358 = vmul.f32 %v4339, 1.442695
        %v4359 = vpow.pop %v4358
        %v4360 = vmul.f32 %v4340, 1.442695
        %v4361 = vpow.pop %v4360
        %v4362 = vmul.f32 %v4341, 1.442695
        %v4363 = vpow.pop %v4362
        %v4364 = vmul.f32 %v4342, 1.442695
        %v4365 = vpow.pop %v4364
        %v4366 = vmul.f32 %v4343, 1.442695
        %v4367 = vpow.pop %v4366
        %v4368 = vmul.f32 %v4344, 1.442695
        %v4369 = vpow.pop %v4368
        %v4370 = vmul.f32 %v4345, 1.442695
        %v4371 = vpow.pop %v4370
        %v4372 = vmul.f32 %v4346, 1.442695
        %v4373 = vpow.pop %v4372
        %v4374 = vmul.f32 %v4347, 1.442695
        %v4375 = vpow.pop %v4374
        %v4376 = vmul.f32 %v4348, 1.442695
        %v4377 = vpow.pop %v4376
        %v4378 = vmul.f32 %v4349, 1.442695
        %v4379 = vpow.pop %v4378
        %v4380 = vmul.f32 %v4350, 1.442695
        %v4381 = vpow.pop %v4380
        %v4382 = vmul.f32 %v4351, 1.442695
        %v4383 = vpow.pop %v4382
        %4384 = vadd.xlane.f32.xlu0 %v4353
        %v4385 = vpop.xlane.xlu0 %4384
        %4386 = vadd.xlane.f32.xlu0 %v4355
        %v4387 = vpop.xlane.xlu0 %4386
        %4388 = vadd.xlane.f32.xlu0 %v4357
        %v4389 = vpop.xlane.xlu0 %4388
        %4390 = vadd.xlane.f32.xlu0 %v4359
        %v4391 = vpop.xlane.xlu0 %4390
        %4392 = vadd.xlane.f32.xlu0 %v4361
        %v4393 = vpop.xlane.xlu0 %4392
        %4394 = vadd.xlane.f32.xlu0 %v4363
        %v4395 = vpop.xlane.xlu0 %4394
        %4396 = vadd.xlane.f32.xlu0 %v4365
        %v4397 = vpop.xlane.xlu0 %4396
        %4398 = vadd.xlane.f32.xlu0 %v4367
        %v4399 = vpop.xlane.xlu0 %4398
        %4400 = vadd.xlane.f32.xlu0 %v4369
        %v4401 = vpop.xlane.xlu0 %4400
        %4402 = vadd.xlane.f32.xlu0 %v4371
        %v4403 = vpop.xlane.xlu0 %4402
        %4404 = vadd.xlane.f32.xlu0 %v4373
        %v4405 = vpop.xlane.xlu0 %4404
        %4406 = vadd.xlane.f32.xlu0 %v4375
        %v4407 = vpop.xlane.xlu0 %4406
        %4408 = vadd.xlane.f32.xlu0 %v4377
        %v4409 = vpop.xlane.xlu0 %4408
        %4410 = vadd.xlane.f32.xlu0 %v4379
        %v4411 = vpop.xlane.xlu0 %4410
        %4412 = vadd.xlane.f32.xlu0 %v4381
        %v4413 = vpop.xlane.xlu0 %4412
        %4414 = vadd.xlane.f32.xlu0 %v4383
        %v4415 = vpop.xlane.xlu0 %4414
        %v4416 = vrcp.pop %v4385
        %v4417 = vrcp.pop %v4387
        %v4418 = vrcp.pop %v4389
        %v4419 = vrcp.pop %v4391
        %v4420 = vrcp.pop %v4393
        %v4421 = vrcp.pop %v4395
        %v4422 = vrcp.pop %v4397
        %v4423 = vrcp.pop %v4399
        %v4424 = vrcp.pop %v4401
        %v4425 = vrcp.pop %v4403
        %v4426 = vrcp.pop %v4405
        %v4427 = vrcp.pop %v4407
        %v4428 = vrcp.pop %v4409
        %v4429 = vrcp.pop %v4411
        %v4430 = vrcp.pop %v4413
        %v4431 = vrcp.pop %v4415
        %v4432 = vmul.f32 %v4353, %v4416
        %v4433 = vmul.f32 %v4355, %v4417
        %v4434 = vmul.f32 %v4357, %v4418
        %v4435 = vmul.f32 %v4359, %v4419
        %v4436 = vmul.f32 %v4361, %v4420
        %v4437 = vmul.f32 %v4363, %v4421
        %v4438 = vmul.f32 %v4365, %v4422
        %v4439 = vmul.f32 %v4367, %v4423
        %v4440 = vmul.f32 %v4369, %v4424
        %v4441 = vmul.f32 %v4371, %v4425
        %v4442 = vmul.f32 %v4373, %v4426
        %v4443 = vmul.f32 %v4375, %v4427
        %v4444 = vmul.f32 %v4377, %v4428
        %v4445 = vmul.f32 %v4379, %v4429
        %v4446 = vmul.f32 %v4381, %v4430
        %v4447 = vmul.f32 %v4383, %v4431
        %4464 = vrot.lane.b32.xlu0 %v803, 96
        %v4465 = vpop.permute.xlu0 %4464
        %4466 = vrot.lane.b32.xlu0 %v808, 96
        %v4467 = vpop.permute.xlu0 %4466
        %4468 = vrot.lane.b32.xlu0 %v813, 96
        %v4469 = vpop.permute.xlu0 %4468
        %4470 = vrot.lane.b32.xlu0 %v818, 96
        %v4471 = vpop.permute.xlu0 %4470
        %4472 = vrot.lane.b32.xlu0 %v823, 96
        %v4473 = vpop.permute.xlu0 %4472
        %4474 = vrot.lane.b32.xlu0 %v828, 96
        %v4475 = vpop.permute.xlu0 %4474
        %4476 = vrot.lane.b32.xlu0 %v833, 96
        %v4477 = vpop.permute.xlu0 %4476
        %4478 = vrot.lane.b32.xlu0 %v838, 96
        %v4479 = vpop.permute.xlu0 %4478
        %4480 = vrot.lane.b32.xlu0 %v843, 96
        %v4481 = vpop.permute.xlu0 %4480
        %4482 = vrot.lane.b32.xlu0 %v848, 96
        %v4483 = vpop.permute.xlu0 %4482
        %4484 = vrot.lane.b32.xlu0 %v853, 96
        %v4485 = vpop.permute.xlu0 %4484
        %4486 = vrot.lane.b32.xlu0 %v858, 96
        %v4487 = vpop.permute.xlu0 %4486
        %4488 = vrot.lane.b32.xlu0 %v863, 96
        %v4489 = vpop.permute.xlu0 %4488
        %4490 = vrot.lane.b32.xlu0 %v868, 96
        %v4491 = vpop.permute.xlu0 %4490
        %4492 = vrot.lane.b32.xlu0 %v873, 96
        %v4493 = vpop.permute.xlu0 %4492
        %4494 = vrot.lane.b32.xlu0 %v878, 96
        %v4495 = vpop.permute.xlu0 %4494
        %4512 = vmatprep.subr.mxu0 0.0
        %4513 = vmatpush1.msra.mxu0 %v4495
        %4514 = vmatprep.subr.mxu0 0.0
        %4515 = vmatpush1.msra.mxu0 %v4493
        %4516 = vmatprep.subr.mxu0 0.0
        %4517 = vmatpush1.msra.mxu0 %v4491
        %4518 = vmatprep.subr.mxu0 0.0
        %4519 = vmatpush1.msra.mxu0 %v4489
        %4520 = vmatprep.subr.mxu0 0.0
        %4521 = vmatpush1.msra.mxu0 %v4487
        %4522 = vmatprep.subr.mxu0 0.0
        %4523 = vmatpush1.msra.mxu0 %v4485
        %4524 = vmatprep.subr.mxu0 0.0
        %4525 = vmatpush1.msra.mxu0 %v4483
        %4526 = vmatprep.subr.mxu0 0.0
        %4527 = vmatpush1.msra.mxu0 %v4481
        %4528 = vmatprep.subr.mxu0 0.0
        %4529 = vmatpush1.msra.mxu0 %v4479
        %4530 = vmatprep.subr.mxu0 0.0
        %4531 = vmatpush1.msra.mxu0 %v4477
        %4532 = vmatprep.subr.mxu0 0.0
        %4533 = vmatpush1.msra.mxu0 %v4475
        %4534 = vmatprep.subr.mxu0 0.0
        %4535 = vmatpush1.msra.mxu0 %v4473
        %4536 = vmatprep.subr.mxu0 0.0
        %4537 = vmatpush1.msra.mxu0 %v4471
        %4538 = vmatprep.subr.mxu0 0.0
        %4539 = vmatpush1.msra.mxu0 %v4469
        %4540 = vmatprep.subr.mxu0 0.0
        %4541 = vmatpush1.msra.mxu0 %v4467
        %4542 = vmatprep.subr.mxu0 0.0
        %4543 = vmatpush1.msra.mxu0 %v4465
        %4544 = vmatprep.subr.mxu0 0.0
        %4545 = vmatpush2.msra.mxu0 0.0
        %4546 = vmatprep.subr.mxu0 0.0
        %4547 = vmatpush2.msra.mxu0 0.0
        %4548 = vmatprep.subr.mxu0 0.0
        %4549 = vmatpush2.msra.mxu0 0.0
        %4550 = vmatprep.subr.mxu0 0.0
        %4551 = vmatpush2.msra.mxu0 0.0
        %4552 = vmatprep.subr.mxu0 0.0
        %4553 = vmatpush2.msra.mxu0 0.0
        %4554 = vmatprep.subr.mxu0 0.0
        %4555 = vmatpush2.msra.mxu0 0.0
        %4556 = vmatprep.subr.mxu0 0.0
        %4557 = vmatpush2.msra.mxu0 0.0
        %4558 = vmatprep.subr.mxu0 0.0
        %4559 = vmatpush2.msra.mxu0 0.0
        %4560 = vmatprep.subr.mxu0 0.0
        %4561 = vmatpush2.msra.mxu0 0.0
        %4562 = vmatprep.subr.mxu0 0.0
        %4563 = vmatpush2.msra.mxu0 0.0
        %4564 = vmatprep.subr.mxu0 0.0
        %4565 = vmatpush2.msra.mxu0 0.0
        %4566 = vmatprep.subr.mxu0 0.0
        %4567 = vmatpush2.msra.mxu0 0.0
        %4568 = vmatprep.subr.mxu0 0.0
        %4569 = vmatpush2.msra.mxu0 0.0
        %4570 = vmatprep.subr.mxu0 0.0
        %4571 = vmatpush2.msra.mxu0 0.0
        %4572 = vmatprep.subr.mxu0 0.0
        %4573 = vmatpush2.msra.mxu0 0.0
        %4574 = vmatprep.subr.mxu0 0.0
        %4575 = vmatpush2.msra.mxu0 0.0
        %4576 = vmatprep.mubr.f32.mxu0 0.0
        %4577 = vmatmul.mubr.f32.gmra.mxu0 %v4432
        %v4578 = vpop.f32.mrf.mxu0
        %v4579 = vadd.f32 0.0, %v4578
        %v4580 = vpop.f32.mrf.mxu0
        %4581 = vmatprep.mubr.f32.mxu0 0.0
        %4582 = vmatmul.mubr.f32.gmra.mxu0 %v4433
        %v4583 = vpop.f32.mrf.mxu0
        %v4584 = vadd.f32 0.0, %v4583
        %v4585 = vpop.f32.mrf.mxu0
        %4586 = vmatprep.mubr.f32.mxu0 0.0
        %4587 = vmatmul.mubr.f32.gmra.mxu0 %v4434
        %v4588 = vpop.f32.mrf.mxu0
        %v4589 = vadd.f32 0.0, %v4588
        %v4590 = vpop.f32.mrf.mxu0
        %4591 = vmatprep.mubr.f32.mxu0 0.0
        %4592 = vmatmul.mubr.f32.gmra.mxu0 %v4435
        %v4593 = vpop.f32.mrf.mxu0
        %v4594 = vadd.f32 0.0, %v4593
        %v4595 = vpop.f32.mrf.mxu0
        %4596 = vmatprep.mubr.f32.mxu0 0.0
        %4597 = vmatmul.mubr.f32.gmra.mxu0 %v4436
        %v4598 = vpop.f32.mrf.mxu0
        %v4599 = vadd.f32 0.0, %v4598
        %v4600 = vpop.f32.mrf.mxu0
        %4601 = vmatprep.mubr.f32.mxu0 0.0
        %4602 = vmatmul.mubr.f32.gmra.mxu0 %v4437
        %v4603 = vpop.f32.mrf.mxu0
        %v4604 = vadd.f32 0.0, %v4603
        %v4605 = vpop.f32.mrf.mxu0
        %4606 = vmatprep.mubr.f32.mxu0 0.0
        %4607 = vmatmul.mubr.f32.gmra.mxu0 %v4438
        %v4608 = vpop.f32.mrf.mxu0
        %v4609 = vadd.f32 0.0, %v4608
        %v4610 = vpop.f32.mrf.mxu0
        %4611 = vmatprep.mubr.f32.mxu0 0.0
        %4612 = vmatmul.mubr.f32.gmra.mxu0 %v4439
        %v4613 = vpop.f32.mrf.mxu0
        %v4614 = vadd.f32 0.0, %v4613
        %v4615 = vpop.f32.mrf.mxu0
        %4616 = vmatprep.mubr.f32.mxu0 0.0
        %4617 = vmatmul.mubr.f32.gmra.mxu0 %v4440
        %v4618 = vpop.f32.mrf.mxu0
        %v4619 = vadd.f32 0.0, %v4618
        %v4620 = vpop.f32.mrf.mxu0
        %4621 = vmatprep.mubr.f32.mxu0 0.0
        %4622 = vmatmul.mubr.f32.gmra.mxu0 %v4441
        %v4623 = vpop.f32.mrf.mxu0
        %v4624 = vadd.f32 0.0, %v4623
        %v4625 = vpop.f32.mrf.mxu0
        %4626 = vmatprep.mubr.f32.mxu0 0.0
        %4627 = vmatmul.mubr.f32.gmra.mxu0 %v4442
        %v4628 = vpop.f32.mrf.mxu0
        %v4629 = vadd.f32 0.0, %v4628
        %v4630 = vpop.f32.mrf.mxu0
        %4631 = vmatprep.mubr.f32.mxu0 0.0
        %4632 = vmatmul.mubr.f32.gmra.mxu0 %v4443
        %v4633 = vpop.f32.mrf.mxu0
        %v4634 = vadd.f32 0.0, %v4633
        %v4635 = vpop.f32.mrf.mxu0
        %4636 = vmatprep.mubr.f32.mxu0 0.0
        %4637 = vmatmul.mubr.f32.gmra.mxu0 %v4444
        %v4638 = vpop.f32.mrf.mxu0
        %v4639 = vadd.f32 0.0, %v4638
        %v4640 = vpop.f32.mrf.mxu0
        %4641 = vmatprep.mubr.f32.mxu0 0.0
        %4642 = vmatmul.mubr.f32.gmra.mxu0 %v4445
        %v4643 = vpop.f32.mrf.mxu0
        %v4644 = vadd.f32 0.0, %v4643
        %v4645 = vpop.f32.mrf.mxu0
        %4646 = vmatprep.mubr.f32.mxu0 0.0
        %4647 = vmatmul.mubr.f32.gmra.mxu0 %v4446
        %v4648 = vpop.f32.mrf.mxu0
        %v4649 = vadd.f32 0.0, %v4648
        %v4650 = vpop.f32.mrf.mxu0
        %4651 = vmatprep.mubr.f32.mxu0 0.0
        %4652 = vmatmul.mubr.f32.gmra.mxu0 %v4447
        %v4653 = vpop.f32.mrf.mxu0
        %v4654 = vadd.f32 0.0, %v4653
        %v4655 = vpop.f32.mrf.mxu0
        %4656 = vdwg.mxu0
        %4673 = vrot.lane.b32.xlu0 %v2091, 32
        %v4674 = vpop.permute.xlu0 %4673
        %4675 = vrot.lane.b32.xlu0 %v2096, 32
        %v4676 = vpop.permute.xlu0 %4675
        %4677 = vrot.lane.b32.xlu0 %v2101, 32
        %v4678 = vpop.permute.xlu0 %4677
        %4679 = vrot.lane.b32.xlu0 %v2106, 32
        %v4680 = vpop.permute.xlu0 %4679
        %4681 = vrot.lane.b32.xlu0 %v2111, 32
        %v4682 = vpop.permute.xlu0 %4681
        %4683 = vrot.lane.b32.xlu0 %v2116, 32
        %v4684 = vpop.permute.xlu0 %4683
        %4685 = vrot.lane.b32.xlu0 %v2121, 32
        %v4686 = vpop.permute.xlu0 %4685
        %4687 = vrot.lane.b32.xlu0 %v2126, 32
        %v4688 = vpop.permute.xlu0 %4687
        %4689 = vrot.lane.b32.xlu0 %v2131, 32
        %v4690 = vpop.permute.xlu0 %4689
        %4691 = vrot.lane.b32.xlu0 %v2136, 32
        %v4692 = vpop.permute.xlu0 %4691
        %4693 = vrot.lane.b32.xlu0 %v2141, 32
        %v4694 = vpop.permute.xlu0 %4693
        %4695 = vrot.lane.b32.xlu0 %v2146, 32
        %v4696 = vpop.permute.xlu0 %4695
        %4697 = vrot.lane.b32.xlu0 %v2151, 32
        %v4698 = vpop.permute.xlu0 %4697
        %4699 = vrot.lane.b32.xlu0 %v2156, 32
        %v4700 = vpop.permute.xlu0 %4699
        %4701 = vrot.lane.b32.xlu0 %v2161, 32
        %v4702 = vpop.permute.xlu0 %4701
        %4703 = vrot.lane.b32.xlu0 %v2166, 32
        %v4704 = vpop.permute.xlu0 %4703
        %4737 = vrot.lane.b32.xlu0 %v2717, 64
        %v4738 = vpop.permute.xlu0 %4737
        %4739 = vrot.lane.b32.xlu0 %v2722, 64
        %v4740 = vpop.permute.xlu0 %4739
        %4741 = vrot.lane.b32.xlu0 %v2727, 64
        %v4742 = vpop.permute.xlu0 %4741
        %4743 = vrot.lane.b32.xlu0 %v2732, 64
        %v4744 = vpop.permute.xlu0 %4743
        %4745 = vrot.lane.b32.xlu0 %v2737, 64
        %v4746 = vpop.permute.xlu0 %4745
        %4747 = vrot.lane.b32.xlu0 %v2742, 64
        %v4748 = vpop.permute.xlu0 %4747
        %4749 = vrot.lane.b32.xlu0 %v2747, 64
        %v4750 = vpop.permute.xlu0 %4749
        %4751 = vrot.lane.b32.xlu0 %v2752, 64
        %v4752 = vpop.permute.xlu0 %4751
        %4753 = vrot.lane.b32.xlu0 %v2757, 64
        %v4754 = vpop.permute.xlu0 %4753
        %4755 = vrot.lane.b32.xlu0 %v2762, 64
        %v4756 = vpop.permute.xlu0 %4755
        %4757 = vrot.lane.b32.xlu0 %v2767, 64
        %v4758 = vpop.permute.xlu0 %4757
        %4759 = vrot.lane.b32.xlu0 %v2772, 64
        %v4760 = vpop.permute.xlu0 %4759
        %4761 = vrot.lane.b32.xlu0 %v2777, 64
        %v4762 = vpop.permute.xlu0 %4761
        %4763 = vrot.lane.b32.xlu0 %v2782, 64
        %v4764 = vpop.permute.xlu0 %4763
        %4765 = vrot.lane.b32.xlu0 %v2787, 64
        %v4766 = vpop.permute.xlu0 %4765
        %4767 = vrot.lane.b32.xlu0 %v2792, 64
        %v4768 = vpop.permute.xlu0 %4767
        %4801 = vrot.lane.b32.xlu0 %v3359, 96
        %v4802 = vpop.permute.xlu0 %4801
        %4803 = vrot.lane.b32.xlu0 %v3364, 96
        %v4804 = vpop.permute.xlu0 %4803
        %4805 = vrot.lane.b32.xlu0 %v3369, 96
        %v4806 = vpop.permute.xlu0 %4805
        %4807 = vrot.lane.b32.xlu0 %v3374, 96
        %v4808 = vpop.permute.xlu0 %4807
        %4809 = vrot.lane.b32.xlu0 %v3379, 96
        %v4810 = vpop.permute.xlu0 %4809
        %4811 = vrot.lane.b32.xlu0 %v3384, 96
        %v4812 = vpop.permute.xlu0 %4811
        %4813 = vrot.lane.b32.xlu0 %v3389, 96
        %v4814 = vpop.permute.xlu0 %4813
        %4815 = vrot.lane.b32.xlu0 %v3394, 96
        %v4816 = vpop.permute.xlu0 %4815
        %4817 = vrot.lane.b32.xlu0 %v3399, 96
        %v4818 = vpop.permute.xlu0 %4817
        %4819 = vrot.lane.b32.xlu0 %v3404, 96
        %v4820 = vpop.permute.xlu0 %4819
        %4821 = vrot.lane.b32.xlu0 %v3409, 96
        %v4822 = vpop.permute.xlu0 %4821
        %4823 = vrot.lane.b32.xlu0 %v3414, 96
        %v4824 = vpop.permute.xlu0 %4823
        %4825 = vrot.lane.b32.xlu0 %v3419, 96
        %v4826 = vpop.permute.xlu0 %4825
        %4827 = vrot.lane.b32.xlu0 %v3424, 96
        %v4828 = vpop.permute.xlu0 %4827
        %4829 = vrot.lane.b32.xlu0 %v3429, 96
        %v4830 = vpop.permute.xlu0 %4829
        %4831 = vrot.lane.b32.xlu0 %v3434, 96
        %v4832 = vpop.permute.xlu0 %4831
        %4865 = vrot.lane.b32.xlu0 %v4579, 32
        %v4866 = vpop.permute.xlu0 %4865
        %4867 = vrot.lane.b32.xlu0 %v4584, 32
        %v4868 = vpop.permute.xlu0 %4867
        %4869 = vrot.lane.b32.xlu0 %v4589, 32
        %v4870 = vpop.permute.xlu0 %4869
        %4871 = vrot.lane.b32.xlu0 %v4594, 32
        %v4872 = vpop.permute.xlu0 %4871
        %4873 = vrot.lane.b32.xlu0 %v4599, 32
        %v4874 = vpop.permute.xlu0 %4873
        %4875 = vrot.lane.b32.xlu0 %v4604, 32
        %v4876 = vpop.permute.xlu0 %4875
        %4877 = vrot.lane.b32.xlu0 %v4609, 32
        %v4878 = vpop.permute.xlu0 %4877
        %4879 = vrot.lane.b32.xlu0 %v4614, 32
        %v4880 = vpop.permute.xlu0 %4879
        %4881 = vrot.lane.b32.xlu0 %v4619, 32
        %v4882 = vpop.permute.xlu0 %4881
        %4883 = vrot.lane.b32.xlu0 %v4624, 32
        %v4884 = vpop.permute.xlu0 %4883
        %4885 = vrot.lane.b32.xlu0 %v4629, 32
        %v4886 = vpop.permute.xlu0 %4885
        %4887 = vrot.lane.b32.xlu0 %v4634, 32
        %v4888 = vpop.permute.xlu0 %4887
        %4889 = vrot.lane.b32.xlu0 %v4639, 32
        %v4890 = vpop.permute.xlu0 %4889
        %4891 = vrot.lane.b32.xlu0 %v4644, 32
        %v4892 = vpop.permute.xlu0 %4891
        %4893 = vrot.lane.b32.xlu0 %v4649, 32
        %v4894 = vpop.permute.xlu0 %4893
        %4895 = vrot.lane.b32.xlu0 %v4654, 32
        %v4896 = vpop.permute.xlu0 %4895
        %v4913 = vsel %vm964, %v1433, %v4674
        %v4914 = vsel %vm964, %v1438, %v4676
        %v4915 = vsel %vm964, %v1443, %v4678
        %v4916 = vsel %vm964, %v1448, %v4680
        %v4917 = vsel %vm964, %v1453, %v4682
        %v4918 = vsel %vm964, %v1458, %v4684
        %v4919 = vsel %vm964, %v1463, %v4686
        %v4920 = vsel %vm964, %v1468, %v4688
        %v4921 = vsel %vm964, %v1473, %v4690
        %v4922 = vsel %vm964, %v1478, %v4692
        %v4923 = vsel %vm964, %v1483, %v4694
        %v4924 = vsel %vm964, %v1488, %v4696
        %v4925 = vsel %vm964, %v1493, %v4698
        %v4926 = vsel %vm964, %v1498, %v4700
        %v4927 = vsel %vm964, %v1503, %v4702
        %v4928 = vsel %vm964, %v1508, %v4704
        %v4929 = vsel %vm365, %v4913, %v4738
        %v4930 = vsel %vm365, %v4914, %v4740
        %v4931 = vsel %vm365, %v4915, %v4742
        %v4932 = vsel %vm365, %v4916, %v4744
        %v4933 = vsel %vm365, %v4917, %v4746
        %v4934 = vsel %vm365, %v4918, %v4748
        %v4935 = vsel %vm365, %v4919, %v4750
        %v4936 = vsel %vm365, %v4920, %v4752
        %v4937 = vsel %vm365, %v4921, %v4754
        %v4938 = vsel %vm365, %v4922, %v4756
        %v4939 = vsel %vm365, %v4923, %v4758
        %v4940 = vsel %vm365, %v4924, %v4760
        %v4941 = vsel %vm365, %v4925, %v4762
        %v4942 = vsel %vm365, %v4926, %v4764
        %v4943 = vsel %vm365, %v4927, %v4766
        %v4944 = vsel %vm365, %v4928, %v4768
        %vm4945 = vcmask 785408
        %v4946 = vsel %vm4945, %v4929, %v4802
        %v4947 = vsel %vm4945, %v4930, %v4804
        %v4948 = vsel %vm4945, %v4931, %v4806
        %v4949 = vsel %vm4945, %v4932, %v4808
        %v4950 = vsel %vm4945, %v4933, %v4810
        %v4951 = vsel %vm4945, %v4934, %v4812
        %v4952 = vsel %vm4945, %v4935, %v4814
        %v4953 = vsel %vm4945, %v4936, %v4816
        %v4954 = vsel %vm4945, %v4937, %v4818
        %v4955 = vsel %vm4945, %v4938, %v4820
        %v4956 = vsel %vm4945, %v4939, %v4822
        %v4957 = vsel %vm4945, %v4940, %v4824
        %v4958 = vsel %vm4945, %v4941, %v4826
        %v4959 = vsel %vm4945, %v4942, %v4828
        %v4960 = vsel %vm4945, %v4943, %v4830
        %v4961 = vsel %vm4945, %v4944, %v4832
        %v4962 = vsel %vm964, %v3921, %v4866
        %v4963 = vsel %vm964, %v3926, %v4868
        %v4964 = vsel %vm964, %v3931, %v4870
        %v4965 = vsel %vm964, %v3936, %v4872
        %v4966 = vsel %vm964, %v3941, %v4874
        %v4967 = vsel %vm964, %v3946, %v4876
        %v4968 = vsel %vm964, %v3951, %v4878
        %v4969 = vsel %vm964, %v3956, %v4880
        %v4970 = vsel %vm964, %v3961, %v4882
        %v4971 = vsel %vm964, %v3966, %v4884
        %v4972 = vsel %vm964, %v3971, %v4886
        %v4973 = vsel %vm964, %v3976, %v4888
        %v4974 = vsel %vm964, %v3981, %v4890
        %v4975 = vsel %vm964, %v3986, %v4892
        %v4976 = vsel %vm964, %v3991, %v4894
        %v4977 = vsel %vm964, %v3996, %v4896
        %v4978 = vld [vmem:[%s2] sm:$0xff]
        %v4979 = vld [vmem:[%s2 + $0x8] sm:$0xff]
        %v4980 = vld [vmem:[%s2 + $0x10] sm:$0xff]
        %v4981 = vld [vmem:[%s2 + $0x18] sm:$0xff]
        %v4982 = vld [vmem:[%s2 + $0x20] sm:$0xff]
        %v4983 = vld [vmem:[%s2 + $0x28] sm:$0xff]
        %v4984 = vld [vmem:[%s2 + $0x30] sm:$0xff]
        %v4985 = vld [vmem:[%s2 + $0x38] sm:$0xff]
        %v4986 = vld [vmem:[%s2 + $0x40] sm:$0xff]
        %v4987 = vld [vmem:[%s2 + $0x48] sm:$0xff]
        %v4988 = vld [vmem:[%s2 + $0x50] sm:$0xff]
        %v4989 = vld [vmem:[%s2 + $0x58] sm:$0xff]
        %v4990 = vld [vmem:[%s2 + $0x60] sm:$0xff]
        %v4991 = vld [vmem:[%s2 + $0x68] sm:$0xff]
        %v4992 = vld [vmem:[%s2 + $0x70] sm:$0xff]
        %v4993 = vld [vmem:[%s2 + $0x78] sm:$0xff]
        %v4994 = vld [vmem:[%s2 + $0x80] sm:$0xff]
        %v4995 = vld [vmem:[%s2 + $0x88] sm:$0xff]
        %v4996 = vld [vmem:[%s2 + $0x90] sm:$0xff]
        %v4997 = vld [vmem:[%s2 + $0x98] sm:$0xff]
        %v4998 = vld [vmem:[%s2 + $0xa0] sm:$0xff]
        %v4999 = vld [vmem:[%s2 + $0xa8] sm:$0xff]
        %v5000 = vld [vmem:[%s2 + $0xb0] sm:$0xff]
        %v5001 = vld [vmem:[%s2 + $0xb8] sm:$0xff]
        %v5002 = vld [vmem:[%s2 + $0xc0] sm:$0xff]
        %v5003 = vld [vmem:[%s2 + $0xc8] sm:$0xff]
        %v5004 = vld [vmem:[%s2 + $0xd0] sm:$0xff]
        %v5005 = vld [vmem:[%s2 + $0xd8] sm:$0xff]
        %v5006 = vld [vmem:[%s2 + $0xe0] sm:$0xff]
        %v5007 = vld [vmem:[%s2 + $0xe8] sm:$0xff]
        %v5008 = vld [vmem:[%s2 + $0xf0] sm:$0xff]
        %v5009 = vld [vmem:[%s2 + $0xf8] sm:$0xff]
        %v5010 = vld [vmem:[%s2 + $0x100] sm:$0xff]
        %v5011 = vld [vmem:[%s2 + $0x108] sm:$0xff]
        %v5012 = vld [vmem:[%s2 + $0x110] sm:$0xff]
        %v5013 = vld [vmem:[%s2 + $0x118] sm:$0xff]
        %v5014 = vld [vmem:[%s2 + $0x120] sm:$0xff]
        %v5015 = vld [vmem:[%s2 + $0x128] sm:$0xff]
        %v5016 = vld [vmem:[%s2 + $0x130] sm:$0xff]
        %v5017 = vld [vmem:[%s2 + $0x138] sm:$0xff]
        %v5018 = vld [vmem:[%s2 + $0x140] sm:$0xff]
        %v5019 = vld [vmem:[%s2 + $0x148] sm:$0xff]
        %v5020 = vld [vmem:[%s2 + $0x150] sm:$0xff]
        %v5021 = vld [vmem:[%s2 + $0x158] sm:$0xff]
        %v5022 = vld [vmem:[%s2 + $0x160] sm:$0xff]
        %v5023 = vld [vmem:[%s2 + $0x168] sm:$0xff]
        %v5024 = vld [vmem:[%s2 + $0x170] sm:$0xff]
        %v5025 = vld [vmem:[%s2 + $0x178] sm:$0xff]
        %v5026 = vld [vmem:[%s3] sm:$0x3]
        %v5028 = vlaneseq
        %v5029 = vshrl.u32 %v5028, 7
        %v5030 = vsub.s32 0, %v5029
        %v5031 = vrot.slane %v5026, %v5030
        %v5032 = vlaneseq
        %v5033 = vshrl.u32 %v5032, 7
        %v5034 = vsub.s32 1, %v5033
        %v5035 = vrot.slane %v5026, %v5034
        %v5039 = vsel %vm365, %v4962, 0
        %v5042 = vsel %vm365, %v4963, 0
        %v5045 = vsel %vm365, %v4964, 0
        %v5048 = vsel %vm365, %v4965, 0
        %v5051 = vsel %vm365, %v4966, 0
        %v5054 = vsel %vm365, %v4967, 0
        %v5057 = vsel %vm365, %v4968, 0
        %v5060 = vsel %vm365, %v4969, 0
        %v5063 = vsel %vm365, %v4970, 0
        %v5066 = vsel %vm365, %v4971, 0
        %v5069 = vsel %vm365, %v4972, 0
        %v5072 = vsel %vm365, %v4973, 0
        %v5075 = vsel %vm365, %v4974, 0
        %v5078 = vsel %vm365, %v4975, 0
        %v5081 = vsel %vm365, %v4976, 0
        %v5084 = vsel %vm365, %v4977, 0
        %5086 = vmatprep.subr.mxu0 %v5009
        %5087 = vmatpush1.msra.mxu0 %v5008
        %5088 = vmatprep.subr.mxu0 %v5007
        %5089 = vmatpush1.msra.mxu0 %v5006
        %5090 = vmatprep.subr.mxu0 %v5005
        %5091 = vmatpush1.msra.mxu0 %v5004
        %5092 = vmatprep.subr.mxu0 %v5003
        %5093 = vmatpush1.msra.mxu0 %v5002
        %5094 = vmatprep.subr.mxu0 %v5001
        %5095 = vmatpush1.msra.mxu0 %v5000
        %5096 = vmatprep.subr.mxu0 %v4999
        %5097 = vmatpush1.msra.mxu0 %v4998
        %5098 = vmatprep.subr.mxu0 %v4997
        %5099 = vmatpush1.msra.mxu0 %v4996
        %5100 = vmatprep.subr.mxu0 %v4995
        %5101 = vmatpush1.msra.mxu0 %v4994
        %5102 = vmatprep.subr.mxu0 %v4993
        %5103 = vmatpush1.msra.mxu0 %v4992
        %5104 = vmatprep.subr.mxu0 %v4991
        %5105 = vmatpush1.msra.mxu0 %v4990
        %5106 = vmatprep.subr.mxu0 %v4989
        %5107 = vmatpush1.msra.mxu0 %v4988
        %5108 = vmatprep.subr.mxu0 %v4987
        %5109 = vmatpush1.msra.mxu0 %v4986
        %5110 = vmatprep.subr.mxu0 %v4985
        %5111 = vmatpush1.msra.mxu0 %v4984
        %5112 = vmatprep.subr.mxu0 %v4983
        %5113 = vmatpush1.msra.mxu0 %v4982
        %5114 = vmatprep.subr.mxu0 %v4981
        %5115 = vmatpush1.msra.mxu0 %v4980
        %5116 = vmatprep.subr.mxu0 %v4979
        %5117 = vmatpush1.msra.mxu0 %v4978
        %5118 = vmatprep.subr.mxu0 0.0
        %5119 = vmatpush2.msra.mxu0 0.0
        %5120 = vmatprep.subr.mxu0 0.0
        %5121 = vmatpush2.msra.mxu0 0.0
        %5122 = vmatprep.subr.mxu0 0.0
        %5123 = vmatpush2.msra.mxu0 0.0
        %5124 = vmatprep.subr.mxu0 0.0
        %5125 = vmatpush2.msra.mxu0 0.0
        %5126 = vmatprep.subr.mxu0 0.0
        %5127 = vmatpush2.msra.mxu0 0.0
        %5128 = vmatprep.subr.mxu0 0.0
        %5129 = vmatpush2.msra.mxu0 0.0
        %5130 = vmatprep.subr.mxu0 0.0
        %5131 = vmatpush2.msra.mxu0 0.0
        %5132 = vmatprep.subr.mxu0 0.0
        %5133 = vmatpush2.msra.mxu0 0.0
        %5134 = vmatprep.subr.mxu0 %v5025
        %5135 = vmatpush2.msra.mxu0 %v5024
        %5136 = vmatprep.subr.mxu0 %v5023
        %5137 = vmatpush2.msra.mxu0 %v5022
        %5138 = vmatprep.subr.mxu0 %v5021
        %5139 = vmatpush2.msra.mxu0 %v5020
        %5140 = vmatprep.subr.mxu0 %v5019
        %5141 = vmatpush2.msra.mxu0 %v5018
        %5142 = vmatprep.subr.mxu0 %v5017
        %5143 = vmatpush2.msra.mxu0 %v5016
        %5144 = vmatprep.subr.mxu0 %v5015
        %5145 = vmatpush2.msra.mxu0 %v5014
        %5146 = vmatprep.subr.mxu0 %v5013
        %5147 = vmatpush2.msra.mxu0 %v5012
        %5148 = vmatprep.subr.mxu0 %v5011
        %5149 = vmatpush2.msra.mxu0 %v5010
        %5150 = vmatprep.mubr.f32.mxu0 %v5039
        %5151 = vmatmul.mubr.f32.gmra.mxu0 %v4946
        %v5152 = vpop.f32.mrf.mxu0
        %v5153 = vadd.f32 %v5031, %v5152
        %v5154 = vpop.f32.mrf.mxu0
        %v5155 = vadd.f32 %v5035, %v5154
        %5156 = vmatprep.mubr.f32.mxu0 %v5042
        %5157 = vmatmul.mubr.f32.gmra.mxu0 %v4947
        %v5158 = vpop.f32.mrf.mxu0
        %v5159 = vadd.f32 %v5031, %v5158
        %v5160 = vpop.f32.mrf.mxu0
        %v5161 = vadd.f32 %v5035, %v5160
        %5162 = vmatprep.mubr.f32.mxu0 %v5045
        %5163 = vmatmul.mubr.f32.gmra.mxu0 %v4948
        %v5164 = vpop.f32.mrf.mxu0
        %v5165 = vadd.f32 %v5031, %v5164
        %v5166 = vpop.f32.mrf.mxu0
        %v5167 = vadd.f32 %v5035, %v5166
        %5168 = vmatprep.mubr.f32.mxu0 %v5048
        %5169 = vmatmul.mubr.f32.gmra.mxu0 %v4949
        %v5170 = vpop.f32.mrf.mxu0
        %v5171 = vadd.f32 %v5031, %v5170
        %v5172 = vpop.f32.mrf.mxu0
        %v5173 = vadd.f32 %v5035, %v5172
        %5174 = vmatprep.mubr.f32.mxu0 %v5051
        %5175 = vmatmul.mubr.f32.gmra.mxu0 %v4950
        %v5176 = vpop.f32.mrf.mxu0
        %v5177 = vadd.f32 %v5031, %v5176
        %v5178 = vpop.f32.mrf.mxu0
        %v5179 = vadd.f32 %v5035, %v5178
        %5180 = vmatprep.mubr.f32.mxu0 %v5054
        %5181 = vmatmul.mubr.f32.gmra.mxu0 %v4951
        %v5182 = vpop.f32.mrf.mxu0
        %v5183 = vadd.f32 %v5031, %v5182
        %v5184 = vpop.f32.mrf.mxu0
        %v5185 = vadd.f32 %v5035, %v5184
        %5186 = vmatprep.mubr.f32.mxu0 %v5057
        %5187 = vmatmul.mubr.f32.gmra.mxu0 %v4952
        %v5188 = vpop.f32.mrf.mxu0
        %v5189 = vadd.f32 %v5031, %v5188
        %v5190 = vpop.f32.mrf.mxu0
        %v5191 = vadd.f32 %v5035, %v5190
        %5192 = vmatprep.mubr.f32.mxu0 %v5060
        %5193 = vmatmul.mubr.f32.gmra.mxu0 %v4953
        %v5194 = vpop.f32.mrf.mxu0
        %v5195 = vadd.f32 %v5031, %v5194
        %v5196 = vpop.f32.mrf.mxu0
        %v5197 = vadd.f32 %v5035, %v5196
        %5198 = vmatprep.mubr.f32.mxu0 %v5063
        %5199 = vmatmul.mubr.f32.gmra.mxu0 %v4954
        %v5200 = vpop.f32.mrf.mxu0
        %v5201 = vadd.f32 %v5031, %v5200
        %v5202 = vpop.f32.mrf.mxu0
        %v5203 = vadd.f32 %v5035, %v5202
        %5204 = vmatprep.mubr.f32.mxu0 %v5066
        %5205 = vmatmul.mubr.f32.gmra.mxu0 %v4955
        %v5206 = vpop.f32.mrf.mxu0
        %v5207 = vadd.f32 %v5031, %v5206
        %v5208 = vpop.f32.mrf.mxu0
        %v5209 = vadd.f32 %v5035, %v5208
        %5210 = vmatprep.mubr.f32.mxu0 %v5069
        %5211 = vmatmul.mubr.f32.gmra.mxu0 %v4956
        %v5212 = vpop.f32.mrf.mxu0
        %v5213 = vadd.f32 %v5031, %v5212
        %v5214 = vpop.f32.mrf.mxu0
        %v5215 = vadd.f32 %v5035, %v5214
        %5216 = vmatprep.mubr.f32.mxu0 %v5072
        %5217 = vmatmul.mubr.f32.gmra.mxu0 %v4957
        %v5218 = vpop.f32.mrf.mxu0
        %v5219 = vadd.f32 %v5031, %v5218
        %v5220 = vpop.f32.mrf.mxu0
        %v5221 = vadd.f32 %v5035, %v5220
        %5222 = vmatprep.mubr.f32.mxu0 %v5075
        %5223 = vmatmul.mubr.f32.gmra.mxu0 %v4958
        %v5224 = vpop.f32.mrf.mxu0
        %v5225 = vadd.f32 %v5031, %v5224
        %v5226 = vpop.f32.mrf.mxu0
        %v5227 = vadd.f32 %v5035, %v5226
        %5228 = vmatprep.mubr.f32.mxu0 %v5078
        %5229 = vmatmul.mubr.f32.gmra.mxu0 %v4959
        %v5230 = vpop.f32.mrf.mxu0
        %v5231 = vadd.f32 %v5031, %v5230
        %v5232 = vpop.f32.mrf.mxu0
        %v5233 = vadd.f32 %v5035, %v5232
        %5234 = vmatprep.mubr.f32.mxu0 %v5081
        %5235 = vmatmul.mubr.f32.gmra.mxu0 %v4960
        %v5236 = vpop.f32.mrf.mxu0
        %v5237 = vadd.f32 %v5031, %v5236
        %v5238 = vpop.f32.mrf.mxu0
        %v5239 = vadd.f32 %v5035, %v5238
        %5240 = vmatprep.mubr.f32.mxu0 %v5084
        %5241 = vmatmul.mubr.f32.gmra.mxu0 %v4961
        %v5242 = vpop.f32.mrf.mxu0
        %v5243 = vadd.f32 %v5031, %v5242
        %v5244 = vpop.f32.mrf.mxu0
        %v5245 = vadd.f32 %v5035, %v5244
        %5246 = vdwg.mxu0
        %5247 = vst [vmem:[%s212] sm:$0xff] %v5153
        %5248 = vst.msk [vmem:[%s212 + $0x8] sm:$0xff] %vm365, %v5155
        %5249 = vst [vmem:[%s212 + $0x10] sm:$0xff] %v5159
        %5250 = vst.msk [vmem:[%s212 + $0x18] sm:$0xff] %vm365, %v5161
        %5251 = vst [vmem:[%s212 + $0x20] sm:$0xff] %v5165
        %5252 = vst.msk [vmem:[%s212 + $0x28] sm:$0xff] %vm365, %v5167
        %5253 = vst [vmem:[%s212 + $0x30] sm:$0xff] %v5171
        %5254 = vst.msk [vmem:[%s212 + $0x38] sm:$0xff] %vm365, %v5173
        %5255 = vst [vmem:[%s212 + $0x40] sm:$0xff] %v5177
        %5256 = vst.msk [vmem:[%s212 + $0x48] sm:$0xff] %vm365, %v5179
        %5257 = vst [vmem:[%s212 + $0x50] sm:$0xff] %v5183
        %5258 = vst.msk [vmem:[%s212 + $0x58] sm:$0xff] %vm365, %v5185
        %5259 = vst [vmem:[%s212 + $0x60] sm:$0xff] %v5189
        %5260 = vst.msk [vmem:[%s212 + $0x68] sm:$0xff] %vm365, %v5191
        %5261 = vst [vmem:[%s212 + $0x70] sm:$0xff] %v5195
        %5262 = vst.msk [vmem:[%s212 + $0x78] sm:$0xff] %vm365, %v5197
        %5263 = vst [vmem:[%s212 + $0x80] sm:$0xff] %v5201
        %5264 = vst.msk [vmem:[%s212 + $0x88] sm:$0xff] %vm365, %v5203
        %5265 = vst [vmem:[%s212 + $0x90] sm:$0xff] %v5207
        %5266 = vst.msk [vmem:[%s212 + $0x98] sm:$0xff] %vm365, %v5209
        %5267 = vst [vmem:[%s212 + $0xa0] sm:$0xff] %v5213
        %5268 = vst.msk [vmem:[%s212 + $0xa8] sm:$0xff] %vm365, %v5215
        %5269 = vst [vmem:[%s212 + $0xb0] sm:$0xff] %v5219
        %5270 = vst.msk [vmem:[%s212 + $0xb8] sm:$0xff] %vm365, %v5221
        %5271 = vst [vmem:[%s212 + $0xc0] sm:$0xff] %v5225
        %5272 = vst.msk [vmem:[%s212 + $0xc8] sm:$0xff] %vm365, %v5227
        %5273 = vst [vmem:[%s212 + $0xd0] sm:$0xff] %v5231
        %5274 = vst.msk [vmem:[%s212 + $0xd8] sm:$0xff] %vm365, %v5233
        %5275 = vst [vmem:[%s212 + $0xe0] sm:$0xff] %v5237
        %5276 = vst.msk [vmem:[%s212 + $0xe8] sm:$0xff] %vm365, %v5239
        %5277 = vst [vmem:[%s212 + $0xf0] sm:$0xff] %v5243
        %5278 = vst.msk [vmem:[%s212 + $0xf8] sm:$0xff] %vm365, %v5245
        %p5279 = scmp.lt.s32.totalorder %s16, 1
        %s5280 = scalar_select %p5279, %s16, 1
        %s5281 = smul.addr %s5280, 32
        %s5282 = smul.addr %s5281, 8
        %s5283 = scalar_lea.vmem %s4, %s5282
        // Predicated region
        $region41: #{tpu_custom_call.1} parent=35 // pred_check
          %p5284 = pneg %p123
        $region42: #{tpu_custom_call.1} parent=35 // pred_check_branch
          %5286 = sbr.rel (%p5284) target = $region44
        $region43: #{tpu_custom_call.1} parent=35 // pred_region
          _
        $region44: #{tpu_custom_call.1} parent=35 // pred_fallthru
          _
      $region36: #{tpu_custom_call.1} parent=5 // pred_fallthru
        _
      %p5287 = scmp.le.s32.totalorder 2, %s11
      // Predicated region
      $region45: #{tpu_custom_call.1} parent=5 // pred_check
        %p5288 = pneg %p5287
      $region46: #{tpu_custom_call.1} parent=5 // pred_check_branch
        %5290 = sbr.rel (%p5288) target = $region48
      $region47: #{tpu_custom_call.1} parent=5 // pred_region
        %s5291 = ssub.s32 %s11, 2
        // Predicated region
        $region49: #{tpu_custom_call.1} parent=47 // pred_check
          %p5292 = pneg %p129
        $region50: #{tpu_custom_call.1} parent=47 // pred_check_branch
          %5294 = sbr.rel (%p5292) target = $region52
        $region51: #{tpu_custom_call.1} parent=47 // pred_region
          %p5295 = scmp.lt.s32.totalorder %s17, 1
          %s5296 = scalar_select %p5295, %s17, 1
          %s5297 = smul.addr %s5296, 32
          %s5298 = smul.addr %s5297, 8
          %s5299 = scalar_lea.vmem %s4, %s5298
        $region52: #{tpu_custom_call.1} parent=47 // pred_fallthru
          _
      $region48: #{tpu_custom_call.1} parent=5 // pred_fallthru
        _
    $region6: #{tpu_custom_call.1} parent=1 // loop_footer
      %s15 = sadd.s32 1, %s11
    $region7: #{tpu_custom_call.1} parent=1 // loop_footer_branch
      %10 = sbr.rel target = $region3
    $region8: #{tpu_custom_call.1} parent=1 // loop_exit
      _
    %5300 = vsyncpa [#allocation3], 1
    %s5301 = scalar_lea.sflag [#allocation3], 1
    %5302 = vsyncpa %s5301, 1

</llo_original>
